<compile_context>
chip_gen: v5e
topology: v5e:2x2
jax: 0.10.0
libtpu: 0.0.40
codegen_flags: <defaults>
</compile_context>

<pallas_src>
import functools

import jax
import jax.numpy as jnp
from jax.experimental import pallas as pl
from jax.experimental.pallas import tpu as pltpu


# ------------------------------ fused kernel -------------------------------

def _text_encoder_kernel(
        emb_ref, mask_ref,
        eg_ref, eb_ref,
        wqkv_ref, bqkv_ref, wo_ref, bo_ref,
        ln1g_ref, ln1b_ref, w1_ref, b1_ref, w2_ref, b2_ref,
        ln2g_ref, ln2b_ref,
        phiw_ref, phib_ref, qproj_ref,
        pwkv_ref, pbkv_ref, pwo_ref, pbo_ref,
        out_ref,
        h_scr,
        *, n_heads, pool_heads, eps):
    """grid = (batch_tile, layer).  One step == one transformer layer applied
    to one (TB, L, D) batch tile; activations persist in VMEM scratch."""

    layer = pl.program_id(1)
    n_layers = pl.num_programs(1)

    tb, seq, dm = emb_ref.shape
    dp = out_ref.shape[-1]

    def ln(x, g, b):
        # one-pass statistics: var = E[x^2] - E[x]^2, all in f32.
        xf = x.astype(jnp.float32)
        mu = jnp.mean(xf, axis=-1, keepdims=True)
        mu2 = jnp.mean(xf * xf, axis=-1, keepdims=True)
        var = mu2 - mu * mu
        return (xf - mu) * jax.lax.rsqrt(var + eps) * g + b

    def mm(x, w):
        # bf16 operands into the MXU, f32 accumulation.
        return jnp.dot(x.astype(jnp.bfloat16), w.astype(jnp.bfloat16),
                       preferred_element_type=jnp.float32)

    # Additive attention bias, computed once per grid step and reused by every
    # head of every attention in this step: (TB, 1, L), 0 for valid, -1e30 pad.
    bias = jnp.where(mask_ref[...] > 0.5, 0.0, -1e30).astype(jnp.float32)

    def mha(q3, k3, v3, n_h):
        # q3: (TB, Lq, Dmodel), k3/v3: (TB, Lk, Dmodel).
        # Per-head loop, but every head is batched over the whole batch tile
        # with a single 3-D einsum (one batch dim -> supported lowering).
        d = q3.shape[2]
        dh = d // n_h
        scale = 1.0 / float(dh) ** 0.5
        ctx = []
        for h in range(n_h):
            sl = slice(h * dh, (h + 1) * dh)
            qh = q3[:, :, sl].astype(jnp.bfloat16)
            kh = k3[:, :, sl].astype(jnp.bfloat16)
            vh = v3[:, :, sl].astype(jnp.bfloat16)
            s = jnp.einsum('bqd,bkd->bqk', qh, kh,
                           preferred_element_type=jnp.float32) * scale
            s = s + bias                                   # (TB, Lq, Lk)
            s = s - jnp.max(s, axis=-1, keepdims=True)
            p = jnp.exp(s)
            p = p * pl.reciprocal(jnp.sum(p, axis=-1, keepdims=True),
                                  approx=True)
            ctx.append(jnp.einsum('bqk,bkd->bqd', p.astype(jnp.bfloat16), vh,
                                  preferred_element_type=jnp.float32))
        return jnp.concatenate(ctx, axis=-1)               # (TB, Lq, Dmodel)

    # ---- layer 0: embedding LayerNorm into the persistent activation slab ----
    @pl.when(layer == 0)
    def _():
        x = emb_ref[...].reshape(tb * seq, dm)             # bf16 -> f32 in ln()
        h_scr[...] = ln(x, eg_ref[...], eb_ref[...])

    # ---- one transformer layer (every grid step) ----
    h = h_scr[...]                                         # (TB*L, D) f32
    qkv = mm(h, wqkv_ref[0]) + bqkv_ref[0]                 # (TB*L, 3D)
    q = qkv[:, :dm].reshape(tb, seq, dm)
    k = qkv[:, dm:2 * dm].reshape(tb, seq, dm)
    v = qkv[:, 2 * dm:].reshape(tb, seq, dm)
    a = mha(q, k, v, n_heads).reshape(tb * seq, dm)        # (TB*L, D)
    a = mm(a, wo_ref[0]) + bo_ref[0]
    h = ln(a + h, ln1g_ref[0], ln1b_ref[0])                # residual fused in LN
    f = jax.nn.gelu(mm(h, w1_ref[0]) + b1_ref[0], approximate=True)
    f = mm(f, w2_ref[0]) + b2_ref[0]
    h = ln(f + h, ln2g_ref[0], ln2b_ref[0])
    h_scr[...] = h

    # ---- last layer: phi + attentional pooling + output projection ----
    @pl.when(layer == n_layers - 1)
    def _():
        feats = jax.nn.gelu(mm(h, phiw_ref[...]) + phib_ref[...],
                            approximate=True)              # (TB*L, Dp)
        kv = mm(feats, pwkv_ref[...]) + pbkv_ref[...]      # (TB*L, 2Dp)
        kp = kv[:, :dp].reshape(tb, seq, dp)
        vp = kv[:, dp:].reshape(tb, seq, dp)
        # pooling query was projected once in the wrapper (batch independent)
        qp = jnp.broadcast_to(qproj_ref[...].reshape(1, 1, dp), (tb, 1, dp))
        pooled = mha(qp, kp, vp, pool_heads).reshape(tb, dp)
        pooled = mm(pooled, pwo_ref[...]) + pbo_ref[...]
        out_ref[...] = pooled.reshape(tb, 1, dp).astype(out_ref.dtype)


# ------------------------------- parameters --------------------------------

def init_params(key, cfg):
    D, I, Dp, nL = cfg["hidden"], cfg["inter"], cfg["output_dim"], cfg["n_layers"]
    keys = iter(jax.random.split(key, 64))
    wdt = jnp.bfloat16   # MXU operand dtype for weight matrices

    def nrm(shape, std=0.02, dtype=jnp.float32):
        return (jax.random.normal(next(keys), shape, jnp.float32) * std).astype(dtype)

    zeros = lambda shape: jnp.zeros(shape, jnp.float32)
    ones = lambda shape: jnp.ones(shape, jnp.float32)

    return dict(
        word_emb=nrm((cfg["vocab"], D)),
        pos_emb=nrm((cfg["max_pos"], D)),
        type_emb=nrm((2, D)),
        emb_ln_g=ones((1, D)), emb_ln_b=zeros((1, D)),
        # per-layer weights stacked along a leading layer axis (pipelined)
        wqkv=nrm((nL, D, 3 * D), dtype=wdt), bqkv=zeros((nL, 1, 3 * D)),
        wo=nrm((nL, D, D), dtype=wdt),       bo=zeros((nL, 1, D)),
        ln1_g=ones((nL, 1, D)),              ln1_b=zeros((nL, 1, D)),
        w1=nrm((nL, D, I), dtype=wdt),       b1=zeros((nL, 1, I)),
        w2=nrm((nL, I, D), dtype=wdt),       b2=zeros((nL, 1, D)),
        ln2_g=ones((nL, 1, D)),              ln2_b=zeros((nL, 1, D)),
        phi_w=nrm((D, Dp), dtype=wdt),       phi_b=zeros((1, Dp)),
        # nn.Parameter(torch.randn(1, 1, output_dim)) -> same query every batch
        query=jax.random.normal(next(keys), (1, Dp), jnp.float32),
        pool_wq=nrm((Dp, Dp), dtype=wdt),       pool_bq=zeros((1, Dp)),
        pool_wkv=nrm((Dp, 2 * Dp), dtype=wdt),  pool_bkv=zeros((1, 2 * Dp)),
        pool_wo=nrm((Dp, Dp), dtype=wdt),       pool_bo=zeros((1, Dp)),
    )


# ------------------------------ forward pass --------------------------------

def text_encoder_forward(params, input_ids, attention_mask, cfg, batch_tile=None):
    B, L = input_ids.shape
    D, Dp, nL = cfg["hidden"], cfg["output_dim"], cfg["n_layers"]

    # Embedding gather + additive embeddings: XLA glue (data-dependent gather).
    # Slab shipped in bf16 to halve activation DMA; promoted to f32 in-kernel.
    emb = (jnp.take(params["word_emb"], input_ids, axis=0)
           + params["pos_emb"][:L][None, :, :]
           + params["type_emb"][0][None, None, :]).astype(jnp.bfloat16)    # (B,L,D)
    mask = attention_mask.astype(jnp.float32).reshape(B, 1, L)             # (B,1,L)

    # Batch tile: aim for >=128 MXU rows (TB*L) per matmul, capped at B.
    # TODO(synk): on v7x with large B, cap TB so the batch-tile grid has >=2
    # blocks and both TensorCores stay busy.
    if batch_tile is None:
        batch_tile = max(1, min(B, 128 // max(1, L)))
    tb = batch_tile
    nb = pl.cdiv(B, tb)
    b_pad = nb * tb
    if b_pad != B:
        emb = jnp.pad(emb, ((0, b_pad - B), (0, 0), (0, 0)))
        mask = jnp.pad(mask, ((0, b_pad - B), (0, 0), (0, 0)))

    # Pooling query projection is batch independent: hoist it out of the kernel.
    q_proj = (jnp.dot(params["query"], params["pool_wq"].astype(jnp.float32))
              + params["pool_bq"])                                         # (1,Dp)

    const_w = [params["emb_ln_g"], params["emb_ln_b"]]
    per_layer = [
        params["wqkv"], params["bqkv"], params["wo"], params["bo"],
        params["ln1_g"], params["ln1_b"],
        params["w1"], params["b1"], params["w2"], params["b2"],
        params["ln2_g"], params["ln2_b"],
    ]
    tail_w = [
        params["phi_w"], params["phi_b"], q_proj,
        params["pool_wkv"], params["pool_bkv"],
        params["pool_wo"], params["pool_bo"],
    ]

    def full_spec(arr):
        nd = arr.ndim
        return pl.BlockSpec(arr.shape, lambda b, l, nd=nd: (0,) * nd)

    def layer_spec(arr):
        nd = arr.ndim   # leading axis == layer
        return pl.BlockSpec((1,) + arr.shape[1:],
                            lambda b, l, nd=nd: (l,) + (0,) * (nd - 1))

    in_specs = (
        [pl.BlockSpec((tb, L, D), lambda b, l: (b, 0, 0)),   # activation slab
         pl.BlockSpec((tb, 1, L), lambda b, l: (b, 0, 0))]   # attention mask
        + [full_spec(w) for w in const_w]
        + [layer_spec(w) for w in per_layer]
        + [full_spec(w) for w in tail_w]
    )

    kernel = functools.partial(
        _text_encoder_kernel,
        n_heads=cfg["heads"], pool_heads=cfg["pool_heads"], eps=1e-12)

    pooled = pl.pallas_call(
        kernel,
        out_shape=jax.ShapeDtypeStruct((b_pad, 1, Dp), jnp.float32),
        grid=(nb, nL),
        in_specs=in_specs,
        out_specs=pl.BlockSpec((tb, 1, Dp), lambda b, l: (b, 0, 0)),
        scratch_shapes=[pltpu.VMEM((tb * L, D), jnp.float32)],   # persistent h
        compiler_params=pltpu.CompilerParams(
            dimension_semantics=("parallel", "arbitrary"),
            vmem_limit_bytes=48 * 1024 * 1024),
    )(emb, mask, *const_w, *per_layer, *tail_w)

    return pooled.reshape(b_pad, Dp)[:B]


# ---------------------------------- main ------------------------------------

if __name__ == "__main__":
    cfg = dict(vocab=64, max_pos=32, hidden=128, heads=8, inter=256,
               n_layers=2, output_dim=128, pool_heads=8)

    key = jax.random.PRNGKey(0)
    pkey, dkey = jax.random.split(key)
    params = init_params(pkey, cfg)

    B, L = 2, 8
    input_ids = jax.random.randint(dkey, (B, L), 0, cfg["vocab"], dtype=jnp.int32)
    attention_mask = jnp.array([[1, 1, 1, 1, 1, 1, 1, 1],
                                [1, 1, 1, 1, 1, 0, 0, 0]], dtype=jnp.int32)

    fwd = jax.jit(functools.partial(text_encoder_forward, cfg=cfg))
    out = fwd(params, input_ids, attention_mask)
    jax.block_until_ready(out)

    assert out.shape == (B, cfg["output_dim"]), out.shape
    assert out.dtype == jnp.float32
    assert bool(jnp.all(jnp.isfinite(out)))
    print("KERNEL_OK")
</pallas_src>

<mosaic_0001>
module attributes {stable_mosaic.version = 11 : i64} {
  func.func @_text_encoder_kernel(%arg0: i32, %arg1: i32, %arg2: memref<2x8x128xbf16, #tpu.memory_space<vmem>>, %arg3: memref<2x1x8xf32, #tpu.memory_space<vmem>>, %arg4: memref<1x128xf32, #tpu.memory_space<vmem>>, %arg5: memref<1x128xf32, #tpu.memory_space<vmem>>, %arg6: memref<1x128x384xbf16, #tpu.memory_space<vmem>>, %arg7: memref<1x1x384xf32, #tpu.memory_space<vmem>>, %arg8: memref<1x128x128xbf16, #tpu.memory_space<vmem>>, %arg9: memref<1x1x128xf32, #tpu.memory_space<vmem>>, %arg10: memref<1x1x128xf32, #tpu.memory_space<vmem>>, %arg11: memref<1x1x128xf32, #tpu.memory_space<vmem>>, %arg12: memref<1x128x256xbf16, #tpu.memory_space<vmem>>, %arg13: memref<1x1x256xf32, #tpu.memory_space<vmem>>, %arg14: memref<1x256x128xbf16, #tpu.memory_space<vmem>>, %arg15: memref<1x1x128xf32, #tpu.memory_space<vmem>>, %arg16: memref<1x1x128xf32, #tpu.memory_space<vmem>>, %arg17: memref<1x1x128xf32, #tpu.memory_space<vmem>>, %arg18: memref<128x128xbf16, #tpu.memory_space<vmem>>, %arg19: memref<1x128xf32, #tpu.memory_space<vmem>>, %arg20: memref<1x128xf32, #tpu.memory_space<vmem>>, %arg21: memref<128x256xbf16, #tpu.memory_space<vmem>>, %arg22: memref<1x256xf32, #tpu.memory_space<vmem>>, %arg23: memref<128x128xbf16, #tpu.memory_space<vmem>>, %arg24: memref<1x128xf32, #tpu.memory_space<vmem>>, %arg25: memref<2x1x128xf32, #tpu.memory_space<vmem>>, %arg26: memref<16x128xf32, #tpu.memory_space<vmem>>) attributes {dimension_semantics = [#tpu.dimension_semantics<parallel>, #tpu.dimension_semantics<arbitrary>], iteration_bounds = array<i64: 1, 2>, scalar_prefetch = 0 : i64, scratch_operands = 1 : i64, tpu.core_type = #tpu.core_type<tc>, window_params = [{transform_indices = @transform_0, window_bounds = array<i64: 2, 8, 128>}, {transform_indices = @transform_1, window_bounds = array<i64: 2, 1, 8>}, {pipeline_mode = #tpu.pipeline_mode<synchronous>, transform_indices = @transform_2, window_bounds = array<i64: 1, 128>}, {pipeline_mode = #tpu.pipeline_mode<synchronous>, transform_indices = @transform_3, window_bounds = array<i64: 1, 128>}, {transform_indices = @transform_4, window_bounds = array<i64: 1, 128, 384>}, {transform_indices = @transform_5, window_bounds = array<i64: 1, 1, 384>}, {transform_indices = @transform_6, window_bounds = array<i64: 1, 128, 128>}, {transform_indices = @transform_7, window_bounds = array<i64: 1, 1, 128>}, {transform_indices = @transform_8, window_bounds = array<i64: 1, 1, 128>}, {transform_indices = @transform_9, window_bounds = array<i64: 1, 1, 128>}, {transform_indices = @transform_10, window_bounds = array<i64: 1, 128, 256>}, {transform_indices = @transform_11, window_bounds = array<i64: 1, 1, 256>}, {transform_indices = @transform_12, window_bounds = array<i64: 1, 256, 128>}, {transform_indices = @transform_13, window_bounds = array<i64: 1, 1, 128>}, {transform_indices = @transform_14, window_bounds = array<i64: 1, 1, 128>}, {transform_indices = @transform_15, window_bounds = array<i64: 1, 1, 128>}, {pipeline_mode = #tpu.pipeline_mode<synchronous>, transform_indices = @transform_16, window_bounds = array<i64: 128, 128>}, {pipeline_mode = #tpu.pipeline_mode<synchronous>, transform_indices = @transform_17, window_bounds = array<i64: 1, 128>}, {pipeline_mode = #tpu.pipeline_mode<synchronous>, transform_indices = @transform_18, window_bounds = array<i64: 1, 128>}, {pipeline_mode = #tpu.pipeline_mode<synchronous>, transform_indices = @transform_19, window_bounds = array<i64: 128, 256>}, {pipeline_mode = #tpu.pipeline_mode<synchronous>, transform_indices = @transform_20, window_bounds = array<i64: 1, 256>}, {pipeline_mode = #tpu.pipeline_mode<synchronous>, transform_indices = @transform_21, window_bounds = array<i64: 128, 128>}, {pipeline_mode = #tpu.pipeline_mode<synchronous>, transform_indices = @transform_22, window_bounds = array<i64: 1, 128>}, {transform_indices = @transform_23, window_bounds = array<i64: 2, 1, 128>}]} {
    %c0 = arith.constant 0 : index
    %c0_0 = arith.constant 0 : index
    %c0_1 = arith.constant 0 : index
    %0 = vector.load %arg3[%c0, %c0_0, %c0_1] : memref<2x1x8xf32, #tpu.memory_space<vmem>>, vector<2x1x8xf32>
    %cst = arith.constant 5.000000e-01 : f32
    %1 = vector.broadcast %cst : f32 to vector<2x1x8xf32>
    %2 = arith.cmpf ogt, %0, %1 : vector<2x1x8xf32>
    %cst_2 = arith.constant 0.000000e+00 : f32
    %cst_3 = arith.constant -1.000000e+30 : f32
    %3 = vector.broadcast %cst_2 : f32 to vector<2x1x8xf32>
    %4 = vector.broadcast %cst_3 : f32 to vector<2x1x8xf32>
    %5 = arith.select %2, %3, %4 : vector<2x1x8xi1>, vector<2x1x8xf32>
    %c0_i32 = arith.constant 0 : i32
    %6 = arith.cmpi eq, %arg1, %c0_i32 : i32
    %7 = arith.extui %6 : i1 to i32
    %c0_i32_4 = arith.constant 0 : i32
    %8 = arith.cmpi ne, %7, %c0_i32_4 : i32
    scf.if %8 {
      %c0_104 = arith.constant 0 : index
      %c0_105 = arith.constant 0 : index
      %c0_106 = arith.constant 0 : index
      %305 = vector.load %arg2[%c0_104, %c0_105, %c0_106] : memref<2x8x128xbf16, #tpu.memory_space<vmem>>, vector<2x8x128xbf16>
      %306 = vector.shape_cast %305 : vector<2x8x128xbf16> to vector<16x128xbf16>
      %c0_107 = arith.constant 0 : index
      %c0_108 = arith.constant 0 : index
      %307 = vector.load %arg4[%c0_107, %c0_108] : memref<1x128xf32, #tpu.memory_space<vmem>>, vector<1x128xf32>
      %c0_109 = arith.constant 0 : index
      %c0_110 = arith.constant 0 : index
      %308 = vector.load %arg5[%c0_109, %c0_110] : memref<1x128xf32, #tpu.memory_space<vmem>>, vector<1x128xf32>
      %309 = arith.extf %306 : vector<16x128xbf16> to vector<16x128xf32>
      %cst_111 = arith.constant dense<0.000000e+00> : vector<16xf32>
      %310 = vector.multi_reduction <add>, %309, %cst_111 [1] : vector<16x128xf32> to vector<16xf32>
      %311 = vector.shape_cast %310 : vector<16xf32> to vector<16x1xf32>
      %cst_112 = arith.constant 1.280000e+02 : f32
      %312 = vector.broadcast %cst_112 : f32 to vector<16x1xf32>
      %313 = arith.divf %311, %312 : vector<16x1xf32>
      %314 = arith.mulf %309, %309 : vector<16x128xf32>
      %cst_113 = arith.constant dense<0.000000e+00> : vector<16xf32>
      %315 = vector.multi_reduction <add>, %314, %cst_113 [1] : vector<16x128xf32> to vector<16xf32>
      %316 = vector.shape_cast %315 : vector<16xf32> to vector<16x1xf32>
      %cst_114 = arith.constant 1.280000e+02 : f32
      %317 = vector.broadcast %cst_114 : f32 to vector<16x1xf32>
      %318 = arith.divf %316, %317 : vector<16x1xf32>
      %319 = arith.mulf %313, %313 : vector<16x1xf32>
      %320 = arith.subf %318, %319 : vector<16x1xf32>
      %321 = vector.broadcast %313 : vector<16x1xf32> to vector<16x128xf32>
      %322 = arith.subf %309, %321 : vector<16x128xf32>
      %cst_115 = arith.constant 9.99999996E-13 : f32
      %323 = vector.broadcast %cst_115 : f32 to vector<16x1xf32>
      %324 = arith.addf %320, %323 : vector<16x1xf32>
      %325 = math.rsqrt %324 : vector<16x1xf32>
      %326 = vector.broadcast %325 : vector<16x1xf32> to vector<16x128xf32>
      %327 = arith.mulf %322, %326 : vector<16x128xf32>
      %328 = vector.broadcast %307 : vector<1x128xf32> to vector<16x128xf32>
      %329 = arith.mulf %327, %328 : vector<16x128xf32>
      %330 = vector.broadcast %308 : vector<1x128xf32> to vector<16x128xf32>
      %331 = arith.addf %329, %330 : vector<16x128xf32>
      %c0_116 = arith.constant 0 : index
      %c0_117 = arith.constant 0 : index
      %332 = vector.load %arg26[%c0_116, %c0_117] : memref<16x128xf32, #tpu.memory_space<vmem>>, vector<16x128xf32>
      tpu.vector_store %arg26[%c0_116, %c0_117], %331 {strides = array<i32>} : memref<16x128xf32, #tpu.memory_space<vmem>>, vector<16x128xf32>,
    } else {
    }
    %c0_5 = arith.constant 0 : index
    %c0_6 = arith.constant 0 : index
    %9 = vector.load %arg26[%c0_5, %c0_6] : memref<16x128xf32, #tpu.memory_space<vmem>>, vector<16x128xf32>
    %c0_7 = arith.constant 0 : index
    %c0_8 = arith.constant 0 : index
    %c0_9 = arith.constant 0 : index
    %10 = vector.load %arg6[%c0_7, %c0_8, %c0_9] : memref<1x128x384xbf16, #tpu.memory_space<vmem>>, vector<1x128x384xbf16>
    %11 = vector.shape_cast %10 : vector<1x128x384xbf16> to vector<128x384xbf16>
    %12 = arith.truncf %9 : vector<16x128xf32> to vector<16x128xbf16>
    %cst_10 = arith.constant dense<0.000000e+00> : vector<16x384xf32>
    %13 = tpu.matmul %12, %11, %cst_10 {dimension_numbers = #tpu.dot_dimension_numbers<[1], [0], [0], [1], [0, 0, 1, 1], [], []>} : vector<16x128xbf16>, vector<128x384xbf16>, vector<16x384xf32> -> vector<16x384xf32>
    %c0_11 = arith.constant 0 : index
    %c0_12 = arith.constant 0 : index
    %c0_13 = arith.constant 0 : index
    %14 = vector.load %arg7[%c0_11, %c0_12, %c0_13] : memref<1x1x384xf32, #tpu.memory_space<vmem>>, vector<1x1x384xf32>
    %15 = vector.shape_cast %14 : vector<1x1x384xf32> to vector<1x384xf32>
    %16 = vector.broadcast %15 : vector<1x384xf32> to vector<16x384xf32>
    %17 = arith.addf %13, %16 : vector<16x384xf32>
    %18 = vector.extract_strided_slice %17 {offsets = [0, 0], sizes = [16, 128], strides = [1, 1]} : vector<16x384xf32> to vector<16x128xf32>
    %19 = vector.shape_cast %18 : vector<16x128xf32> to vector<2x8x128xf32>
    %20 = vector.extract_strided_slice %17 {offsets = [0, 128], sizes = [16, 128], strides = [1, 1]} : vector<16x384xf32> to vector<16x128xf32>
    %21 = vector.shape_cast %20 : vector<16x128xf32> to vector<2x8x128xf32>
    %22 = vector.extract_strided_slice %17 {offsets = [0, 256], sizes = [16, 128], strides = [1, 1]} : vector<16x384xf32> to vector<16x128xf32>
    %23 = vector.shape_cast %22 : vector<16x128xf32> to vector<2x8x128xf32>
    %24 = vector.extract_strided_slice %19 {offsets = [0, 0, 0], sizes = [2, 8, 16], strides = [1, 1, 1]} : vector<2x8x128xf32> to vector<2x8x16xf32>
    %25 = arith.truncf %24 : vector<2x8x16xf32> to vector<2x8x16xbf16>
    %26 = vector.extract_strided_slice %21 {offsets = [0, 0, 0], sizes = [2, 8, 16], strides = [1, 1, 1]} : vector<2x8x128xf32> to vector<2x8x16xf32>
    %27 = arith.truncf %26 : vector<2x8x16xf32> to vector<2x8x16xbf16>
    %28 = vector.extract_strided_slice %23 {offsets = [0, 0, 0], sizes = [2, 8, 16], strides = [1, 1, 1]} : vector<2x8x128xf32> to vector<2x8x16xf32>
    %29 = arith.truncf %28 : vector<2x8x16xf32> to vector<2x8x16xbf16>
    "tpu.trace_start"() <{level = 10 : i32, message = "bqd,bkd->bqk"}> : () -> ()
    %cst_14 = arith.constant dense<0.000000e+00> : vector<2x8x8xf32>
    %30 = tpu.matmul %25, %27, %cst_14 {dimension_numbers = #tpu.dot_dimension_numbers<[2], [2], [1], [1], [0, 0, 0, 1, 1, 1], [0], [0]>} : vector<2x8x16xbf16>, vector<2x8x16xbf16>, vector<2x8x8xf32> -> vector<2x8x8xf32>
    "tpu.trace_stop"() : () -> ()
    %cst_15 = arith.constant 2.500000e-01 : f32
    %31 = vector.broadcast %cst_15 : f32 to vector<2x8x8xf32>
    %32 = arith.mulf %30, %31 : vector<2x8x8xf32>
    %33 = vector.broadcast %5 : vector<2x1x8xf32> to vector<2x8x8xf32>
    %34 = arith.addf %32, %33 : vector<2x8x8xf32>
    %cst_16 = arith.constant dense<0xFF800000> : vector<2x8xf32>
    %35 = vector.multi_reduction <maximumf>, %34, %cst_16 [2] : vector<2x8x8xf32> to vector<2x8xf32>
    %36 = vector.shape_cast %35 : vector<2x8xf32> to vector<2x8x1xf32>
    %37 = vector.broadcast %36 : vector<2x8x1xf32> to vector<2x8x8xf32>
    %38 = arith.subf %34, %37 : vector<2x8x8xf32>
    %39 = math.exp %38 : vector<2x8x8xf32>
    %cst_17 = arith.constant dense<0.000000e+00> : vector<2x8xf32>
    %40 = vector.multi_reduction <add>, %39, %cst_17 [2] : vector<2x8x8xf32> to vector<2x8xf32>
    %41 = vector.shape_cast %40 : vector<2x8xf32> to vector<2x8x1xf32>
    %42 = tpu.reciprocal %41 {approx = true} : vector<2x8x1xf32> -> vector<2x8x1xf32>
    %43 = vector.broadcast %42 : vector<2x8x1xf32> to vector<2x8x8xf32>
    %44 = arith.mulf %39, %43 : vector<2x8x8xf32>
    %45 = arith.truncf %44 : vector<2x8x8xf32> to vector<2x8x8xbf16>
    "tpu.trace_start"() <{level = 10 : i32, message = "bqk,bkd->bqd"}> : () -> ()
    %cst_18 = arith.constant dense<0.000000e+00> : vector<2x8x16xf32>
    %46 = tpu.matmul %45, %29, %cst_18 {dimension_numbers = #tpu.dot_dimension_numbers<[2], [1], [1], [2], [0, 0, 0, 1, 1, 2], [0], [0]>} : vector<2x8x8xbf16>, vector<2x8x16xbf16>, vector<2x8x16xf32> -> vector<2x8x16xf32>
    "tpu.trace_stop"() : () -> ()
    %47 = vector.extract_strided_slice %19 {offsets = [0, 0, 16], sizes = [2, 8, 16], strides = [1, 1, 1]} : vector<2x8x128xf32> to vector<2x8x16xf32>
    %48 = arith.truncf %47 : vector<2x8x16xf32> to vector<2x8x16xbf16>
    %49 = vector.extract_strided_slice %21 {offsets = [0, 0, 16], sizes = [2, 8, 16], strides = [1, 1, 1]} : vector<2x8x128xf32> to vector<2x8x16xf32>
    %50 = arith.truncf %49 : vector<2x8x16xf32> to vector<2x8x16xbf16>
    %51 = vector.extract_strided_slice %23 {offsets = [0, 0, 16], sizes = [2, 8, 16], strides = [1, 1, 1]} : vector<2x8x128xf32> to vector<2x8x16xf32>
    %52 = arith.truncf %51 : vector<2x8x16xf32> to vector<2x8x16xbf16>
    "tpu.trace_start"() <{level = 10 : i32, message = "bqd,bkd->bqk"}> : () -> ()
    %cst_19 = arith.constant dense<0.000000e+00> : vector<2x8x8xf32>
    %53 = tpu.matmul %48, %50, %cst_19 {dimension_numbers = #tpu.dot_dimension_numbers<[2], [2], [1], [1], [0, 0, 0, 1, 1, 1], [0], [0]>} : vector<2x8x16xbf16>, vector<2x8x16xbf16>, vector<2x8x8xf32> -> vector<2x8x8xf32>
    "tpu.trace_stop"() : () -> ()
    %cst_20 = arith.constant 2.500000e-01 : f32
    %54 = vector.broadcast %cst_20 : f32 to vector<2x8x8xf32>
    %55 = arith.mulf %53, %54 : vector<2x8x8xf32>
    %56 = vector.broadcast %5 : vector<2x1x8xf32> to vector<2x8x8xf32>
    %57 = arith.addf %55, %56 : vector<2x8x8xf32>
    %cst_21 = arith.constant dense<0xFF800000> : vector<2x8xf32>
    %58 = vector.multi_reduction <maximumf>, %57, %cst_21 [2] : vector<2x8x8xf32> to vector<2x8xf32>
    %59 = vector.shape_cast %58 : vector<2x8xf32> to vector<2x8x1xf32>
    %60 = vector.broadcast %59 : vector<2x8x1xf32> to vector<2x8x8xf32>
    %61 = arith.subf %57, %60 : vector<2x8x8xf32>
    %62 = math.exp %61 : vector<2x8x8xf32>
    %cst_22 = arith.constant dense<0.000000e+00> : vector<2x8xf32>
    %63 = vector.multi_reduction <add>, %62, %cst_22 [2] : vector<2x8x8xf32> to vector<2x8xf32>
    %64 = vector.shape_cast %63 : vector<2x8xf32> to vector<2x8x1xf32>
    %65 = tpu.reciprocal %64 {approx = true} : vector<2x8x1xf32> -> vector<2x8x1xf32>
    %66 = vector.broadcast %65 : vector<2x8x1xf32> to vector<2x8x8xf32>
    %67 = arith.mulf %62, %66 : vector<2x8x8xf32>
    %68 = arith.truncf %67 : vector<2x8x8xf32> to vector<2x8x8xbf16>
    "tpu.trace_start"() <{level = 10 : i32, message = "bqk,bkd->bqd"}> : () -> ()
    %cst_23 = arith.constant dense<0.000000e+00> : vector<2x8x16xf32>
    %69 = tpu.matmul %68, %52, %cst_23 {dimension_numbers = #tpu.dot_dimension_numbers<[2], [1], [1], [2], [0, 0, 0, 1, 1, 2], [0], [0]>} : vector<2x8x8xbf16>, vector<2x8x16xbf16>, vector<2x8x16xf32> -> vector<2x8x16xf32>
    "tpu.trace_stop"() : () -> ()
    %70 = vector.extract_strided_slice %19 {offsets = [0, 0, 32], sizes = [2, 8, 16], strides = [1, 1, 1]} : vector<2x8x128xf32> to vector<2x8x16xf32>
    %71 = arith.truncf %70 : vector<2x8x16xf32> to vector<2x8x16xbf16>
    %72 = vector.extract_strided_slice %21 {offsets = [0, 0, 32], sizes = [2, 8, 16], strides = [1, 1, 1]} : vector<2x8x128xf32> to vector<2x8x16xf32>
    %73 = arith.truncf %72 : vector<2x8x16xf32> to vector<2x8x16xbf16>
    %74 = vector.extract_strided_slice %23 {offsets = [0, 0, 32], sizes = [2, 8, 16], strides = [1, 1, 1]} : vector<2x8x128xf32> to vector<2x8x16xf32>
    %75 = arith.truncf %74 : vector<2x8x16xf32> to vector<2x8x16xbf16>
    "tpu.trace_start"() <{level = 10 : i32, message = "bqd,bkd->bqk"}> : () -> ()
    %cst_24 = arith.constant dense<0.000000e+00> : vector<2x8x8xf32>
    %76 = tpu.matmul %71, %73, %cst_24 {dimension_numbers = #tpu.dot_dimension_numbers<[2], [2], [1], [1], [0, 0, 0, 1, 1, 1], [0], [0]>} : vector<2x8x16xbf16>, vector<2x8x16xbf16>, vector<2x8x8xf32> -> vector<2x8x8xf32>
    "tpu.trace_stop"() : () -> ()
    %cst_25 = arith.constant 2.500000e-01 : f32
    %77 = vector.broadcast %cst_25 : f32 to vector<2x8x8xf32>
    %78 = arith.mulf %76, %77 : vector<2x8x8xf32>
    %79 = vector.broadcast %5 : vector<2x1x8xf32> to vector<2x8x8xf32>
    %80 = arith.addf %78, %79 : vector<2x8x8xf32>
    %cst_26 = arith.constant dense<0xFF800000> : vector<2x8xf32>
    %81 = vector.multi_reduction <maximumf>, %80, %cst_26 [2] : vector<2x8x8xf32> to vector<2x8xf32>
    %82 = vector.shape_cast %81 : vector<2x8xf32> to vector<2x8x1xf32>
    %83 = vector.broadcast %82 : vector<2x8x1xf32> to vector<2x8x8xf32>
    %84 = arith.subf %80, %83 : vector<2x8x8xf32>
    %85 = math.exp %84 : vector<2x8x8xf32>
    %cst_27 = arith.constant dense<0.000000e+00> : vector<2x8xf32>
    %86 = vector.multi_reduction <add>, %85, %cst_27 [2] : vector<2x8x8xf32> to vector<2x8xf32>
    %87 = vector.shape_cast %86 : vector<2x8xf32> to vector<2x8x1xf32>
    %88 = tpu.reciprocal %87 {approx = true} : vector<2x8x1xf32> -> vector<2x8x1xf32>
    %89 = vector.broadcast %88 : vector<2x8x1xf32> to vector<2x8x8xf32>
    %90 = arith.mulf %85, %89 : vector<2x8x8xf32>
    %91 = arith.truncf %90 : vector<2x8x8xf32> to vector<2x8x8xbf16>
    "tpu.trace_start"() <{level = 10 : i32, message = "bqk,bkd->bqd"}> : () -> ()
    %cst_28 = arith.constant dense<0.000000e+00> : vector<2x8x16xf32>
    %92 = tpu.matmul %91, %75, %cst_28 {dimension_numbers = #tpu.dot_dimension_numbers<[2], [1], [1], [2], [0, 0, 0, 1, 1, 2], [0], [0]>} : vector<2x8x8xbf16>, vector<2x8x16xbf16>, vector<2x8x16xf32> -> vector<2x8x16xf32>
    "tpu.trace_stop"() : () -> ()
    %93 = vector.extract_strided_slice %19 {offsets = [0, 0, 48], sizes = [2, 8, 16], strides = [1, 1, 1]} : vector<2x8x128xf32> to vector<2x8x16xf32>
    %94 = arith.truncf %93 : vector<2x8x16xf32> to vector<2x8x16xbf16>
    %95 = vector.extract_strided_slice %21 {offsets = [0, 0, 48], sizes = [2, 8, 16], strides = [1, 1, 1]} : vector<2x8x128xf32> to vector<2x8x16xf32>
    %96 = arith.truncf %95 : vector<2x8x16xf32> to vector<2x8x16xbf16>
    %97 = vector.extract_strided_slice %23 {offsets = [0, 0, 48], sizes = [2, 8, 16], strides = [1, 1, 1]} : vector<2x8x128xf32> to vector<2x8x16xf32>
    %98 = arith.truncf %97 : vector<2x8x16xf32> to vector<2x8x16xbf16>
    "tpu.trace_start"() <{level = 10 : i32, message = "bqd,bkd->bqk"}> : () -> ()
    %cst_29 = arith.constant dense<0.000000e+00> : vector<2x8x8xf32>
    %99 = tpu.matmul %94, %96, %cst_29 {dimension_numbers = #tpu.dot_dimension_numbers<[2], [2], [1], [1], [0, 0, 0, 1, 1, 1], [0], [0]>} : vector<2x8x16xbf16>, vector<2x8x16xbf16>, vector<2x8x8xf32> -> vector<2x8x8xf32>
    "tpu.trace_stop"() : () -> ()
    %cst_30 = arith.constant 2.500000e-01 : f32
    %100 = vector.broadcast %cst_30 : f32 to vector<2x8x8xf32>
    %101 = arith.mulf %99, %100 : vector<2x8x8xf32>
    %102 = vector.broadcast %5 : vector<2x1x8xf32> to vector<2x8x8xf32>
    %103 = arith.addf %101, %102 : vector<2x8x8xf32>
    %cst_31 = arith.constant dense<0xFF800000> : vector<2x8xf32>
    %104 = vector.multi_reduction <maximumf>, %103, %cst_31 [2] : vector<2x8x8xf32> to vector<2x8xf32>
    %105 = vector.shape_cast %104 : vector<2x8xf32> to vector<2x8x1xf32>
    %106 = vector.broadcast %105 : vector<2x8x1xf32> to vector<2x8x8xf32>
    %107 = arith.subf %103, %106 : vector<2x8x8xf32>
    %108 = math.exp %107 : vector<2x8x8xf32>
    %cst_32 = arith.constant dense<0.000000e+00> : vector<2x8xf32>
    %109 = vector.multi_reduction <add>, %108, %cst_32 [2] : vector<2x8x8xf32> to vector<2x8xf32>
    %110 = vector.shape_cast %109 : vector<2x8xf32> to vector<2x8x1xf32>
    %111 = tpu.reciprocal %110 {approx = true} : vector<2x8x1xf32> -> vector<2x8x1xf32>
    %112 = vector.broadcast %111 : vector<2x8x1xf32> to vector<2x8x8xf32>
    %113 = arith.mulf %108, %112 : vector<2x8x8xf32>
    %114 = arith.truncf %113 : vector<2x8x8xf32> to vector<2x8x8xbf16>
    "tpu.trace_start"() <{level = 10 : i32, message = "bqk,bkd->bqd"}> : () -> ()
    %cst_33 = arith.constant dense<0.000000e+00> : vector<2x8x16xf32>
    %115 = tpu.matmul %114, %98, %cst_33 {dimension_numbers = #tpu.dot_dimension_numbers<[2], [1], [1], [2], [0, 0, 0, 1, 1, 2], [0], [0]>} : vector<2x8x8xbf16>, vector<2x8x16xbf16>, vector<2x8x16xf32> -> vector<2x8x16xf32>
    "tpu.trace_stop"() : () -> ()
    %116 = vector.extract_strided_slice %19 {offsets = [0, 0, 64], sizes = [2, 8, 16], strides = [1, 1, 1]} : vector<2x8x128xf32> to vector<2x8x16xf32>
    %117 = arith.truncf %116 : vector<2x8x16xf32> to vector<2x8x16xbf16>
    %118 = vector.extract_strided_slice %21 {offsets = [0, 0, 64], sizes = [2, 8, 16], strides = [1, 1, 1]} : vector<2x8x128xf32> to vector<2x8x16xf32>
    %119 = arith.truncf %118 : vector<2x8x16xf32> to vector<2x8x16xbf16>
    %120 = vector.extract_strided_slice %23 {offsets = [0, 0, 64], sizes = [2, 8, 16], strides = [1, 1, 1]} : vector<2x8x128xf32> to vector<2x8x16xf32>
    %121 = arith.truncf %120 : vector<2x8x16xf32> to vector<2x8x16xbf16>
    "tpu.trace_start"() <{level = 10 : i32, message = "bqd,bkd->bqk"}> : () -> ()
    %cst_34 = arith.constant dense<0.000000e+00> : vector<2x8x8xf32>
    %122 = tpu.matmul %117, %119, %cst_34 {dimension_numbers = #tpu.dot_dimension_numbers<[2], [2], [1], [1], [0, 0, 0, 1, 1, 1], [0], [0]>} : vector<2x8x16xbf16>, vector<2x8x16xbf16>, vector<2x8x8xf32> -> vector<2x8x8xf32>
    "tpu.trace_stop"() : () -> ()
    %cst_35 = arith.constant 2.500000e-01 : f32
    %123 = vector.broadcast %cst_35 : f32 to vector<2x8x8xf32>
    %124 = arith.mulf %122, %123 : vector<2x8x8xf32>
    %125 = vector.broadcast %5 : vector<2x1x8xf32> to vector<2x8x8xf32>
    %126 = arith.addf %124, %125 : vector<2x8x8xf32>
    %cst_36 = arith.constant dense<0xFF800000> : vector<2x8xf32>
    %127 = vector.multi_reduction <maximumf>, %126, %cst_36 [2] : vector<2x8x8xf32> to vector<2x8xf32>
    %128 = vector.shape_cast %127 : vector<2x8xf32> to vector<2x8x1xf32>
    %129 = vector.broadcast %128 : vector<2x8x1xf32> to vector<2x8x8xf32>
    %130 = arith.subf %126, %129 : vector<2x8x8xf32>
    %131 = math.exp %130 : vector<2x8x8xf32>
    %cst_37 = arith.constant dense<0.000000e+00> : vector<2x8xf32>
    %132 = vector.multi_reduction <add>, %131, %cst_37 [2] : vector<2x8x8xf32> to vector<2x8xf32>
    %133 = vector.shape_cast %132 : vector<2x8xf32> to vector<2x8x1xf32>
    %134 = tpu.reciprocal %133 {approx = true} : vector<2x8x1xf32> -> vector<2x8x1xf32>
    %135 = vector.broadcast %134 : vector<2x8x1xf32> to vector<2x8x8xf32>
    %136 = arith.mulf %131, %135 : vector<2x8x8xf32>
    %137 = arith.truncf %136 : vector<2x8x8xf32> to vector<2x8x8xbf16>
    "tpu.trace_start"() <{level = 10 : i32, message = "bqk,bkd->bqd"}> : () -> ()
    %cst_38 = arith.constant dense<0.000000e+00> : vector<2x8x16xf32>
    %138 = tpu.matmul %137, %121, %cst_38 {dimension_numbers = #tpu.dot_dimension_numbers<[2], [1], [1], [2], [0, 0, 0, 1, 1, 2], [0], [0]>} : vector<2x8x8xbf16>, vector<2x8x16xbf16>, vector<2x8x16xf32> -> vector<2x8x16xf32>
    "tpu.trace_stop"() : () -> ()
    %139 = vector.extract_strided_slice %19 {offsets = [0, 0, 80], sizes = [2, 8, 16], strides = [1, 1, 1]} : vector<2x8x128xf32> to vector<2x8x16xf32>
    %140 = arith.truncf %139 : vector<2x8x16xf32> to vector<2x8x16xbf16>
    %141 = vector.extract_strided_slice %21 {offsets = [0, 0, 80], sizes = [2, 8, 16], strides = [1, 1, 1]} : vector<2x8x128xf32> to vector<2x8x16xf32>
    %142 = arith.truncf %141 : vector<2x8x16xf32> to vector<2x8x16xbf16>
    %143 = vector.extract_strided_slice %23 {offsets = [0, 0, 80], sizes = [2, 8, 16], strides = [1, 1, 1]} : vector<2x8x128xf32> to vector<2x8x16xf32>
    %144 = arith.truncf %143 : vector<2x8x16xf32> to vector<2x8x16xbf16>
    "tpu.trace_start"() <{level = 10 : i32, message = "bqd,bkd->bqk"}> : () -> ()
    %cst_39 = arith.constant dense<0.000000e+00> : vector<2x8x8xf32>
    %145 = tpu.matmul %140, %142, %cst_39 {dimension_numbers = #tpu.dot_dimension_numbers<[2], [2], [1], [1], [0, 0, 0, 1, 1, 1], [0], [0]>} : vector<2x8x16xbf16>, vector<2x8x16xbf16>, vector<2x8x8xf32> -> vector<2x8x8xf32>
    "tpu.trace_stop"() : () -> ()
    %cst_40 = arith.constant 2.500000e-01 : f32
    %146 = vector.broadcast %cst_40 : f32 to vector<2x8x8xf32>
    %147 = arith.mulf %145, %146 : vector<2x8x8xf32>
    %148 = vector.broadcast %5 : vector<2x1x8xf32> to vector<2x8x8xf32>
    %149 = arith.addf %147, %148 : vector<2x8x8xf32>
    %cst_41 = arith.constant dense<0xFF800000> : vector<2x8xf32>
    %150 = vector.multi_reduction <maximumf>, %149, %cst_41 [2] : vector<2x8x8xf32> to vector<2x8xf32>
    %151 = vector.shape_cast %150 : vector<2x8xf32> to vector<2x8x1xf32>
    %152 = vector.broadcast %151 : vector<2x8x1xf32> to vector<2x8x8xf32>
    %153 = arith.subf %149, %152 : vector<2x8x8xf32>
    %154 = math.exp %153 : vector<2x8x8xf32>
    %cst_42 = arith.constant dense<0.000000e+00> : vector<2x8xf32>
    %155 = vector.multi_reduction <add>, %154, %cst_42 [2] : vector<2x8x8xf32> to vector<2x8xf32>
    %156 = vector.shape_cast %155 : vector<2x8xf32> to vector<2x8x1xf32>
    %157 = tpu.reciprocal %156 {approx = true} : vector<2x8x1xf32> -> vector<2x8x1xf32>
    %158 = vector.broadcast %157 : vector<2x8x1xf32> to vector<2x8x8xf32>
    %159 = arith.mulf %154, %158 : vector<2x8x8xf32>
    %160 = arith.truncf %159 : vector<2x8x8xf32> to vector<2x8x8xbf16>
    "tpu.trace_start"() <{level = 10 : i32, message = "bqk,bkd->bqd"}> : () -> ()
    %cst_43 = arith.constant dense<0.000000e+00> : vector<2x8x16xf32>
    %161 = tpu.matmul %160, %144, %cst_43 {dimension_numbers = #tpu.dot_dimension_numbers<[2], [1], [1], [2], [0, 0, 0, 1, 1, 2], [0], [0]>} : vector<2x8x8xbf16>, vector<2x8x16xbf16>, vector<2x8x16xf32> -> vector<2x8x16xf32>
    "tpu.trace_stop"() : () -> ()
    %162 = vector.extract_strided_slice %19 {offsets = [0, 0, 96], sizes = [2, 8, 16], strides = [1, 1, 1]} : vector<2x8x128xf32> to vector<2x8x16xf32>
    %163 = arith.truncf %162 : vector<2x8x16xf32> to vector<2x8x16xbf16>
    %164 = vector.extract_strided_slice %21 {offsets = [0, 0, 96], sizes = [2, 8, 16], strides = [1, 1, 1]} : vector<2x8x128xf32> to vector<2x8x16xf32>
    %165 = arith.truncf %164 : vector<2x8x16xf32> to vector<2x8x16xbf16>
    %166 = vector.extract_strided_slice %23 {offsets = [0, 0, 96], sizes = [2, 8, 16], strides = [1, 1, 1]} : vector<2x8x128xf32> to vector<2x8x16xf32>
    %167 = arith.truncf %166 : vector<2x8x16xf32> to vector<2x8x16xbf16>
    "tpu.trace_start"() <{level = 10 : i32, message = "bqd,bkd->bqk"}> : () -> ()
    %cst_44 = arith.constant dense<0.000000e+00> : vector<2x8x8xf32>
    %168 = tpu.matmul %163, %165, %cst_44 {dimension_numbers = #tpu.dot_dimension_numbers<[2], [2], [1], [1], [0, 0, 0, 1, 1, 1], [0], [0]>} : vector<2x8x16xbf16>, vector<2x8x16xbf16>, vector<2x8x8xf32> -> vector<2x8x8xf32>
    "tpu.trace_stop"() : () -> ()
    %cst_45 = arith.constant 2.500000e-01 : f32
    %169 = vector.broadcast %cst_45 : f32 to vector<2x8x8xf32>
    %170 = arith.mulf %168, %169 : vector<2x8x8xf32>
    %171 = vector.broadcast %5 : vector<2x1x8xf32> to vector<2x8x8xf32>
    %172 = arith.addf %170, %171 : vector<2x8x8xf32>
    %cst_46 = arith.constant dense<0xFF800000> : vector<2x8xf32>
    %173 = vector.multi_reduction <maximumf>, %172, %cst_46 [2] : vector<2x8x8xf32> to vector<2x8xf32>
    %174 = vector.shape_cast %173 : vector<2x8xf32> to vector<2x8x1xf32>
    %175 = vector.broadcast %174 : vector<2x8x1xf32> to vector<2x8x8xf32>
    %176 = arith.subf %172, %175 : vector<2x8x8xf32>
    %177 = math.exp %176 : vector<2x8x8xf32>
    %cst_47 = arith.constant dense<0.000000e+00> : vector<2x8xf32>
    %178 = vector.multi_reduction <add>, %177, %cst_47 [2] : vector<2x8x8xf32> to vector<2x8xf32>
    %179 = vector.shape_cast %178 : vector<2x8xf32> to vector<2x8x1xf32>
    %180 = tpu.reciprocal %179 {approx = true} : vector<2x8x1xf32> -> vector<2x8x1xf32>
    %181 = vector.broadcast %180 : vector<2x8x1xf32> to vector<2x8x8xf32>
    %182 = arith.mulf %177, %181 : vector<2x8x8xf32>
    %183 = arith.truncf %182 : vector<2x8x8xf32> to vector<2x8x8xbf16>
    "tpu.trace_start"() <{level = 10 : i32, message = "bqk,bkd->bqd"}> : () -> ()
    %cst_48 = arith.constant dense<0.000000e+00> : vector<2x8x16xf32>
    %184 = tpu.matmul %183, %167, %cst_48 {dimension_numbers = #tpu.dot_dimension_numbers<[2], [1], [1], [2], [0, 0, 0, 1, 1, 2], [0], [0]>} : vector<2x8x8xbf16>, vector<2x8x16xbf16>, vector<2x8x16xf32> -> vector<2x8x16xf32>
    "tpu.trace_stop"() : () -> ()
    %185 = vector.extract_strided_slice %19 {offsets = [0, 0, 112], sizes = [2, 8, 16], strides = [1, 1, 1]} : vector<2x8x128xf32> to vector<2x8x16xf32>
    %186 = arith.truncf %185 : vector<2x8x16xf32> to vector<2x8x16xbf16>
    %187 = vector.extract_strided_slice %21 {offsets = [0, 0, 112], sizes = [2, 8, 16], strides = [1, 1, 1]} : vector<2x8x128xf32> to vector<2x8x16xf32>
    %188 = arith.truncf %187 : vector<2x8x16xf32> to vector<2x8x16xbf16>
    %189 = vector.extract_strided_slice %23 {offsets = [0, 0, 112], sizes = [2, 8, 16], strides = [1, 1, 1]} : vector<2x8x128xf32> to vector<2x8x16xf32>
    %190 = arith.truncf %189 : vector<2x8x16xf32> to vector<2x8x16xbf16>
    "tpu.trace_start"() <{level = 10 : i32, message = "bqd,bkd->bqk"}> : () -> ()
    %cst_49 = arith.constant dense<0.000000e+00> : vector<2x8x8xf32>
    %191 = tpu.matmul %186, %188, %cst_49 {dimension_numbers = #tpu.dot_dimension_numbers<[2], [2], [1], [1], [0, 0, 0, 1, 1, 1], [0], [0]>} : vector<2x8x16xbf16>, vector<2x8x16xbf16>, vector<2x8x8xf32> -> vector<2x8x8xf32>
    "tpu.trace_stop"() : () -> ()
    %cst_50 = arith.constant 2.500000e-01 : f32
    %192 = vector.broadcast %cst_50 : f32 to vector<2x8x8xf32>
    %193 = arith.mulf %191, %192 : vector<2x8x8xf32>
    %194 = vector.broadcast %5 : vector<2x1x8xf32> to vector<2x8x8xf32>
    %195 = arith.addf %193, %194 : vector<2x8x8xf32>
    %cst_51 = arith.constant dense<0xFF800000> : vector<2x8xf32>
    %196 = vector.multi_reduction <maximumf>, %195, %cst_51 [2] : vector<2x8x8xf32> to vector<2x8xf32>
    %197 = vector.shape_cast %196 : vector<2x8xf32> to vector<2x8x1xf32>
    %198 = vector.broadcast %197 : vector<2x8x1xf32> to vector<2x8x8xf32>
    %199 = arith.subf %195, %198 : vector<2x8x8xf32>
    %200 = math.exp %199 : vector<2x8x8xf32>
    %cst_52 = arith.constant dense<0.000000e+00> : vector<2x8xf32>
    %201 = vector.multi_reduction <add>, %200, %cst_52 [2] : vector<2x8x8xf32> to vector<2x8xf32>
    %202 = vector.shape_cast %201 : vector<2x8xf32> to vector<2x8x1xf32>
    %203 = tpu.reciprocal %202 {approx = true} : vector<2x8x1xf32> -> vector<2x8x1xf32>
    %204 = vector.broadcast %203 : vector<2x8x1xf32> to vector<2x8x8xf32>
    %205 = arith.mulf %200, %204 : vector<2x8x8xf32>
    %206 = arith.truncf %205 : vector<2x8x8xf32> to vector<2x8x8xbf16>
    "tpu.trace_start"() <{level = 10 : i32, message = "bqk,bkd->bqd"}> : () -> ()
    %cst_53 = arith.constant dense<0.000000e+00> : vector<2x8x16xf32>
    %207 = tpu.matmul %206, %190, %cst_53 {dimension_numbers = #tpu.dot_dimension_numbers<[2], [1], [1], [2], [0, 0, 0, 1, 1, 2], [0], [0]>} : vector<2x8x8xbf16>, vector<2x8x16xbf16>, vector<2x8x16xf32> -> vector<2x8x16xf32>
    "tpu.trace_stop"() : () -> ()
    %208 = tpu.concatenate %46, %69, %92, %115, %138, %161, %184, %207 in 2 : vector<2x8x16xf32>, vector<2x8x16xf32>, vector<2x8x16xf32>, vector<2x8x16xf32>, vector<2x8x16xf32>, vector<2x8x16xf32>, vector<2x8x16xf32>, vector<2x8x16xf32> -> vector<2x8x128xf32>
    %209 = vector.shape_cast %208 : vector<2x8x128xf32> to vector<16x128xf32>
    %c0_54 = arith.constant 0 : index
    %c0_55 = arith.constant 0 : index
    %c0_56 = arith.constant 0 : index
    %210 = vector.load %arg8[%c0_54, %c0_55, %c0_56] : memref<1x128x128xbf16, #tpu.memory_space<vmem>>, vector<1x128x128xbf16>
    %211 = vector.shape_cast %210 : vector<1x128x128xbf16> to vector<128x128xbf16>
    %212 = arith.truncf %209 : vector<16x128xf32> to vector<16x128xbf16>
    %cst_57 = arith.constant dense<0.000000e+00> : vector<16x128xf32>
    %213 = tpu.matmul %212, %211, %cst_57 {dimension_numbers = #tpu.dot_dimension_numbers<[1], [0], [0], [1], [0, 0, 1, 1], [], []>} : vector<16x128xbf16>, vector<128x128xbf16>, vector<16x128xf32> -> vector<16x128xf32>
    %c0_58 = arith.constant 0 : index
    %c0_59 = arith.constant 0 : index
    %c0_60 = arith.constant 0 : index
    %214 = vector.load %arg9[%c0_58, %c0_59, %c0_60] : memref<1x1x128xf32, #tpu.memory_space<vmem>>, vector<1x1x128xf32>
    %215 = vector.shape_cast %214 : vector<1x1x128xf32> to vector<1x128xf32>
    %216 = vector.broadcast %215 : vector<1x128xf32> to vector<16x128xf32>
    %217 = arith.addf %213, %216 : vector<16x128xf32>
    %218 = arith.addf %217, %9 : vector<16x128xf32>
    %c0_61 = arith.constant 0 : index
    %c0_62 = arith.constant 0 : index
    %c0_63 = arith.constant 0 : index
    %219 = vector.load %arg10[%c0_61, %c0_62, %c0_63] : memref<1x1x128xf32, #tpu.memory_space<vmem>>, vector<1x1x128xf32>
    %220 = vector.shape_cast %219 : vector<1x1x128xf32> to vector<1x128xf32>
    %c0_64 = arith.constant 0 : index
    %c0_65 = arith.constant 0 : index
    %c0_66 = arith.constant 0 : index
    %221 = vector.load %arg11[%c0_64, %c0_65, %c0_66] : memref<1x1x128xf32, #tpu.memory_space<vmem>>, vector<1x1x128xf32>
    %222 = vector.shape_cast %221 : vector<1x1x128xf32> to vector<1x128xf32>
    %cst_67 = arith.constant dense<0.000000e+00> : vector<16xf32>
    %223 = vector.multi_reduction <add>, %218, %cst_67 [1] : vector<16x128xf32> to vector<16xf32>
    %224 = vector.shape_cast %223 : vector<16xf32> to vector<16x1xf32>
    %cst_68 = arith.constant 1.280000e+02 : f32
    %225 = vector.broadcast %cst_68 : f32 to vector<16x1xf32>
    %226 = arith.divf %224, %225 : vector<16x1xf32>
    %227 = arith.mulf %218, %218 : vector<16x128xf32>
    %cst_69 = arith.constant dense<0.000000e+00> : vector<16xf32>
    %228 = vector.multi_reduction <add>, %227, %cst_69 [1] : vector<16x128xf32> to vector<16xf32>
    %229 = vector.shape_cast %228 : vector<16xf32> to vector<16x1xf32>
    %cst_70 = arith.constant 1.280000e+02 : f32
    %230 = vector.broadcast %cst_70 : f32 to vector<16x1xf32>
    %231 = arith.divf %229, %230 : vector<16x1xf32>
    %232 = arith.mulf %226, %226 : vector<16x1xf32>
    %233 = arith.subf %231, %232 : vector<16x1xf32>
    %234 = vector.broadcast %226 : vector<16x1xf32> to vector<16x128xf32>
    %235 = arith.subf %218, %234 : vector<16x128xf32>
    %cst_71 = arith.constant 9.99999996E-13 : f32
    %236 = vector.broadcast %cst_71 : f32 to vector<16x1xf32>
    %237 = arith.addf %233, %236 : vector<16x1xf32>
    %238 = math.rsqrt %237 : vector<16x1xf32>
    %239 = vector.broadcast %238 : vector<16x1xf32> to vector<16x128xf32>
    %240 = arith.mulf %235, %239 : vector<16x128xf32>
    %241 = vector.broadcast %220 : vector<1x128xf32> to vector<16x128xf32>
    %242 = arith.mulf %240, %241 : vector<16x128xf32>
    %243 = vector.broadcast %222 : vector<1x128xf32> to vector<16x128xf32>
    %244 = arith.addf %242, %243 : vector<16x128xf32>
    %c0_72 = arith.constant 0 : index
    %c0_73 = arith.constant 0 : index
    %c0_74 = arith.constant 0 : index
    %245 = vector.load %arg12[%c0_72, %c0_73, %c0_74] : memref<1x128x256xbf16, #tpu.memory_space<vmem>>, vector<1x128x256xbf16>
    %246 = vector.shape_cast %245 : vector<1x128x256xbf16> to vector<128x256xbf16>
    %247 = arith.truncf %244 : vector<16x128xf32> to vector<16x128xbf16>
    %cst_75 = arith.constant dense<0.000000e+00> : vector<16x256xf32>
    %248 = tpu.matmul %247, %246, %cst_75 {dimension_numbers = #tpu.dot_dimension_numbers<[1], [0], [0], [1], [0, 0, 1, 1], [], []>} : vector<16x128xbf16>, vector<128x256xbf16>, vector<16x256xf32> -> vector<16x256xf32>
    %c0_76 = arith.constant 0 : index
    %c0_77 = arith.constant 0 : index
    %c0_78 = arith.constant 0 : index
    %249 = vector.load %arg13[%c0_76, %c0_77, %c0_78] : memref<1x1x256xf32, #tpu.memory_space<vmem>>, vector<1x1x256xf32>
    %250 = vector.shape_cast %249 : vector<1x1x256xf32> to vector<1x256xf32>
    %251 = vector.broadcast %250 : vector<1x256xf32> to vector<16x256xf32>
    %252 = arith.addf %248, %251 : vector<16x256xf32>
    %253 = arith.mulf %252, %252 : vector<16x256xf32>
    %254 = arith.mulf %252, %253 : vector<16x256xf32>
    %cst_79 = arith.constant 4.471500e-02 : f32
    %255 = vector.broadcast %cst_79 : f32 to vector<16x256xf32>
    %256 = arith.mulf %255, %254 : vector<16x256xf32>
    %257 = arith.addf %252, %256 : vector<16x256xf32>
    %cst_80 = arith.constant 0.797884583 : f32
    %258 = vector.broadcast %cst_80 : f32 to vector<16x256xf32>
    %259 = arith.mulf %258, %257 : vector<16x256xf32>
    %260 = math.tanh %259 : vector<16x256xf32>
    %cst_81 = arith.constant 1.000000e+00 : f32
    %261 = vector.broadcast %cst_81 : f32 to vector<16x256xf32>
    %262 = arith.addf %261, %260 : vector<16x256xf32>
    %cst_82 = arith.constant 5.000000e-01 : f32
    %263 = vector.broadcast %cst_82 : f32 to vector<16x256xf32>
    %264 = arith.mulf %263, %262 : vector<16x256xf32>
    %265 = arith.mulf %252, %264 : vector<16x256xf32>
    %c0_83 = arith.constant 0 : index
    %c0_84 = arith.constant 0 : index
    %c0_85 = arith.constant 0 : index
    %266 = vector.load %arg14[%c0_83, %c0_84, %c0_85] : memref<1x256x128xbf16, #tpu.memory_space<vmem>>, vector<1x256x128xbf16>
    %267 = vector.shape_cast %266 : vector<1x256x128xbf16> to vector<256x128xbf16>
    %268 = arith.truncf %265 : vector<16x256xf32> to vector<16x256xbf16>
    %cst_86 = arith.constant dense<0.000000e+00> : vector<16x128xf32>
    %269 = tpu.matmul %268, %267, %cst_86 {dimension_numbers = #tpu.dot_dimension_numbers<[1], [0], [0], [1], [0, 0, 1, 1], [], []>} : vector<16x256xbf16>, vector<256x128xbf16>, vector<16x128xf32> -> vector<16x128xf32>
    %c0_87 = arith.constant 0 : index
    %c0_88 = arith.constant 0 : index
    %c0_89 = arith.constant 0 : index
    %270 = vector.load %arg15[%c0_87, %c0_88, %c0_89] : memref<1x1x128xf32, #tpu.memory_space<vmem>>, vector<1x1x128xf32>
    %271 = vector.shape_cast %270 : vector<1x1x128xf32> to vector<1x128xf32>
    %272 = vector.broadcast %271 : vector<1x128xf32> to vector<16x128xf32>
    %273 = arith.addf %269, %272 : vector<16x128xf32>
    %274 = arith.addf %273, %244 : vector<16x128xf32>
    %c0_90 = arith.constant 0 : index
    %c0_91 = arith.constant 0 : index
    %c0_92 = arith.constant 0 : index
    %275 = vector.load %arg16[%c0_90, %c0_91, %c0_92] : memref<1x1x128xf32, #tpu.memory_space<vmem>>, vector<1x1x128xf32>
    %276 = vector.shape_cast %275 : vector<1x1x128xf32> to vector<1x128xf32>
    %c0_93 = arith.constant 0 : index
    %c0_94 = arith.constant 0 : index
    %c0_95 = arith.constant 0 : index
    %277 = vector.load %arg17[%c0_93, %c0_94, %c0_95] : memref<1x1x128xf32, #tpu.memory_space<vmem>>, vector<1x1x128xf32>
    %278 = vector.shape_cast %277 : vector<1x1x128xf32> to vector<1x128xf32>
    %cst_96 = arith.constant dense<0.000000e+00> : vector<16xf32>
    %279 = vector.multi_reduction <add>, %274, %cst_96 [1] : vector<16x128xf32> to vector<16xf32>
    %280 = vector.shape_cast %279 : vector<16xf32> to vector<16x1xf32>
    %cst_97 = arith.constant 1.280000e+02 : f32
    %281 = vector.broadcast %cst_97 : f32 to vector<16x1xf32>
    %282 = arith.divf %280, %281 : vector<16x1xf32>
    %283 = arith.mulf %274, %274 : vector<16x128xf32>
    %cst_98 = arith.constant dense<0.000000e+00> : vector<16xf32>
    %284 = vector.multi_reduction <add>, %283, %cst_98 [1] : vector<16x128xf32> to vector<16xf32>
    %285 = vector.shape_cast %284 : vector<16xf32> to vector<16x1xf32>
    %cst_99 = arith.constant 1.280000e+02 : f32
    %286 = vector.broadcast %cst_99 : f32 to vector<16x1xf32>
    %287 = arith.divf %285, %286 : vector<16x1xf32>
    %288 = arith.mulf %282, %282 : vector<16x1xf32>
    %289 = arith.subf %287, %288 : vector<16x1xf32>
    %290 = vector.broadcast %282 : vector<16x1xf32> to vector<16x128xf32>
    %291 = arith.subf %274, %290 : vector<16x128xf32>
    %cst_100 = arith.constant 9.99999996E-13 : f32
    %292 = vector.broadcast %cst_100 : f32 to vector<16x1xf32>
    %293 = arith.addf %289, %292 : vector<16x1xf32>
    %294 = math.rsqrt %293 : vector<16x1xf32>
    %295 = vector.broadcast %294 : vector<16x1xf32> to vector<16x128xf32>
    %296 = arith.mulf %291, %295 : vector<16x128xf32>
    %297 = vector.broadcast %276 : vector<1x128xf32> to vector<16x128xf32>
    %298 = arith.mulf %296, %297 : vector<16x128xf32>
    %299 = vector.broadcast %278 : vector<1x128xf32> to vector<16x128xf32>
    %300 = arith.addf %298, %299 : vector<16x128xf32>
    %c0_101 = arith.constant 0 : index
    %c0_102 = arith.constant 0 : index
    %301 = vector.load %arg26[%c0_101, %c0_102] : memref<16x128xf32, #tpu.memory_space<vmem>>, vector<16x128xf32>
    tpu.vector_store %arg26[%c0_101, %c0_102], %300 {strides = array<i32>} : memref<16x128xf32, #tpu.memory_space<vmem>>, vector<16x128xf32>,
    %c1_i32 = arith.constant 1 : i32
    %302 = arith.cmpi eq, %arg1, %c1_i32 : i32
    %303 = arith.extui %302 : i1 to i32
    %c0_i32_103 = arith.constant 0 : i32
    %304 = arith.cmpi ne, %303, %c0_i32_103 : i32
    scf.if %304 {
      %c0_104 = arith.constant 0 : index
      %c0_105 = arith.constant 0 : index
      %305 = vector.load %arg18[%c0_104, %c0_105] : memref<128x128xbf16, #tpu.memory_space<vmem>>, vector<128x128xbf16>
      %306 = arith.truncf %300 : vector<16x128xf32> to vector<16x128xbf16>
      %cst_106 = arith.constant dense<0.000000e+00> : vector<16x128xf32>
      %307 = tpu.matmul %306, %305, %cst_106 {dimension_numbers = #tpu.dot_dimension_numbers<[1], [0], [0], [1], [0, 0, 1, 1], [], []>} : vector<16x128xbf16>, vector<128x128xbf16>, vector<16x128xf32> -> vector<16x128xf32>
      %c0_107 = arith.constant 0 : index
      %c0_108 = arith.constant 0 : index
      %308 = vector.load %arg19[%c0_107, %c0_108] : memref<1x128xf32, #tpu.memory_space<vmem>>, vector<1x128xf32>
      %309 = vector.broadcast %308 : vector<1x128xf32> to vector<16x128xf32>
      %310 = arith.addf %307, %309 : vector<16x128xf32>
      %311 = arith.mulf %310, %310 : vector<16x128xf32>
      %312 = arith.mulf %310, %311 : vector<16x128xf32>
      %cst_109 = arith.constant 4.471500e-02 : f32
      %313 = vector.broadcast %cst_109 : f32 to vector<16x128xf32>
      %314 = arith.mulf %313, %312 : vector<16x128xf32>
      %315 = arith.addf %310, %314 : vector<16x128xf32>
      %cst_110 = arith.constant 0.797884583 : f32
      %316 = vector.broadcast %cst_110 : f32 to vector<16x128xf32>
      %317 = arith.mulf %316, %315 : vector<16x128xf32>
      %318 = math.tanh %317 : vector<16x128xf32>
      %cst_111 = arith.constant 1.000000e+00 : f32
      %319 = vector.broadcast %cst_111 : f32 to vector<16x128xf32>
      %320 = arith.addf %319, %318 : vector<16x128xf32>
      %cst_112 = arith.constant 5.000000e-01 : f32
      %321 = vector.broadcast %cst_112 : f32 to vector<16x128xf32>
      %322 = arith.mulf %321, %320 : vector<16x128xf32>
      %323 = arith.mulf %310, %322 : vector<16x128xf32>
      %c0_113 = arith.constant 0 : index
      %c0_114 = arith.constant 0 : index
      %324 = vector.load %arg21[%c0_113, %c0_114] : memref<128x256xbf16, #tpu.memory_space<vmem>>, vector<128x256xbf16>
      %325 = arith.truncf %323 : vector<16x128xf32> to vector<16x128xbf16>
      %cst_115 = arith.constant dense<0.000000e+00> : vector<16x256xf32>
      %326 = tpu.matmul %325, %324, %cst_115 {dimension_numbers = #tpu.dot_dimension_numbers<[1], [0], [0], [1], [0, 0, 1, 1], [], []>} : vector<16x128xbf16>, vector<128x256xbf16>, vector<16x256xf32> -> vector<16x256xf32>
      %c0_116 = arith.constant 0 : index
      %c0_117 = arith.constant 0 : index
      %327 = vector.load %arg22[%c0_116, %c0_117] : memref<1x256xf32, #tpu.memory_space<vmem>>, vector<1x256xf32>
      %328 = vector.broadcast %327 : vector<1x256xf32> to vector<16x256xf32>
      %329 = arith.addf %326, %328 : vector<16x256xf32>
      %330 = vector.extract_strided_slice %329 {offsets = [0, 0], sizes = [16, 128], strides = [1, 1]} : vector<16x256xf32> to vector<16x128xf32>
      %331 = vector.shape_cast %330 : vector<16x128xf32> to vector<2x8x128xf32>
      %332 = vector.extract_strided_slice %329 {offsets = [0, 128], sizes = [16, 128], strides = [1, 1]} : vector<16x256xf32> to vector<16x128xf32>
      %333 = vector.shape_cast %332 : vector<16x128xf32> to vector<2x8x128xf32>
      %c0_118 = arith.constant 0 : index
      %c0_119 = arith.constant 0 : index
      %334 = vector.load %arg20[%c0_118, %c0_119] : memref<1x128xf32, #tpu.memory_space<vmem>>, vector<1x128xf32>
      %335 = vector.shape_cast %334 : vector<1x128xf32> to vector<1x1x128xf32>
      %336 = vector.shape_cast %335 : vector<1x1x128xf32> to vector<1x1x128xf32>
      %337 = vector.broadcast %336 : vector<1x1x128xf32> to vector<2x1x128xf32>
      %338 = vector.extract_strided_slice %337 {offsets = [0, 0, 0], sizes = [2, 1, 16], strides = [1, 1, 1]} : vector<2x1x128xf32> to vector<2x1x16xf32>
      %339 = arith.truncf %338 : vector<2x1x16xf32> to vector<2x1x16xbf16>
      %340 = vector.extract_strided_slice %331 {offsets = [0, 0, 0], sizes = [2, 8, 16], strides = [1, 1, 1]} : vector<2x8x128xf32> to vector<2x8x16xf32>
      %341 = arith.truncf %340 : vector<2x8x16xf32> to vector<2x8x16xbf16>
      %342 = vector.extract_strided_slice %333 {offsets = [0, 0, 0], sizes = [2, 8, 16], strides = [1, 1, 1]} : vector<2x8x128xf32> to vector<2x8x16xf32>
      %343 = arith.truncf %342 : vector<2x8x16xf32> to vector<2x8x16xbf16>
      "tpu.trace_start"() <{level = 10 : i32, message = "bqd,bkd->bqk"}> : () -> ()
      %cst_120 = arith.constant dense<0.000000e+00> : vector<2x1x8xf32>
      %344 = tpu.matmul %339, %341, %cst_120 {dimension_numbers = #tpu.dot_dimension_numbers<[2], [2], [1], [1], [0, 0, 0, 1, 1, 1], [0], [0]>} : vector<2x1x16xbf16>, vector<2x8x16xbf16>, vector<2x1x8xf32> -> vector<2x1x8xf32>
      "tpu.trace_stop"() : () -> ()
      %cst_121 = arith.constant 2.500000e-01 : f32
      %345 = vector.broadcast %cst_121 : f32 to vector<2x1x8xf32>
      %346 = arith.mulf %344, %345 : vector<2x1x8xf32>
      %347 = arith.addf %346, %5 : vector<2x1x8xf32>
      %cst_122 = arith.constant dense<0xFF800000> : vector<2x1xf32>
      %348 = vector.multi_reduction <maximumf>, %347, %cst_122 [2] : vector<2x1x8xf32> to vector<2x1xf32>
      %349 = vector.shape_cast %348 : vector<2x1xf32> to vector<2x1x1xf32>
      %350 = vector.broadcast %349 : vector<2x1x1xf32> to vector<2x1x8xf32>
      %351 = arith.subf %347, %350 : vector<2x1x8xf32>
      %352 = math.exp %351 : vector<2x1x8xf32>
      %cst_123 = arith.constant dense<0.000000e+00> : vector<2x1xf32>
      %353 = vector.multi_reduction <add>, %352, %cst_123 [2] : vector<2x1x8xf32> to vector<2x1xf32>
      %354 = vector.shape_cast %353 : vector<2x1xf32> to vector<2x1x1xf32>
      %355 = tpu.reciprocal %354 {approx = true} : vector<2x1x1xf32> -> vector<2x1x1xf32>
      %356 = vector.broadcast %355 : vector<2x1x1xf32> to vector<2x1x8xf32>
      %357 = arith.mulf %352, %356 : vector<2x1x8xf32>
      %358 = arith.truncf %357 : vector<2x1x8xf32> to vector<2x1x8xbf16>
      "tpu.trace_start"() <{level = 10 : i32, message = "bqk,bkd->bqd"}> : () -> ()
      %cst_124 = arith.constant dense<0.000000e+00> : vector<2x1x16xf32>
      %359 = tpu.matmul %358, %343, %cst_124 {dimension_numbers = #tpu.dot_dimension_numbers<[2], [1], [1], [2], [0, 0, 0, 1, 1, 2], [0], [0]>} : vector<2x1x8xbf16>, vector<2x8x16xbf16>, vector<2x1x16xf32> -> vector<2x1x16xf32>
      "tpu.trace_stop"() : () -> ()
      %360 = vector.extract_strided_slice %337 {offsets = [0, 0, 16], sizes = [2, 1, 16], strides = [1, 1, 1]} : vector<2x1x128xf32> to vector<2x1x16xf32>
      %361 = arith.truncf %360 : vector<2x1x16xf32> to vector<2x1x16xbf16>
      %362 = vector.extract_strided_slice %331 {offsets = [0, 0, 16], sizes = [2, 8, 16], strides = [1, 1, 1]} : vector<2x8x128xf32> to vector<2x8x16xf32>
      %363 = arith.truncf %362 : vector<2x8x16xf32> to vector<2x8x16xbf16>
      %364 = vector.extract_strided_slice %333 {offsets = [0, 0, 16], sizes = [2, 8, 16], strides = [1, 1, 1]} : vector<2x8x128xf32> to vector<2x8x16xf32>
      %365 = arith.truncf %364 : vector<2x8x16xf32> to vector<2x8x16xbf16>
      "tpu.trace_start"() <{level = 10 : i32, message = "bqd,bkd->bqk"}> : () -> ()
      %cst_125 = arith.constant dense<0.000000e+00> : vector<2x1x8xf32>
      %366 = tpu.matmul %361, %363, %cst_125 {dimension_numbers = #tpu.dot_dimension_numbers<[2], [2], [1], [1], [0, 0, 0, 1, 1, 1], [0], [0]>} : vector<2x1x16xbf16>, vector<2x8x16xbf16>, vector<2x1x8xf32> -> vector<2x1x8xf32>
      "tpu.trace_stop"() : () -> ()
      %cst_126 = arith.constant 2.500000e-01 : f32
      %367 = vector.broadcast %cst_126 : f32 to vector<2x1x8xf32>
      %368 = arith.mulf %366, %367 : vector<2x1x8xf32>
      %369 = arith.addf %368, %5 : vector<2x1x8xf32>
      %cst_127 = arith.constant dense<0xFF800000> : vector<2x1xf32>
      %370 = vector.multi_reduction <maximumf>, %369, %cst_127 [2] : vector<2x1x8xf32> to vector<2x1xf32>
      %371 = vector.shape_cast %370 : vector<2x1xf32> to vector<2x1x1xf32>
      %372 = vector.broadcast %371 : vector<2x1x1xf32> to vector<2x1x8xf32>
      %373 = arith.subf %369, %372 : vector<2x1x8xf32>
      %374 = math.exp %373 : vector<2x1x8xf32>
      %cst_128 = arith.constant dense<0.000000e+00> : vector<2x1xf32>
      %375 = vector.multi_reduction <add>, %374, %cst_128 [2] : vector<2x1x8xf32> to vector<2x1xf32>
      %376 = vector.shape_cast %375 : vector<2x1xf32> to vector<2x1x1xf32>
      %377 = tpu.reciprocal %376 {approx = true} : vector<2x1x1xf32> -> vector<2x1x1xf32>
      %378 = vector.broadcast %377 : vector<2x1x1xf32> to vector<2x1x8xf32>
      %379 = arith.mulf %374, %378 : vector<2x1x8xf32>
      %380 = arith.truncf %379 : vector<2x1x8xf32> to vector<2x1x8xbf16>
      "tpu.trace_start"() <{level = 10 : i32, message = "bqk,bkd->bqd"}> : () -> ()
      %cst_129 = arith.constant dense<0.000000e+00> : vector<2x1x16xf32>
      %381 = tpu.matmul %380, %365, %cst_129 {dimension_numbers = #tpu.dot_dimension_numbers<[2], [1], [1], [2], [0, 0, 0, 1, 1, 2], [0], [0]>} : vector<2x1x8xbf16>, vector<2x8x16xbf16>, vector<2x1x16xf32> -> vector<2x1x16xf32>
      "tpu.trace_stop"() : () -> ()
      %382 = vector.extract_strided_slice %337 {offsets = [0, 0, 32], sizes = [2, 1, 16], strides = [1, 1, 1]} : vector<2x1x128xf32> to vector<2x1x16xf32>
      %383 = arith.truncf %382 : vector<2x1x16xf32> to vector<2x1x16xbf16>
      %384 = vector.extract_strided_slice %331 {offsets = [0, 0, 32], sizes = [2, 8, 16], strides = [1, 1, 1]} : vector<2x8x128xf32> to vector<2x8x16xf32>
      %385 = arith.truncf %384 : vector<2x8x16xf32> to vector<2x8x16xbf16>
      %386 = vector.extract_strided_slice %333 {offsets = [0, 0, 32], sizes = [2, 8, 16], strides = [1, 1, 1]} : vector<2x8x128xf32> to vector<2x8x16xf32>
      %387 = arith.truncf %386 : vector<2x8x16xf32> to vector<2x8x16xbf16>
      "tpu.trace_start"() <{level = 10 : i32, message = "bqd,bkd->bqk"}> : () -> ()
      %cst_130 = arith.constant dense<0.000000e+00> : vector<2x1x8xf32>
      %388 = tpu.matmul %383, %385, %cst_130 {dimension_numbers = #tpu.dot_dimension_numbers<[2], [2], [1], [1], [0, 0, 0, 1, 1, 1], [0], [0]>} : vector<2x1x16xbf16>, vector<2x8x16xbf16>, vector<2x1x8xf32> -> vector<2x1x8xf32>
      "tpu.trace_stop"() : () -> ()
      %cst_131 = arith.constant 2.500000e-01 : f32
      %389 = vector.broadcast %cst_131 : f32 to vector<2x1x8xf32>
      %390 = arith.mulf %388, %389 : vector<2x1x8xf32>
      %391 = arith.addf %390, %5 : vector<2x1x8xf32>
      %cst_132 = arith.constant dense<0xFF800000> : vector<2x1xf32>
      %392 = vector.multi_reduction <maximumf>, %391, %cst_132 [2] : vector<2x1x8xf32> to vector<2x1xf32>
      %393 = vector.shape_cast %392 : vector<2x1xf32> to vector<2x1x1xf32>
      %394 = vector.broadcast %393 : vector<2x1x1xf32> to vector<2x1x8xf32>
      %395 = arith.subf %391, %394 : vector<2x1x8xf32>
      %396 = math.exp %395 : vector<2x1x8xf32>
      %cst_133 = arith.constant dense<0.000000e+00> : vector<2x1xf32>
      %397 = vector.multi_reduction <add>, %396, %cst_133 [2] : vector<2x1x8xf32> to vector<2x1xf32>
      %398 = vector.shape_cast %397 : vector<2x1xf32> to vector<2x1x1xf32>
      %399 = tpu.reciprocal %398 {approx = true} : vector<2x1x1xf32> -> vector<2x1x1xf32>
      %400 = vector.broadcast %399 : vector<2x1x1xf32> to vector<2x1x8xf32>
      %401 = arith.mulf %396, %400 : vector<2x1x8xf32>
      %402 = arith.truncf %401 : vector<2x1x8xf32> to vector<2x1x8xbf16>
      "tpu.trace_start"() <{level = 10 : i32, message = "bqk,bkd->bqd"}> : () -> ()
      %cst_134 = arith.constant dense<0.000000e+00> : vector<2x1x16xf32>
      %403 = tpu.matmul %402, %387, %cst_134 {dimension_numbers = #tpu.dot_dimension_numbers<[2], [1], [1], [2], [0, 0, 0, 1, 1, 2], [0], [0]>} : vector<2x1x8xbf16>, vector<2x8x16xbf16>, vector<2x1x16xf32> -> vector<2x1x16xf32>
      "tpu.trace_stop"() : () -> ()
      %404 = vector.extract_strided_slice %337 {offsets = [0, 0, 48], sizes = [2, 1, 16], strides = [1, 1, 1]} : vector<2x1x128xf32> to vector<2x1x16xf32>
      %405 = arith.truncf %404 : vector<2x1x16xf32> to vector<2x1x16xbf16>
      %406 = vector.extract_strided_slice %331 {offsets = [0, 0, 48], sizes = [2, 8, 16], strides = [1, 1, 1]} : vector<2x8x128xf32> to vector<2x8x16xf32>
      %407 = arith.truncf %406 : vector<2x8x16xf32> to vector<2x8x16xbf16>
      %408 = vector.extract_strided_slice %333 {offsets = [0, 0, 48], sizes = [2, 8, 16], strides = [1, 1, 1]} : vector<2x8x128xf32> to vector<2x8x16xf32>
      %409 = arith.truncf %408 : vector<2x8x16xf32> to vector<2x8x16xbf16>
      "tpu.trace_start"() <{level = 10 : i32, message = "bqd,bkd->bqk"}> : () -> ()
      %cst_135 = arith.constant dense<0.000000e+00> : vector<2x1x8xf32>
      %410 = tpu.matmul %405, %407, %cst_135 {dimension_numbers = #tpu.dot_dimension_numbers<[2], [2], [1], [1], [0, 0, 0, 1, 1, 1], [0], [0]>} : vector<2x1x16xbf16>, vector<2x8x16xbf16>, vector<2x1x8xf32> -> vector<2x1x8xf32>
      "tpu.trace_stop"() : () -> ()
      %cst_136 = arith.constant 2.500000e-01 : f32
      %411 = vector.broadcast %cst_136 : f32 to vector<2x1x8xf32>
      %412 = arith.mulf %410, %411 : vector<2x1x8xf32>
      %413 = arith.addf %412, %5 : vector<2x1x8xf32>
      %cst_137 = arith.constant dense<0xFF800000> : vector<2x1xf32>
      %414 = vector.multi_reduction <maximumf>, %413, %cst_137 [2] : vector<2x1x8xf32> to vector<2x1xf32>
      %415 = vector.shape_cast %414 : vector<2x1xf32> to vector<2x1x1xf32>
      %416 = vector.broadcast %415 : vector<2x1x1xf32> to vector<2x1x8xf32>
      %417 = arith.subf %413, %416 : vector<2x1x8xf32>
      %418 = math.exp %417 : vector<2x1x8xf32>
      %cst_138 = arith.constant dense<0.000000e+00> : vector<2x1xf32>
      %419 = vector.multi_reduction <add>, %418, %cst_138 [2] : vector<2x1x8xf32> to vector<2x1xf32>
      %420 = vector.shape_cast %419 : vector<2x1xf32> to vector<2x1x1xf32>
      %421 = tpu.reciprocal %420 {approx = true} : vector<2x1x1xf32> -> vector<2x1x1xf32>
      %422 = vector.broadcast %421 : vector<2x1x1xf32> to vector<2x1x8xf32>
      %423 = arith.mulf %418, %422 : vector<2x1x8xf32>
      %424 = arith.truncf %423 : vector<2x1x8xf32> to vector<2x1x8xbf16>
      "tpu.trace_start"() <{level = 10 : i32, message = "bqk,bkd->bqd"}> : () -> ()
      %cst_139 = arith.constant dense<0.000000e+00> : vector<2x1x16xf32>
      %425 = tpu.matmul %424, %409, %cst_139 {dimension_numbers = #tpu.dot_dimension_numbers<[2], [1], [1], [2], [0, 0, 0, 1, 1, 2], [0], [0]>} : vector<2x1x8xbf16>, vector<2x8x16xbf16>, vector<2x1x16xf32> -> vector<2x1x16xf32>
      "tpu.trace_stop"() : () -> ()
      %426 = vector.extract_strided_slice %337 {offsets = [0, 0, 64], sizes = [2, 1, 16], strides = [1, 1, 1]} : vector<2x1x128xf32> to vector<2x1x16xf32>
      %427 = arith.truncf %426 : vector<2x1x16xf32> to vector<2x1x16xbf16>
      %428 = vector.extract_strided_slice %331 {offsets = [0, 0, 64], sizes = [2, 8, 16], strides = [1, 1, 1]} : vector<2x8x128xf32> to vector<2x8x16xf32>
      %429 = arith.truncf %428 : vector<2x8x16xf32> to vector<2x8x16xbf16>
      %430 = vector.extract_strided_slice %333 {offsets = [0, 0, 64], sizes = [2, 8, 16], strides = [1, 1, 1]} : vector<2x8x128xf32> to vector<2x8x16xf32>
      %431 = arith.truncf %430 : vector<2x8x16xf32> to vector<2x8x16xbf16>
      "tpu.trace_start"() <{level = 10 : i32, message = "bqd,bkd->bqk"}> : () -> ()
      %cst_140 = arith.constant dense<0.000000e+00> : vector<2x1x8xf32>
      %432 = tpu.matmul %427, %429, %cst_140 {dimension_numbers = #tpu.dot_dimension_numbers<[2], [2], [1], [1], [0, 0, 0, 1, 1, 1], [0], [0]>} : vector<2x1x16xbf16>, vector<2x8x16xbf16>, vector<2x1x8xf32> -> vector<2x1x8xf32>
      "tpu.trace_stop"() : () -> ()
      %cst_141 = arith.constant 2.500000e-01 : f32
      %433 = vector.broadcast %cst_141 : f32 to vector<2x1x8xf32>
      %434 = arith.mulf %432, %433 : vector<2x1x8xf32>
      %435 = arith.addf %434, %5 : vector<2x1x8xf32>
      %cst_142 = arith.constant dense<0xFF800000> : vector<2x1xf32>
      %436 = vector.multi_reduction <maximumf>, %435, %cst_142 [2] : vector<2x1x8xf32> to vector<2x1xf32>
      %437 = vector.shape_cast %436 : vector<2x1xf32> to vector<2x1x1xf32>
      %438 = vector.broadcast %437 : vector<2x1x1xf32> to vector<2x1x8xf32>
      %439 = arith.subf %435, %438 : vector<2x1x8xf32>
      %440 = math.exp %439 : vector<2x1x8xf32>
      %cst_143 = arith.constant dense<0.000000e+00> : vector<2x1xf32>
      %441 = vector.multi_reduction <add>, %440, %cst_143 [2] : vector<2x1x8xf32> to vector<2x1xf32>
      %442 = vector.shape_cast %441 : vector<2x1xf32> to vector<2x1x1xf32>
      %443 = tpu.reciprocal %442 {approx = true} : vector<2x1x1xf32> -> vector<2x1x1xf32>
      %444 = vector.broadcast %443 : vector<2x1x1xf32> to vector<2x1x8xf32>
      %445 = arith.mulf %440, %444 : vector<2x1x8xf32>
      %446 = arith.truncf %445 : vector<2x1x8xf32> to vector<2x1x8xbf16>
      "tpu.trace_start"() <{level = 10 : i32, message = "bqk,bkd->bqd"}> : () -> ()
      %cst_144 = arith.constant dense<0.000000e+00> : vector<2x1x16xf32>
      %447 = tpu.matmul %446, %431, %cst_144 {dimension_numbers = #tpu.dot_dimension_numbers<[2], [1], [1], [2], [0, 0, 0, 1, 1, 2], [0], [0]>} : vector<2x1x8xbf16>, vector<2x8x16xbf16>, vector<2x1x16xf32> -> vector<2x1x16xf32>
      "tpu.trace_stop"() : () -> ()
      %448 = vector.extract_strided_slice %337 {offsets = [0, 0, 80], sizes = [2, 1, 16], strides = [1, 1, 1]} : vector<2x1x128xf32> to vector<2x1x16xf32>
      %449 = arith.truncf %448 : vector<2x1x16xf32> to vector<2x1x16xbf16>
      %450 = vector.extract_strided_slice %331 {offsets = [0, 0, 80], sizes = [2, 8, 16], strides = [1, 1, 1]} : vector<2x8x128xf32> to vector<2x8x16xf32>
      %451 = arith.truncf %450 : vector<2x8x16xf32> to vector<2x8x16xbf16>
      %452 = vector.extract_strided_slice %333 {offsets = [0, 0, 80], sizes = [2, 8, 16], strides = [1, 1, 1]} : vector<2x8x128xf32> to vector<2x8x16xf32>
      %453 = arith.truncf %452 : vector<2x8x16xf32> to vector<2x8x16xbf16>
      "tpu.trace_start"() <{level = 10 : i32, message = "bqd,bkd->bqk"}> : () -> ()
      %cst_145 = arith.constant dense<0.000000e+00> : vector<2x1x8xf32>
      %454 = tpu.matmul %449, %451, %cst_145 {dimension_numbers = #tpu.dot_dimension_numbers<[2], [2], [1], [1], [0, 0, 0, 1, 1, 1], [0], [0]>} : vector<2x1x16xbf16>, vector<2x8x16xbf16>, vector<2x1x8xf32> -> vector<2x1x8xf32>
      "tpu.trace_stop"() : () -> ()
      %cst_146 = arith.constant 2.500000e-01 : f32
      %455 = vector.broadcast %cst_146 : f32 to vector<2x1x8xf32>
      %456 = arith.mulf %454, %455 : vector<2x1x8xf32>
      %457 = arith.addf %456, %5 : vector<2x1x8xf32>
      %cst_147 = arith.constant dense<0xFF800000> : vector<2x1xf32>
      %458 = vector.multi_reduction <maximumf>, %457, %cst_147 [2] : vector<2x1x8xf32> to vector<2x1xf32>
      %459 = vector.shape_cast %458 : vector<2x1xf32> to vector<2x1x1xf32>
      %460 = vector.broadcast %459 : vector<2x1x1xf32> to vector<2x1x8xf32>
      %461 = arith.subf %457, %460 : vector<2x1x8xf32>
      %462 = math.exp %461 : vector<2x1x8xf32>
      %cst_148 = arith.constant dense<0.000000e+00> : vector<2x1xf32>
      %463 = vector.multi_reduction <add>, %462, %cst_148 [2] : vector<2x1x8xf32> to vector<2x1xf32>
      %464 = vector.shape_cast %463 : vector<2x1xf32> to vector<2x1x1xf32>
      %465 = tpu.reciprocal %464 {approx = true} : vector<2x1x1xf32> -> vector<2x1x1xf32>
      %466 = vector.broadcast %465 : vector<2x1x1xf32> to vector<2x1x8xf32>
      %467 = arith.mulf %462, %466 : vector<2x1x8xf32>
      %468 = arith.truncf %467 : vector<2x1x8xf32> to vector<2x1x8xbf16>
      "tpu.trace_start"() <{level = 10 : i32, message = "bqk,bkd->bqd"}> : () -> ()
      %cst_149 = arith.constant dense<0.000000e+00> : vector<2x1x16xf32>
      %469 = tpu.matmul %468, %453, %cst_149 {dimension_numbers = #tpu.dot_dimension_numbers<[2], [1], [1], [2], [0, 0, 0, 1, 1, 2], [0], [0]>} : vector<2x1x8xbf16>, vector<2x8x16xbf16>, vector<2x1x16xf32> -> vector<2x1x16xf32>
      "tpu.trace_stop"() : () -> ()
      %470 = vector.extract_strided_slice %337 {offsets = [0, 0, 96], sizes = [2, 1, 16], strides = [1, 1, 1]} : vector<2x1x128xf32> to vector<2x1x16xf32>
      %471 = arith.truncf %470 : vector<2x1x16xf32> to vector<2x1x16xbf16>
      %472 = vector.extract_strided_slice %331 {offsets = [0, 0, 96], sizes = [2, 8, 16], strides = [1, 1, 1]} : vector<2x8x128xf32> to vector<2x8x16xf32>
      %473 = arith.truncf %472 : vector<2x8x16xf32> to vector<2x8x16xbf16>
      %474 = vector.extract_strided_slice %333 {offsets = [0, 0, 96], sizes = [2, 8, 16], strides = [1, 1, 1]} : vector<2x8x128xf32> to vector<2x8x16xf32>
      %475 = arith.truncf %474 : vector<2x8x16xf32> to vector<2x8x16xbf16>
      "tpu.trace_start"() <{level = 10 : i32, message = "bqd,bkd->bqk"}> : () -> ()
      %cst_150 = arith.constant dense<0.000000e+00> : vector<2x1x8xf32>
      %476 = tpu.matmul %471, %473, %cst_150 {dimension_numbers = #tpu.dot_dimension_numbers<[2], [2], [1], [1], [0, 0, 0, 1, 1, 1], [0], [0]>} : vector<2x1x16xbf16>, vector<2x8x16xbf16>, vector<2x1x8xf32> -> vector<2x1x8xf32>
      "tpu.trace_stop"() : () -> ()
      %cst_151 = arith.constant 2.500000e-01 : f32
      %477 = vector.broadcast %cst_151 : f32 to vector<2x1x8xf32>
      %478 = arith.mulf %476, %477 : vector<2x1x8xf32>
      %479 = arith.addf %478, %5 : vector<2x1x8xf32>
      %cst_152 = arith.constant dense<0xFF800000> : vector<2x1xf32>
      %480 = vector.multi_reduction <maximumf>, %479, %cst_152 [2] : vector<2x1x8xf32> to vector<2x1xf32>
      %481 = vector.shape_cast %480 : vector<2x1xf32> to vector<2x1x1xf32>
      %482 = vector.broadcast %481 : vector<2x1x1xf32> to vector<2x1x8xf32>
      %483 = arith.subf %479, %482 : vector<2x1x8xf32>
      %484 = math.exp %483 : vector<2x1x8xf32>
      %cst_153 = arith.constant dense<0.000000e+00> : vector<2x1xf32>
      %485 = vector.multi_reduction <add>, %484, %cst_153 [2] : vector<2x1x8xf32> to vector<2x1xf32>
      %486 = vector.shape_cast %485 : vector<2x1xf32> to vector<2x1x1xf32>
      %487 = tpu.reciprocal %486 {approx = true} : vector<2x1x1xf32> -> vector<2x1x1xf32>
      %488 = vector.broadcast %487 : vector<2x1x1xf32> to vector<2x1x8xf32>
      %489 = arith.mulf %484, %488 : vector<2x1x8xf32>
      %490 = arith.truncf %489 : vector<2x1x8xf32> to vector<2x1x8xbf16>
      "tpu.trace_start"() <{level = 10 : i32, message = "bqk,bkd->bqd"}> : () -> ()
      %cst_154 = arith.constant dense<0.000000e+00> : vector<2x1x16xf32>
      %491 = tpu.matmul %490, %475, %cst_154 {dimension_numbers = #tpu.dot_dimension_numbers<[2], [1], [1], [2], [0, 0, 0, 1, 1, 2], [0], [0]>} : vector<2x1x8xbf16>, vector<2x8x16xbf16>, vector<2x1x16xf32> -> vector<2x1x16xf32>
      "tpu.trace_stop"() : () -> ()
      %492 = vector.extract_strided_slice %337 {offsets = [0, 0, 112], sizes = [2, 1, 16], strides = [1, 1, 1]} : vector<2x1x128xf32> to vector<2x1x16xf32>
      %493 = arith.truncf %492 : vector<2x1x16xf32> to vector<2x1x16xbf16>
      %494 = vector.extract_strided_slice %331 {offsets = [0, 0, 112], sizes = [2, 8, 16], strides = [1, 1, 1]} : vector<2x8x128xf32> to vector<2x8x16xf32>
      %495 = arith.truncf %494 : vector<2x8x16xf32> to vector<2x8x16xbf16>
      %496 = vector.extract_strided_slice %333 {offsets = [0, 0, 112], sizes = [2, 8, 16], strides = [1, 1, 1]} : vector<2x8x128xf32> to vector<2x8x16xf32>
      %497 = arith.truncf %496 : vector<2x8x16xf32> to vector<2x8x16xbf16>
      "tpu.trace_start"() <{level = 10 : i32, message = "bqd,bkd->bqk"}> : () -> ()
      %cst_155 = arith.constant dense<0.000000e+00> : vector<2x1x8xf32>
      %498 = tpu.matmul %493, %495, %cst_155 {dimension_numbers = #tpu.dot_dimension_numbers<[2], [2], [1], [1], [0, 0, 0, 1, 1, 1], [0], [0]>} : vector<2x1x16xbf16>, vector<2x8x16xbf16>, vector<2x1x8xf32> -> vector<2x1x8xf32>
      "tpu.trace_stop"() : () -> ()
      %cst_156 = arith.constant 2.500000e-01 : f32
      %499 = vector.broadcast %cst_156 : f32 to vector<2x1x8xf32>
      %500 = arith.mulf %498, %499 : vector<2x1x8xf32>
      %501 = arith.addf %500, %5 : vector<2x1x8xf32>
      %cst_157 = arith.constant dense<0xFF800000> : vector<2x1xf32>
      %502 = vector.multi_reduction <maximumf>, %501, %cst_157 [2] : vector<2x1x8xf32> to vector<2x1xf32>
      %503 = vector.shape_cast %502 : vector<2x1xf32> to vector<2x1x1xf32>
      %504 = vector.broadcast %503 : vector<2x1x1xf32> to vector<2x1x8xf32>
      %505 = arith.subf %501, %504 : vector<2x1x8xf32>
      %506 = math.exp %505 : vector<2x1x8xf32>
      %cst_158 = arith.constant dense<0.000000e+00> : vector<2x1xf32>
      %507 = vector.multi_reduction <add>, %506, %cst_158 [2] : vector<2x1x8xf32> to vector<2x1xf32>
      %508 = vector.shape_cast %507 : vector<2x1xf32> to vector<2x1x1xf32>
      %509 = tpu.reciprocal %508 {approx = true} : vector<2x1x1xf32> -> vector<2x1x1xf32>
      %510 = vector.broadcast %509 : vector<2x1x1xf32> to vector<2x1x8xf32>
      %511 = arith.mulf %506, %510 : vector<2x1x8xf32>
      %512 = arith.truncf %511 : vector<2x1x8xf32> to vector<2x1x8xbf16>
      "tpu.trace_start"() <{level = 10 : i32, message = "bqk,bkd->bqd"}> : () -> ()
      %cst_159 = arith.constant dense<0.000000e+00> : vector<2x1x16xf32>
      %513 = tpu.matmul %512, %497, %cst_159 {dimension_numbers = #tpu.dot_dimension_numbers<[2], [1], [1], [2], [0, 0, 0, 1, 1, 2], [0], [0]>} : vector<2x1x8xbf16>, vector<2x8x16xbf16>, vector<2x1x16xf32> -> vector<2x1x16xf32>
      "tpu.trace_stop"() : () -> ()
      %514 = tpu.concatenate %359, %381, %403, %425, %447, %469, %491, %513 in 2 : vector<2x1x16xf32>, vector<2x1x16xf32>, vector<2x1x16xf32>, vector<2x1x16xf32>, vector<2x1x16xf32>, vector<2x1x16xf32>, vector<2x1x16xf32>, vector<2x1x16xf32> -> vector<2x1x128xf32>
      %515 = vector.shape_cast %514 : vector<2x1x128xf32> to vector<2x128xf32>
      %c0_160 = arith.constant 0 : index
      %c0_161 = arith.constant 0 : index
      %516 = vector.load %arg23[%c0_160, %c0_161] : memref<128x128xbf16, #tpu.memory_space<vmem>>, vector<128x128xbf16>
      %517 = arith.truncf %515 : vector<2x128xf32> to vector<2x128xbf16>
      %cst_162 = arith.constant dense<0.000000e+00> : vector<2x128xf32>
      %518 = tpu.matmul %517, %516, %cst_162 {dimension_numbers = #tpu.dot_dimension_numbers<[1], [0], [0], [1], [0, 0, 1, 1], [], []>} : vector<2x128xbf16>, vector<128x128xbf16>, vector<2x128xf32> -> vector<2x128xf32>
      %c0_163 = arith.constant 0 : index
      %c0_164 = arith.constant 0 : index
      %519 = vector.load %arg24[%c0_163, %c0_164] : memref<1x128xf32, #tpu.memory_space<vmem>>, vector<1x128xf32>
      %520 = vector.broadcast %519 : vector<1x128xf32> to vector<2x128xf32>
      %521 = arith.addf %518, %520 : vector<2x128xf32>
      %522 = vector.shape_cast %521 : vector<2x128xf32> to vector<2x1x128xf32>
      %c0_165 = arith.constant 0 : index
      %c0_166 = arith.constant 0 : index
      %c0_167 = arith.constant 0 : index
      %523 = vector.load %arg25[%c0_165, %c0_166, %c0_167] : memref<2x1x128xf32, #tpu.memory_space<vmem>>, vector<2x1x128xf32>
      tpu.vector_store %arg25[%c0_165, %c0_166, %c0_167], %522 {strides = array<i32>} : memref<2x1x128xf32, #tpu.memory_space<vmem>>, vector<2x1x128xf32>,
    } else {
    }
    return
  }
  func.func @transform_0(%arg0: i32, %arg1: i32) -> (i32, i32, i32) {
    %c0_i32 = arith.constant 0 : i32
    %c0_i32_0 = arith.constant 0 : i32
    %c0_i32_1 = arith.constant 0 : i32
    return %arg0, %c0_i32, %c0_i32_0 : i32, i32, i32
  }
  func.func @transform_1(%arg0: i32, %arg1: i32) -> (i32, i32, i32) {
    %c0_i32 = arith.constant 0 : i32
    %c0_i32_0 = arith.constant 0 : i32
    %c0_i32_1 = arith.constant 0 : i32
    return %arg0, %c0_i32, %c0_i32_0 : i32, i32, i32
  }
  func.func @transform_2(%arg0: i32, %arg1: i32) -> (i32, i32) {
    %c0_i32 = arith.constant 0 : i32
    %c0_i32_0 = arith.constant 0 : i32
    %c0_i32_1 = arith.constant 0 : i32
    return %c0_i32, %c0_i32_0 : i32, i32
  }
  func.func @transform_3(%arg0: i32, %arg1: i32) -> (i32, i32) {
    %c0_i32 = arith.constant 0 : i32
    %c0_i32_0 = arith.constant 0 : i32
    %c0_i32_1 = arith.constant 0 : i32
    return %c0_i32, %c0_i32_0 : i32, i32
  }
  func.func @transform_4(%arg0: i32, %arg1: i32) -> (i32, i32, i32) {
    %c0_i32 = arith.constant 0 : i32
    %c0_i32_0 = arith.constant 0 : i32
    %c0_i32_1 = arith.constant 0 : i32
    return %arg1, %c0_i32, %c0_i32_0 : i32, i32, i32
  }
  func.func @transform_5(%arg0: i32, %arg1: i32) -> (i32, i32, i32) {
    %c0_i32 = arith.constant 0 : i32
    %c0_i32_0 = arith.constant 0 : i32
    %c0_i32_1 = arith.constant 0 : i32
    return %arg1, %c0_i32, %c0_i32_0 : i32, i32, i32
  }
  func.func @transform_6(%arg0: i32, %arg1: i32) -> (i32, i32, i32) {
    %c0_i32 = arith.constant 0 : i32
    %c0_i32_0 = arith.constant 0 : i32
    %c0_i32_1 = arith.constant 0 : i32
    return %arg1, %c0_i32, %c0_i32_0 : i32, i32, i32
  }
  func.func @transform_7(%arg0: i32, %arg1: i32) -> (i32, i32, i32) {
    %c0_i32 = arith.constant 0 : i32
    %c0_i32_0 = arith.constant 0 : i32
    %c0_i32_1 = arith.constant 0 : i32
    return %arg1, %c0_i32, %c0_i32_0 : i32, i32, i32
  }
  func.func @transform_8(%arg0: i32, %arg1: i32) -> (i32, i32, i32) {
    %c0_i32 = arith.constant 0 : i32
    %c0_i32_0 = arith.constant 0 : i32
    %c0_i32_1 = arith.constant 0 : i32
    return %arg1, %c0_i32, %c0_i32_0 : i32, i32, i32
  }
  func.func @transform_9(%arg0: i32, %arg1: i32) -> (i32, i32, i32) {
    %c0_i32 = arith.constant 0 : i32
    %c0_i32_0 = arith.constant 0 : i32
    %c0_i32_1 = arith.constant 0 : i32
    return %arg1, %c0_i32, %c0_i32_0 : i32, i32, i32
  }
  func.func @transform_10(%arg0: i32, %arg1: i32) -> (i32, i32, i32) {
    %c0_i32 = arith.constant 0 : i32
    %c0_i32_0 = arith.constant 0 : i32
    %c0_i32_1 = arith.constant 0 : i32
    return %arg1, %c0_i32, %c0_i32_0 : i32, i32, i32
  }
  func.func @transform_11(%arg0: i32, %arg1: i32) -> (i32, i32, i32) {
    %c0_i32 = arith.constant 0 : i32
    %c0_i32_0 = arith.constant 0 : i32
    %c0_i32_1 = arith.constant 0 : i32
    return %arg1, %c0_i32, %c0_i32_0 : i32, i32, i32
  }
  func.func @transform_12(%arg0: i32, %arg1: i32) -> (i32, i32, i32) {
    %c0_i32 = arith.constant 0 : i32
    %c0_i32_0 = arith.constant 0 : i32
    %c0_i32_1 = arith.constant 0 : i32
    return %arg1, %c0_i32, %c0_i32_0 : i32, i32, i32
  }
  func.func @transform_13(%arg0: i32, %arg1: i32) -> (i32, i32, i32) {
    %c0_i32 = arith.constant 0 : i32
    %c0_i32_0 = arith.constant 0 : i32
    %c0_i32_1 = arith.constant 0 : i32
    return %arg1, %c0_i32, %c0_i32_0 : i32, i32, i32
  }
  func.func @transform_14(%arg0: i32, %arg1: i32) -> (i32, i32, i32) {
    %c0_i32 = arith.constant 0 : i32
    %c0_i32_0 = arith.constant 0 : i32
    %c0_i32_1 = arith.constant 0 : i32
    return %arg1, %c0_i32, %c0_i32_0 : i32, i32, i32
  }
  func.func @transform_15(%arg0: i32, %arg1: i32) -> (i32, i32, i32) {
    %c0_i32 = arith.constant 0 : i32
    %c0_i32_0 = arith.constant 0 : i32
    %c0_i32_1 = arith.constant 0 : i32
    return %arg1, %c0_i32, %c0_i32_0 : i32, i32, i32
  }
  func.func @transform_16(%arg0: i32, %arg1: i32) -> (i32, i32) {
    %c0_i32 = arith.constant 0 : i32
    %c0_i32_0 = arith.constant 0 : i32
    %c0_i32_1 = arith.constant 0 : i32
    return %c0_i32, %c0_i32_0 : i32, i32
  }
  func.func @transform_17(%arg0: i32, %arg1: i32) -> (i32, i32) {
    %c0_i32 = arith.constant 0 : i32
    %c0_i32_0 = arith.constant 0 : i32
    %c0_i32_1 = arith.constant 0 : i32
    return %c0_i32, %c0_i32_0 : i32, i32
  }
  func.func @transform_18(%arg0: i32, %arg1: i32) -> (i32, i32) {
    %c0_i32 = arith.constant 0 : i32
    %c0_i32_0 = arith.constant 0 : i32
    %c0_i32_1 = arith.constant 0 : i32
    return %c0_i32, %c0_i32_0 : i32, i32
  }
  func.func @transform_19(%arg0: i32, %arg1: i32) -> (i32, i32) {
    %c0_i32 = arith.constant 0 : i32
    %c0_i32_0 = arith.constant 0 : i32
    %c0_i32_1 = arith.constant 0 : i32
    return %c0_i32, %c0_i32_0 : i32, i32
  }
  func.func @transform_20(%arg0: i32, %arg1: i32) -> (i32, i32) {
    %c0_i32 = arith.constant 0 : i32
    %c0_i32_0 = arith.constant 0 : i32
    %c0_i32_1 = arith.constant 0 : i32
    return %c0_i32, %c0_i32_0 : i32, i32
  }
  func.func @transform_21(%arg0: i32, %arg1: i32) -> (i32, i32) {
    %c0_i32 = arith.constant 0 : i32
    %c0_i32_0 = arith.constant 0 : i32
    %c0_i32_1 = arith.constant 0 : i32
    return %c0_i32, %c0_i32_0 : i32, i32
  }
  func.func @transform_22(%arg0: i32, %arg1: i32) -> (i32, i32) {
    %c0_i32 = arith.constant 0 : i32
    %c0_i32_0 = arith.constant 0 : i32
    %c0_i32_1 = arith.constant 0 : i32
    return %c0_i32, %c0_i32_0 : i32, i32
  }
  func.func @transform_23(%arg0: i32, %arg1: i32) -> (i32, i32, i32) {
    %c0_i32 = arith.constant 0 : i32
    %c0_i32_0 = arith.constant 0 : i32
    %c0_i32_1 = arith.constant 0 : i32
    return %arg0, %c0_i32, %c0_i32_0 : i32, i32, i32
  }
}

</mosaic_0001>

<llo_original>
// kernel: text_encoder_forward.1
$region0: #{text_encoder_forward.1}
  #allocation0 [shape = 'u32[]', space=smem, size = 0x4, offset = 0x4, fixed_abs, tag = 'smem constant byte address 0x4 - core index']
  #allocation1 [shape = 'u32[72,128]{1,0:T(1,128)}', space=vmem, size = 0x9000, scoped, tag = 'internal scratch']
  #allocation2 [shape = 'f32[16,128]{1,0:T(8,128)}', space=vmem, size = 0x2000, scoped, tag = 'scratch operand']
  %s0 = inlined_call_operand.vmem [shape: bf16[2,8,128], index: 0, kind: input, shape index: {}]
  %s1 = inlined_call_operand.vmem [shape: f32[2,1,8], index: 1, kind: input, shape index: {}]
  %s2 = inlined_call_operand.vmem [shape: f32[1,128], index: 2, kind: input, shape index: {}]
  %s3 = inlined_call_operand.vmem [shape: f32[1,128], index: 3, kind: input, shape index: {}]
  %s4 = inlined_call_operand.hbm [shape: bf16[2,128,384], index: 4, kind: input, shape index: {}]
  %s5 = inlined_call_operand.vmem [shape: f32[2,1,384], index: 5, kind: input, shape index: {}]
  %s6 = inlined_call_operand.hbm [shape: bf16[2,128,128], index: 6, kind: input, shape index: {}]
  %s7 = inlined_call_operand.vmem [shape: f32[2,1,128], index: 7, kind: input, shape index: {}]
  %s8 = inlined_call_operand.vmem [shape: f32[2,1,128], index: 8, kind: input, shape index: {}]
  %s9 = inlined_call_operand.vmem [shape: f32[2,1,128], index: 9, kind: input, shape index: {}]
  %s10 = inlined_call_operand.hbm [shape: bf16[2,128,256], index: 10, kind: input, shape index: {}]
  %s11 = inlined_call_operand.vmem [shape: f32[2,1,256], index: 11, kind: input, shape index: {}]
  %s12 = inlined_call_operand.hbm [shape: bf16[2,256,128], index: 12, kind: input, shape index: {}]
  %s13 = inlined_call_operand.vmem [shape: f32[2,1,128], index: 13, kind: input, shape index: {}]
  %s14 = inlined_call_operand.vmem [shape: f32[2,1,128], index: 14, kind: input, shape index: {}]
  %s15 = inlined_call_operand.vmem [shape: f32[2,1,128], index: 15, kind: input, shape index: {}]
  %s16 = inlined_call_operand.vmem [shape: bf16[128,128], index: 16, kind: input, shape index: {}]
  %s17 = inlined_call_operand.vmem [shape: f32[1,128], index: 17, kind: input, shape index: {}]
  %s18 = inlined_call_operand.vmem [shape: f32[1,128], index: 18, kind: input, shape index: {}]
  %s19 = inlined_call_operand.hbm [shape: bf16[128,256], index: 19, kind: input, shape index: {}]
  %s20 = inlined_call_operand.vmem [shape: f32[1,256], index: 20, kind: input, shape index: {}]
  %s21 = inlined_call_operand.vmem [shape: bf16[128,128], index: 21, kind: input, shape index: {}]
  %s22 = inlined_call_operand.vmem [shape: f32[1,128], index: 22, kind: input, shape index: {}]
  %s23 = inlined_call_operand.hbm [shape: f32[2,1,128], index: 23, kind: output, shape index: {}]
  %s24 = sld [smem:[#allocation0]]
  $region153: #{text_encoder_forward.1} parent=0
    _
  %s26 = ssub.s32 1, %s24
  %s27 = scalar_select 0, %s26, %s24
  $region1: #{text_encoder_forward.1} parent=0
    #allocation3 [shape = 'u8[196608]{0}', space=vmem, size = 0x30000, scoped, tag = 'input window, operand 4']
    #allocation4 [shape = 's32[2]{0}', space=sflag, size = 0x8, scoped, tag = 'scoped memory for text_encoder_forward.1']
    #allocation5 [shape = 's32[2]{0}', space=sflag, size = 0x8, scoped, tag = 'scoped memory for text_encoder_forward.1']
    #allocation6 [shape = 'u8[65536]{0}', space=vmem, size = 0x10000, scoped, tag = 'input window, operand 6']
    #allocation7 [shape = 's32[2]{0}', space=sflag, size = 0x8, scoped, tag = 'scoped memory for text_encoder_forward.1']
    #allocation8 [shape = 'u8[131072]{0}', space=vmem, size = 0x20000, scoped, tag = 'input window, operand 10']
    #allocation9 [shape = 'u8[131072]{0}', space=vmem, size = 0x20000, scoped, tag = 'input window, operand 12']
    #allocation10 [shape = 's32[2]{0}', space=sflag, size = 0x8, scoped, tag = 'scoped memory for text_encoder_forward.1']
    #allocation11 [shape = 'u8[65536]{0}', space=vmem, size = 0x10000, scoped, tag = 'input window, operand 19, single buffered']
    #allocation12 [shape = 'u8[1024]{0}', space=vmem, size = 0x400, scoped, tag = 'output window, operand 0, single buffered']
    %28 = vsyncpa [#allocation4], 0
    %s29 = scalar_lea.sflag [#allocation4], 1
    %30 = vsyncpa %s29, 0
    %31 = vsyncpa [#allocation7], 0
    %s32 = scalar_lea.sflag [#allocation7], 1
    %33 = vsyncpa %s32, 0
    %34 = vsyncpa [#allocation10], 0
    %s35 = scalar_lea.sflag [#allocation10], 1
    %36 = vsyncpa %s35, 0
    %37 = vsyncpa [#allocation5], 0
    loop: start=0, step=1, limit=4
    $region2: #{text_encoder_forward.1} parent=1 // loop_pre_header
      _
    $region3: #{text_encoder_forward.1} parent=1 // loop_header
      %s39 = sphi 0, %s43
      %p40 = scmp.ge.s32.totalorder %s39, 4
      %s46 = sphi 0, %s58
      %s47 = sphi 0, %s54
      %s48 = sphi 0, %s46
      %s49 = sphi 0, %s47
      %s50 = sphi 0, %s48
      %s51 = sphi 0, %s49
      %s61 = sphi 0, %s63
      %s64 = sphi 0, %s61
      %s65 = sphi 0, %s64
      %s81 = sphi 0, %s65
      %s87 = sphi 0, %s89
      %s90 = sphi 0, %s87
      %s91 = sphi 0, %s90
      %s107 = sphi 0, %s91
      %s111 = sphi 0, %s111
      %s113 = sphi 0, %s111
      %s114 = sphi 0, %s113
      %s128 = sphi 0, %s114
      %s132 = sphi 0, %s132
      %s134 = sphi 0, %s132
      %s135 = sphi 0, %s134
      %s149 = sphi 0, %s135
      %s155 = sphi 0, %s157
      %s158 = sphi 0, %s155
      %s159 = sphi 0, %s158
      %s175 = sphi 0, %s159
      %s181 = sphi 0, %s183
      %s184 = sphi 0, %s181
      %s185 = sphi 0, %s184
      %s201 = sphi 0, %s185
      %s207 = sphi 0, %s209
      %s210 = sphi 0, %s207
      %s211 = sphi 0, %s210
      %s227 = sphi 0, %s211
      %s233 = sphi 0, %s235
      %s236 = sphi 0, %s233
      %s237 = sphi 0, %s236
      %s253 = sphi 0, %s237
      %s259 = sphi 0, %s261
      %s262 = sphi 0, %s259
      %s263 = sphi 0, %s262
      %s279 = sphi 0, %s263
      %s285 = sphi 0, %s287
      %s288 = sphi 0, %s285
      %s289 = sphi 0, %s288
      %s305 = sphi 0, %s289
      %s311 = sphi 0, %s313
      %s314 = sphi 0, %s311
      %s315 = sphi 0, %s314
      %s331 = sphi 0, %s315
      %s337 = sphi 0, %s339
      %s340 = sphi 0, %s337
      %s341 = sphi 0, %s340
      %s357 = sphi 0, %s341
      %s363 = sphi 0, %s365
      %s366 = sphi 0, %s363
      %s367 = sphi 0, %s366
      %s383 = sphi 0, %s367
      %s389 = sphi 0, %s391
      %s392 = sphi 0, %s389
      %s393 = sphi 0, %s392
      %s409 = sphi 0, %s393
      %s415 = sphi 0, %s417
      %s418 = sphi 0, %s415
      %s419 = sphi 0, %s418
      %s435 = sphi 0, %s419
      %s441 = sphi 0, %s443
      %s444 = sphi 0, %s441
      %s445 = sphi 0, %s444
      %s461 = sphi 0, %s445
      %s465 = sphi 0, %s465
      %s467 = sphi 0, %s465
      %s468 = sphi 0, %s467
      %s482 = sphi 0, %s468
      %s486 = sphi 0, %s486
      %s488 = sphi 0, %s486
      %s489 = sphi 0, %s488
      %s503 = sphi 0, %s489
      %s507 = sphi 0, %s507
      %s509 = sphi 0, %s507
      %s510 = sphi 0, %s509
      %s524 = sphi 0, %s510
      %s528 = sphi 0, %s528
      %s530 = sphi 0, %s528
      %s531 = sphi 0, %s530
      %s545 = sphi 0, %s531
      %s549 = sphi 0, %s549
      %s551 = sphi 0, %s549
      %s552 = sphi 0, %s551
      %s566 = sphi 0, %s552
      %s570 = sphi 0, %s570
      %s572 = sphi 0, %s570
      %s573 = sphi 0, %s572
      %s587 = sphi 0, %s573
      %s591 = sphi 0, %s591
      %s593 = sphi 0, %s591
      %s594 = sphi 0, %s593
      %s608 = sphi 0, %s594
      %s614 = sphi 0, %s616
      %s617 = sphi 0, %s614
      %s618 = sphi 0, %s617
      %s634 = sphi 0, %s618
    $region4: #{text_encoder_forward.1} parent=1 // loop_header_branch
      %42 = sbr.rel (%p40) target = $region8
    $region5: #{text_encoder_forward.1} parent=1 // loop_body
      %s44 = ssub.s32 %s39, 1
      %s45 = ssub.s32 %s39, 2
      %s52 = sadd.s32 1, %s47
      %p53 = scmp.ge.s32.totalorder %s52, 2
      %s54 = scalar_select %p53, 0, %s52
      %s55 = sadd.s32 1, %s46
      %s56 = scalar_select %p53, %s55, %s46
      %p57 = scmp.ge.s32.totalorder %s56, 1
      %s58 = scalar_select %p57, 0, %s56
      %s59 = ssub.s32 %s46, %s58
      %p60 = scmp.eq.s32.totalorder %s59, 0
      %s62 = sadd.s32 %s61, 1
      %s63 = scalar_select %p60, %s61, %s62
      %p66 = pneg %p60
      %p67 = scmp.eq.s32.totalorder %s39, 1
      %p68 = por %p66, %p67
      %p69 = scmp.ne.s32.totalorder %s61, %s64
      %p70 = scmp.eq.s32.totalorder %s39, 0
      %p71 = por %p69, %p70
      %p72 = scmp.ne.s32.totalorder %s61, %s64
      %p73 = scmp.eq.s32.totalorder %s44, 1
      %p74 = por %p72, %p73
      %p75 = scmp.ne.s32.totalorder %s64, %s65
      %p76 = scmp.eq.s32.totalorder %s44, 0
      %p77 = por %p75, %p76
      %p78 = scmp.ne.s32.totalorder %s64, %s65
      %p79 = scmp.eq.s32.totalorder %s45, 1
      %p80 = por %p78, %p79
      %p82 = scmp.ne.s32.totalorder %s65, %s81
      %p83 = scmp.eq.s32.totalorder %s45, 0
      %p84 = por %p82, %p83
      %s85 = ssub.s32 %s46, %s58
      %p86 = scmp.eq.s32.totalorder %s85, 0
      %s88 = sadd.s32 %s87, 1
      %s89 = scalar_select %p86, %s87, %s88
      %p92 = pneg %p86
      %p93 = scmp.eq.s32.totalorder %s39, 1
      %p94 = por %p92, %p93
      %p95 = scmp.ne.s32.totalorder %s87, %s90
      %p96 = scmp.eq.s32.totalorder %s39, 0
      %p97 = por %p95, %p96
      %p98 = scmp.ne.s32.totalorder %s87, %s90
      %p99 = scmp.eq.s32.totalorder %s44, 1
      %p100 = por %p98, %p99
      %p101 = scmp.ne.s32.totalorder %s90, %s91
      %p102 = scmp.eq.s32.totalorder %s44, 0
      %p103 = por %p101, %p102
      %p104 = scmp.ne.s32.totalorder %s90, %s91
      %p105 = scmp.eq.s32.totalorder %s45, 1
      %p106 = por %p104, %p105
      %p108 = scmp.ne.s32.totalorder %s91, %s107
      %p109 = scmp.eq.s32.totalorder %s45, 0
      %p110 = por %p108, %p109
      %s112 = sadd.s32 %s111, 1
      %p115 = scmp.eq.s32.totalorder %s39, 1
      %p116 = scmp.ne.s32.totalorder %s111, %s113
      %p117 = scmp.eq.s32.totalorder %s39, 0
      %p118 = por %p116, %p117
      %p119 = scmp.ne.s32.totalorder %s111, %s113
      %p120 = scmp.eq.s32.totalorder %s44, 1
      %p121 = por %p119, %p120
      %p122 = scmp.ne.s32.totalorder %s113, %s114
      %p123 = scmp.eq.s32.totalorder %s44, 0
      %p124 = por %p122, %p123
      %p125 = scmp.ne.s32.totalorder %s113, %s114
      %p126 = scmp.eq.s32.totalorder %s45, 1
      %p127 = por %p125, %p126
      %p129 = scmp.ne.s32.totalorder %s114, %s128
      %p130 = scmp.eq.s32.totalorder %s45, 0
      %p131 = por %p129, %p130
      %s133 = sadd.s32 %s132, 1
      %p136 = scmp.eq.s32.totalorder %s39, 1
      %p137 = scmp.ne.s32.totalorder %s132, %s134
      %p138 = scmp.eq.s32.totalorder %s39, 0
      %p139 = por %p137, %p138
      %p140 = scmp.ne.s32.totalorder %s132, %s134
      %p141 = scmp.eq.s32.totalorder %s44, 1
      %p142 = por %p140, %p141
      %p143 = scmp.ne.s32.totalorder %s134, %s135
      %p144 = scmp.eq.s32.totalorder %s44, 0
      %p145 = por %p143, %p144
      %p146 = scmp.ne.s32.totalorder %s134, %s135
      %p147 = scmp.eq.s32.totalorder %s45, 1
      %p148 = por %p146, %p147
      %p150 = scmp.ne.s32.totalorder %s135, %s149
      %p151 = scmp.eq.s32.totalorder %s45, 0
      %p152 = por %p150, %p151
      %s153 = ssub.s32 %s47, %s54
      %p154 = scmp.eq.s32.totalorder %s153, 0
      %s156 = sadd.s32 %s155, 1
      %s157 = scalar_select %p154, %s155, %s156
      %p160 = pneg %p154
      %p161 = scmp.eq.s32.totalorder %s39, 1
      %p162 = por %p160, %p161
      %p163 = scmp.ne.s32.totalorder %s155, %s158
      %p164 = scmp.eq.s32.totalorder %s39, 0
      %p165 = por %p163, %p164
      %p166 = scmp.ne.s32.totalorder %s155, %s158
      %p167 = scmp.eq.s32.totalorder %s44, 1
      %p168 = por %p166, %p167
      %p169 = scmp.ne.s32.totalorder %s158, %s159
      %p170 = scmp.eq.s32.totalorder %s44, 0
      %p171 = por %p169, %p170
      %p172 = scmp.ne.s32.totalorder %s158, %s159
      %p173 = scmp.eq.s32.totalorder %s45, 1
      %p174 = por %p172, %p173
      %p176 = scmp.ne.s32.totalorder %s159, %s175
      %p177 = scmp.eq.s32.totalorder %s45, 0
      %p178 = por %p176, %p177
      %s179 = ssub.s32 %s47, %s54
      %p180 = scmp.eq.s32.totalorder %s179, 0
      %s182 = sadd.s32 %s181, 1
      %s183 = scalar_select %p180, %s181, %s182
      %p186 = pneg %p180
      %p187 = scmp.eq.s32.totalorder %s39, 1
      %p188 = por %p186, %p187
      %p189 = scmp.ne.s32.totalorder %s181, %s184
      %p190 = scmp.eq.s32.totalorder %s39, 0
      %p191 = por %p189, %p190
      %p192 = scmp.ne.s32.totalorder %s181, %s184
      %p193 = scmp.eq.s32.totalorder %s44, 1
      %p194 = por %p192, %p193
      %p195 = scmp.ne.s32.totalorder %s184, %s185
      %p196 = scmp.eq.s32.totalorder %s44, 0
      %p197 = por %p195, %p196
      %p198 = scmp.ne.s32.totalorder %s184, %s185
      %p199 = scmp.eq.s32.totalorder %s45, 1
      %p200 = por %p198, %p199
      %p202 = scmp.ne.s32.totalorder %s185, %s201
      %p203 = scmp.eq.s32.totalorder %s45, 0
      %p204 = por %p202, %p203
      %s205 = ssub.s32 %s47, %s54
      %p206 = scmp.eq.s32.totalorder %s205, 0
      %s208 = sadd.s32 %s207, 1
      %s209 = scalar_select %p206, %s207, %s208
      %p212 = pneg %p206
      %p213 = scmp.eq.s32.totalorder %s39, 1
      %p214 = por %p212, %p213
      %p215 = scmp.ne.s32.totalorder %s207, %s210
      %p216 = scmp.eq.s32.totalorder %s39, 0
      %p217 = por %p215, %p216
      %p218 = scmp.ne.s32.totalorder %s207, %s210
      %p219 = scmp.eq.s32.totalorder %s44, 1
      %p220 = por %p218, %p219
      %p221 = scmp.ne.s32.totalorder %s210, %s211
      %p222 = scmp.eq.s32.totalorder %s44, 0
      %p223 = por %p221, %p222
      %p224 = scmp.ne.s32.totalorder %s210, %s211
      %p225 = scmp.eq.s32.totalorder %s45, 1
      %p226 = por %p224, %p225
      %p228 = scmp.ne.s32.totalorder %s211, %s227
      %p229 = scmp.eq.s32.totalorder %s45, 0
      %p230 = por %p228, %p229
      %s231 = ssub.s32 %s47, %s54
      %p232 = scmp.eq.s32.totalorder %s231, 0
      %s234 = sadd.s32 %s233, 1
      %s235 = scalar_select %p232, %s233, %s234
      %p238 = pneg %p232
      %p239 = scmp.eq.s32.totalorder %s39, 1
      %p240 = por %p238, %p239
      %p241 = scmp.ne.s32.totalorder %s233, %s236
      %p242 = scmp.eq.s32.totalorder %s39, 0
      %p243 = por %p241, %p242
      %p244 = scmp.ne.s32.totalorder %s233, %s236
      %p245 = scmp.eq.s32.totalorder %s44, 1
      %p246 = por %p244, %p245
      %p247 = scmp.ne.s32.totalorder %s236, %s237
      %p248 = scmp.eq.s32.totalorder %s44, 0
      %p249 = por %p247, %p248
      %p250 = scmp.ne.s32.totalorder %s236, %s237
      %p251 = scmp.eq.s32.totalorder %s45, 1
      %p252 = por %p250, %p251
      %p254 = scmp.ne.s32.totalorder %s237, %s253
      %p255 = scmp.eq.s32.totalorder %s45, 0
      %p256 = por %p254, %p255
      %s257 = ssub.s32 %s47, %s54
      %p258 = scmp.eq.s32.totalorder %s257, 0
      %s260 = sadd.s32 %s259, 1
      %s261 = scalar_select %p258, %s259, %s260
      %p264 = pneg %p258
      %p265 = scmp.eq.s32.totalorder %s39, 1
      %p266 = por %p264, %p265
      %p267 = scmp.ne.s32.totalorder %s259, %s262
      %p268 = scmp.eq.s32.totalorder %s39, 0
      %p269 = por %p267, %p268
      %p270 = scmp.ne.s32.totalorder %s259, %s262
      %p271 = scmp.eq.s32.totalorder %s44, 1
      %p272 = por %p270, %p271
      %p273 = scmp.ne.s32.totalorder %s262, %s263
      %p274 = scmp.eq.s32.totalorder %s44, 0
      %p275 = por %p273, %p274
      %p276 = scmp.ne.s32.totalorder %s262, %s263
      %p277 = scmp.eq.s32.totalorder %s45, 1
      %p278 = por %p276, %p277
      %p280 = scmp.ne.s32.totalorder %s263, %s279
      %p281 = scmp.eq.s32.totalorder %s45, 0
      %p282 = por %p280, %p281
      %s283 = ssub.s32 %s47, %s54
      %p284 = scmp.eq.s32.totalorder %s283, 0
      %s286 = sadd.s32 %s285, 1
      %s287 = scalar_select %p284, %s285, %s286
      %p290 = pneg %p284
      %p291 = scmp.eq.s32.totalorder %s39, 1
      %p292 = por %p290, %p291
      %p293 = scmp.ne.s32.totalorder %s285, %s288
      %p294 = scmp.eq.s32.totalorder %s39, 0
      %p295 = por %p293, %p294
      %p296 = scmp.ne.s32.totalorder %s285, %s288
      %p297 = scmp.eq.s32.totalorder %s44, 1
      %p298 = por %p296, %p297
      %p299 = scmp.ne.s32.totalorder %s288, %s289
      %p300 = scmp.eq.s32.totalorder %s44, 0
      %p301 = por %p299, %p300
      %p302 = scmp.ne.s32.totalorder %s288, %s289
      %p303 = scmp.eq.s32.totalorder %s45, 1
      %p304 = por %p302, %p303
      %p306 = scmp.ne.s32.totalorder %s289, %s305
      %p307 = scmp.eq.s32.totalorder %s45, 0
      %p308 = por %p306, %p307
      %s309 = ssub.s32 %s47, %s54
      %p310 = scmp.eq.s32.totalorder %s309, 0
      %s312 = sadd.s32 %s311, 1
      %s313 = scalar_select %p310, %s311, %s312
      %p316 = pneg %p310
      %p317 = scmp.eq.s32.totalorder %s39, 1
      %p318 = por %p316, %p317
      %p319 = scmp.ne.s32.totalorder %s311, %s314
      %p320 = scmp.eq.s32.totalorder %s39, 0
      %p321 = por %p319, %p320
      %p322 = scmp.ne.s32.totalorder %s311, %s314
      %p323 = scmp.eq.s32.totalorder %s44, 1
      %p324 = por %p322, %p323
      %p325 = scmp.ne.s32.totalorder %s314, %s315
      %p326 = scmp.eq.s32.totalorder %s44, 0
      %p327 = por %p325, %p326
      %p328 = scmp.ne.s32.totalorder %s314, %s315
      %p329 = scmp.eq.s32.totalorder %s45, 1
      %p330 = por %p328, %p329
      %p332 = scmp.ne.s32.totalorder %s315, %s331
      %p333 = scmp.eq.s32.totalorder %s45, 0
      %p334 = por %p332, %p333
      %s335 = ssub.s32 %s47, %s54
      %p336 = scmp.eq.s32.totalorder %s335, 0
      %s338 = sadd.s32 %s337, 1
      %s339 = scalar_select %p336, %s337, %s338
      %p342 = pneg %p336
      %p343 = scmp.eq.s32.totalorder %s39, 1
      %p344 = por %p342, %p343
      %p345 = scmp.ne.s32.totalorder %s337, %s340
      %p346 = scmp.eq.s32.totalorder %s39, 0
      %p347 = por %p345, %p346
      %p348 = scmp.ne.s32.totalorder %s337, %s340
      %p349 = scmp.eq.s32.totalorder %s44, 1
      %p350 = por %p348, %p349
      %p351 = scmp.ne.s32.totalorder %s340, %s341
      %p352 = scmp.eq.s32.totalorder %s44, 0
      %p353 = por %p351, %p352
      %p354 = scmp.ne.s32.totalorder %s340, %s341
      %p355 = scmp.eq.s32.totalorder %s45, 1
      %p356 = por %p354, %p355
      %p358 = scmp.ne.s32.totalorder %s341, %s357
      %p359 = scmp.eq.s32.totalorder %s45, 0
      %p360 = por %p358, %p359
      %s361 = ssub.s32 %s47, %s54
      %p362 = scmp.eq.s32.totalorder %s361, 0
      %s364 = sadd.s32 %s363, 1
      %s365 = scalar_select %p362, %s363, %s364
      %p368 = pneg %p362
      %p369 = scmp.eq.s32.totalorder %s39, 1
      %p370 = por %p368, %p369
      %p371 = scmp.ne.s32.totalorder %s363, %s366
      %p372 = scmp.eq.s32.totalorder %s39, 0
      %p373 = por %p371, %p372
      %p374 = scmp.ne.s32.totalorder %s363, %s366
      %p375 = scmp.eq.s32.totalorder %s44, 1
      %p376 = por %p374, %p375
      %p377 = scmp.ne.s32.totalorder %s366, %s367
      %p378 = scmp.eq.s32.totalorder %s44, 0
      %p379 = por %p377, %p378
      %p380 = scmp.ne.s32.totalorder %s366, %s367
      %p381 = scmp.eq.s32.totalorder %s45, 1
      %p382 = por %p380, %p381
      %p384 = scmp.ne.s32.totalorder %s367, %s383
      %p385 = scmp.eq.s32.totalorder %s45, 0
      %p386 = por %p384, %p385
      %s387 = ssub.s32 %s47, %s54
      %p388 = scmp.eq.s32.totalorder %s387, 0
      %s390 = sadd.s32 %s389, 1
      %s391 = scalar_select %p388, %s389, %s390
      %p394 = pneg %p388
      %p395 = scmp.eq.s32.totalorder %s39, 1
      %p396 = por %p394, %p395
      %p397 = scmp.ne.s32.totalorder %s389, %s392
      %p398 = scmp.eq.s32.totalorder %s39, 0
      %p399 = por %p397, %p398
      %p400 = scmp.ne.s32.totalorder %s389, %s392
      %p401 = scmp.eq.s32.totalorder %s44, 1
      %p402 = por %p400, %p401
      %p403 = scmp.ne.s32.totalorder %s392, %s393
      %p404 = scmp.eq.s32.totalorder %s44, 0
      %p405 = por %p403, %p404
      %p406 = scmp.ne.s32.totalorder %s392, %s393
      %p407 = scmp.eq.s32.totalorder %s45, 1
      %p408 = por %p406, %p407
      %p410 = scmp.ne.s32.totalorder %s393, %s409
      %p411 = scmp.eq.s32.totalorder %s45, 0
      %p412 = por %p410, %p411
      %s413 = ssub.s32 %s47, %s54
      %p414 = scmp.eq.s32.totalorder %s413, 0
      %s416 = sadd.s32 %s415, 1
      %s417 = scalar_select %p414, %s415, %s416
      %p420 = pneg %p414
      %p421 = scmp.eq.s32.totalorder %s39, 1
      %p422 = por %p420, %p421
      %p423 = scmp.ne.s32.totalorder %s415, %s418
      %p424 = scmp.eq.s32.totalorder %s39, 0
      %p425 = por %p423, %p424
      %p426 = scmp.ne.s32.totalorder %s415, %s418
      %p427 = scmp.eq.s32.totalorder %s44, 1
      %p428 = por %p426, %p427
      %p429 = scmp.ne.s32.totalorder %s418, %s419
      %p430 = scmp.eq.s32.totalorder %s44, 0
      %p431 = por %p429, %p430
      %p432 = scmp.ne.s32.totalorder %s418, %s419
      %p433 = scmp.eq.s32.totalorder %s45, 1
      %p434 = por %p432, %p433
      %p436 = scmp.ne.s32.totalorder %s419, %s435
      %p437 = scmp.eq.s32.totalorder %s45, 0
      %p438 = por %p436, %p437
      %s439 = ssub.s32 %s47, %s54
      %p440 = scmp.eq.s32.totalorder %s439, 0
      %s442 = sadd.s32 %s441, 1
      %s443 = scalar_select %p440, %s441, %s442
      %p446 = pneg %p440
      %p447 = scmp.eq.s32.totalorder %s39, 1
      %p448 = por %p446, %p447
      %p449 = scmp.ne.s32.totalorder %s441, %s444
      %p450 = scmp.eq.s32.totalorder %s39, 0
      %p451 = por %p449, %p450
      %p452 = scmp.ne.s32.totalorder %s441, %s444
      %p453 = scmp.eq.s32.totalorder %s44, 1
      %p454 = por %p452, %p453
      %p455 = scmp.ne.s32.totalorder %s444, %s445
      %p456 = scmp.eq.s32.totalorder %s44, 0
      %p457 = por %p455, %p456
      %p458 = scmp.ne.s32.totalorder %s444, %s445
      %p459 = scmp.eq.s32.totalorder %s45, 1
      %p460 = por %p458, %p459
      %p462 = scmp.ne.s32.totalorder %s445, %s461
      %p463 = scmp.eq.s32.totalorder %s45, 0
      %p464 = por %p462, %p463
      %s466 = sadd.s32 %s465, 1
      %p469 = scmp.eq.s32.totalorder %s39, 1
      %p470 = scmp.ne.s32.totalorder %s465, %s467
      %p471 = scmp.eq.s32.totalorder %s39, 0
      %p472 = por %p470, %p471
      %p473 = scmp.ne.s32.totalorder %s465, %s467
      %p474 = scmp.eq.s32.totalorder %s44, 1
      %p475 = por %p473, %p474
      %p476 = scmp.ne.s32.totalorder %s467, %s468
      %p477 = scmp.eq.s32.totalorder %s44, 0
      %p478 = por %p476, %p477
      %p479 = scmp.ne.s32.totalorder %s467, %s468
      %p480 = scmp.eq.s32.totalorder %s45, 1
      %p481 = por %p479, %p480
      %p483 = scmp.ne.s32.totalorder %s468, %s482
      %p484 = scmp.eq.s32.totalorder %s45, 0
      %p485 = por %p483, %p484
      %s487 = sadd.s32 %s486, 1
      %p490 = scmp.eq.s32.totalorder %s39, 1
      %p491 = scmp.ne.s32.totalorder %s486, %s488
      %p492 = scmp.eq.s32.totalorder %s39, 0
      %p493 = por %p491, %p492
      %p494 = scmp.ne.s32.totalorder %s486, %s488
      %p495 = scmp.eq.s32.totalorder %s44, 1
      %p496 = por %p494, %p495
      %p497 = scmp.ne.s32.totalorder %s488, %s489
      %p498 = scmp.eq.s32.totalorder %s44, 0
      %p499 = por %p497, %p498
      %p500 = scmp.ne.s32.totalorder %s488, %s489
      %p501 = scmp.eq.s32.totalorder %s45, 1
      %p502 = por %p500, %p501
      %p504 = scmp.ne.s32.totalorder %s489, %s503
      %p505 = scmp.eq.s32.totalorder %s45, 0
      %p506 = por %p504, %p505
      %s508 = sadd.s32 %s507, 1
      %p511 = scmp.eq.s32.totalorder %s39, 1
      %p512 = scmp.ne.s32.totalorder %s507, %s509
      %p513 = scmp.eq.s32.totalorder %s39, 0
      %p514 = por %p512, %p513
      %p515 = scmp.ne.s32.totalorder %s507, %s509
      %p516 = scmp.eq.s32.totalorder %s44, 1
      %p517 = por %p515, %p516
      %p518 = scmp.ne.s32.totalorder %s509, %s510
      %p519 = scmp.eq.s32.totalorder %s44, 0
      %p520 = por %p518, %p519
      %p521 = scmp.ne.s32.totalorder %s509, %s510
      %p522 = scmp.eq.s32.totalorder %s45, 1
      %p523 = por %p521, %p522
      %p525 = scmp.ne.s32.totalorder %s510, %s524
      %p526 = scmp.eq.s32.totalorder %s45, 0
      %p527 = por %p525, %p526
      %s529 = sadd.s32 %s528, 1
      %p532 = scmp.eq.s32.totalorder %s39, 1
      %p533 = scmp.ne.s32.totalorder %s528, %s530
      %p534 = scmp.eq.s32.totalorder %s39, 0
      %p535 = por %p533, %p534
      %p536 = scmp.ne.s32.totalorder %s528, %s530
      %p537 = scmp.eq.s32.totalorder %s44, 1
      %p538 = por %p536, %p537
      %p539 = scmp.ne.s32.totalorder %s530, %s531
      %p540 = scmp.eq.s32.totalorder %s44, 0
      %p541 = por %p539, %p540
      %p542 = scmp.ne.s32.totalorder %s530, %s531
      %p543 = scmp.eq.s32.totalorder %s45, 1
      %p544 = por %p542, %p543
      %p546 = scmp.ne.s32.totalorder %s531, %s545
      %p547 = scmp.eq.s32.totalorder %s45, 0
      %p548 = por %p546, %p547
      %s550 = sadd.s32 %s549, 1
      %p553 = scmp.eq.s32.totalorder %s39, 1
      %p554 = scmp.ne.s32.totalorder %s549, %s551
      %p555 = scmp.eq.s32.totalorder %s39, 0
      %p556 = por %p554, %p555
      %p557 = scmp.ne.s32.totalorder %s549, %s551
      %p558 = scmp.eq.s32.totalorder %s44, 1
      %p559 = por %p557, %p558
      %p560 = scmp.ne.s32.totalorder %s551, %s552
      %p561 = scmp.eq.s32.totalorder %s44, 0
      %p562 = por %p560, %p561
      %p563 = scmp.ne.s32.totalorder %s551, %s552
      %p564 = scmp.eq.s32.totalorder %s45, 1
      %p565 = por %p563, %p564
      %p567 = scmp.ne.s32.totalorder %s552, %s566
      %p568 = scmp.eq.s32.totalorder %s45, 0
      %p569 = por %p567, %p568
      %s571 = sadd.s32 %s570, 1
      %p574 = scmp.eq.s32.totalorder %s39, 1
      %p575 = scmp.ne.s32.totalorder %s570, %s572
      %p576 = scmp.eq.s32.totalorder %s39, 0
      %p577 = por %p575, %p576
      %p578 = scmp.ne.s32.totalorder %s570, %s572
      %p579 = scmp.eq.s32.totalorder %s44, 1
      %p580 = por %p578, %p579
      %p581 = scmp.ne.s32.totalorder %s572, %s573
      %p582 = scmp.eq.s32.totalorder %s44, 0
      %p583 = por %p581, %p582
      %p584 = scmp.ne.s32.totalorder %s572, %s573
      %p585 = scmp.eq.s32.totalorder %s45, 1
      %p586 = por %p584, %p585
      %p588 = scmp.ne.s32.totalorder %s573, %s587
      %p589 = scmp.eq.s32.totalorder %s45, 0
      %p590 = por %p588, %p589
      %s592 = sadd.s32 %s591, 1
      %p595 = scmp.eq.s32.totalorder %s39, 1
      %p596 = scmp.ne.s32.totalorder %s591, %s593
      %p597 = scmp.eq.s32.totalorder %s39, 0
      %p598 = por %p596, %p597
      %p599 = scmp.ne.s32.totalorder %s591, %s593
      %p600 = scmp.eq.s32.totalorder %s44, 1
      %p601 = por %p599, %p600
      %p602 = scmp.ne.s32.totalorder %s593, %s594
      %p603 = scmp.eq.s32.totalorder %s44, 0
      %p604 = por %p602, %p603
      %p605 = scmp.ne.s32.totalorder %s593, %s594
      %p606 = scmp.eq.s32.totalorder %s45, 1
      %p607 = por %p605, %p606
      %p609 = scmp.ne.s32.totalorder %s594, %s608
      %p610 = scmp.eq.s32.totalorder %s45, 0
      %p611 = por %p609, %p610
      %s612 = ssub.s32 %s46, %s58
      %p613 = scmp.eq.s32.totalorder %s612, 0
      %s615 = sadd.s32 %s614, 1
      %s616 = scalar_select %p613, %s614, %s615
      %p619 = pneg %p613
      %p620 = scmp.eq.s32.totalorder %s39, 1
      %p621 = por %p619, %p620
      %p622 = scmp.ne.s32.totalorder %s614, %s617
      %p623 = scmp.eq.s32.totalorder %s39, 0
      %p624 = por %p622, %p623
      %p625 = scmp.ne.s32.totalorder %s614, %s617
      %p626 = scmp.eq.s32.totalorder %s44, 1
      %p627 = por %p625, %p626
      %p628 = scmp.ne.s32.totalorder %s617, %s618
      %p629 = scmp.eq.s32.totalorder %s44, 0
      %p630 = por %p628, %p629
      %p631 = scmp.ne.s32.totalorder %s617, %s618
      %p632 = scmp.eq.s32.totalorder %s45, 1
      %p633 = por %p631, %p632
      %p635 = scmp.ne.s32.totalorder %s618, %s634
      %p636 = scmp.eq.s32.totalorder %s45, 0
      %p637 = por %p635, %p636
      %p638 = scmp.le.s32.totalorder 1, %s39
      %p639 = scmp.lt.s32.totalorder %s39, 3
      %p640 = pnand %p638, %p639
      %p641 = pneg %p640
      // Predicated region
      $region9: #{text_encoder_forward.1} parent=5 // pred_check
        _
      $region10: #{text_encoder_forward.1} parent=5 // pred_check_branch
        %643 = sbr.rel (%p640) target = $region12
      $region11: #{text_encoder_forward.1} parent=5 // pred_region
        %s644 = ssub.s32 %s39, 1
        // Predicated region
        $region13: #{text_encoder_forward.1} parent=11 // pred_check
          %p645 = pneg %p77
        $region14: #{text_encoder_forward.1} parent=11 // pred_check_branch
          %647 = sbr.rel (%p645) target = $region16
        $region15: #{text_encoder_forward.1} parent=11 // pred_region
          %s648 = smul.u32 2, %s48
          %p649 = scmp.lt.s32.totalorder %s648, 1
          %s650 = scalar_select %p649, %s648, 1
          %s651 = smul.addr %s650, 4
          %s652 = scalar_lea.vmem %s0, %s651
          %s653 = smul.u32 2, %s48
        $region16: #{text_encoder_forward.1} parent=11 // pred_fallthru
          _
        // Predicated region
        $region17: #{text_encoder_forward.1} parent=11 // pred_check
          %p654 = pneg %p103
        $region18: #{text_encoder_forward.1} parent=11 // pred_check_branch
          %656 = sbr.rel (%p654) target = $region20
        $region19: #{text_encoder_forward.1} parent=11 // pred_region
          %s657 = smul.u32 2, %s48
          %p658 = scmp.lt.s32.totalorder %s657, 1
          %s659 = scalar_select %p658, %s657, 1
          %s660 = scalar_lea.vmem %s1, %s659
          %s661 = smul.u32 2, %s48
        $region20: #{text_encoder_forward.1} parent=11 // pred_fallthru
          _
        // Predicated region
        $region21: #{text_encoder_forward.1} parent=11 // pred_check
          %p662 = pneg %p124
        $region22: #{text_encoder_forward.1} parent=11 // pred_check_branch
          %664 = sbr.rel (%p662) target = $region24
        $region23: #{text_encoder_forward.1} parent=11 // pred_region
          _
        $region24: #{text_encoder_forward.1} parent=11 // pred_fallthru
          _
        // Predicated region
        $region25: #{text_encoder_forward.1} parent=11 // pred_check
          %p665 = pneg %p145
        $region26: #{text_encoder_forward.1} parent=11 // pred_check_branch
          %667 = sbr.rel (%p665) target = $region28
        $region27: #{text_encoder_forward.1} parent=11 // pred_region
          _
        $region28: #{text_encoder_forward.1} parent=11 // pred_fallthru
          _
        // Predicated region
        $region29: #{text_encoder_forward.1} parent=11 // pred_check
          %p668 = pneg %p478
        $region30: #{text_encoder_forward.1} parent=11 // pred_check_branch
          %670 = sbr.rel (%p668) target = $region32
        $region31: #{text_encoder_forward.1} parent=11 // pred_region
          _
        $region32: #{text_encoder_forward.1} parent=11 // pred_fallthru
          _
        // Predicated region
        $region33: #{text_encoder_forward.1} parent=11 // pred_check
          %p671 = pneg %p499
        $region34: #{text_encoder_forward.1} parent=11 // pred_check_branch
          %673 = sbr.rel (%p671) target = $region36
        $region35: #{text_encoder_forward.1} parent=11 // pred_region
          _
        $region36: #{text_encoder_forward.1} parent=11 // pred_fallthru
          _
        // Predicated region
        $region37: #{text_encoder_forward.1} parent=11 // pred_check
          %p674 = pneg %p520
        $region38: #{text_encoder_forward.1} parent=11 // pred_check_branch
          %676 = sbr.rel (%p674) target = $region40
        $region39: #{text_encoder_forward.1} parent=11 // pred_region
          _
        $region40: #{text_encoder_forward.1} parent=11 // pred_fallthru
          _
        // Predicated region
        $region41: #{text_encoder_forward.1} parent=11 // pred_check
          %p677 = pneg %p541
        $region42: #{text_encoder_forward.1} parent=11 // pred_check_branch
          %679 = sbr.rel (%p677) target = $region44
        $region43: #{text_encoder_forward.1} parent=11 // pred_region
          %681 = vsyncadd [#allocation10], 0
          %s682 = sshll.u32 %s19, 4
          %s683 = int_to_ptr.hbm [resolvable:$true] %s682
          %s684 = sshll.u32 [#allocation11], 4
          %s685 = int_to_ptr.vmem [resolvable:$true] %s684
          %690 = dma.hbm_to_vmem [thread:$0]  %s683, 2048, %s685, [#allocation10], 128, 128, 8
        $region44: #{text_encoder_forward.1} parent=11 // pred_fallthru
          _
        // Predicated region
        $region45: #{text_encoder_forward.1} parent=11 // pred_check
          %p691 = pneg %p562
        $region46: #{text_encoder_forward.1} parent=11 // pred_check_branch
          %693 = sbr.rel (%p691) target = $region48
        $region47: #{text_encoder_forward.1} parent=11 // pred_region
          _
        $region48: #{text_encoder_forward.1} parent=11 // pred_fallthru
          _
        // Predicated region
        $region49: #{text_encoder_forward.1} parent=11 // pred_check
          %p694 = pneg %p583
        $region50: #{text_encoder_forward.1} parent=11 // pred_check_branch
          %696 = sbr.rel (%p694) target = $region52
        $region51: #{text_encoder_forward.1} parent=11 // pred_region
          _
        $region52: #{text_encoder_forward.1} parent=11 // pred_fallthru
          _
        // Predicated region
        $region53: #{text_encoder_forward.1} parent=11 // pred_check
          %p697 = pneg %p604
        $region54: #{text_encoder_forward.1} parent=11 // pred_check_branch
          %699 = sbr.rel (%p697) target = $region56
        $region55: #{text_encoder_forward.1} parent=11 // pred_region
          _
        $region56: #{text_encoder_forward.1} parent=11 // pred_fallthru
          _
      $region12: #{text_encoder_forward.1} parent=5 // pred_fallthru
        _
      %p700 = scmp.lt.s32.totalorder %s39, 2
      // Predicated region
      $region57: #{text_encoder_forward.1} parent=5 // pred_check
        %p701 = pneg %p700
      $region58: #{text_encoder_forward.1} parent=5 // pred_check_branch
        %703 = sbr.rel (%p701) target = $region60
      $region59: #{text_encoder_forward.1} parent=5 // pred_region
        // Predicated region
        $region61: #{text_encoder_forward.1} parent=59 // pred_check
          %p704 = pneg %p165
        $region62: #{text_encoder_forward.1} parent=59 // pred_check_branch
          %706 = sbr.rel (%p704) target = $region64
        $region63: #{text_encoder_forward.1} parent=59 // pred_region
          %s707 = sand.u32 %s155, 1
          %s708 = scalar_lea.sflag [#allocation4], %s707
          %s709 = sand.u32 %s155, 1
          %s710 = smul.addr %s709, 192
          %s711 = scalar_lea.vmem [#allocation3], %s710
          %713 = vsyncadd %s708, 0
          %s714 = smul.addr %s47, 48
          %s715 = smul.addr %s714, 4
          %s716 = scalar_lea.hbm %s4, %s715
          %s717 = sshll.u32 %s716, 4
          %s718 = int_to_ptr.hbm [resolvable:$true] %s717
          %s719 = sshll.u32 %s711, 4
          %s720 = int_to_ptr.vmem [resolvable:$true] %s719
          %725 = dma.hbm_to_vmem [thread:$0]  %s718, 3072, %s720, %s708, 192, 192, 12
        $region64: #{text_encoder_forward.1} parent=59 // pred_fallthru
          _
        // Predicated region
        $region65: #{text_encoder_forward.1} parent=59 // pred_check
          %p726 = pneg %p191
        $region66: #{text_encoder_forward.1} parent=59 // pred_check_branch
          %728 = sbr.rel (%p726) target = $region68
        $region67: #{text_encoder_forward.1} parent=59 // pred_region
          %p729 = scmp.lt.s32.totalorder %s47, 1
          %s730 = scalar_select %p729, %s47, 1
          %s731 = smul.addr %s730, 3
          %s732 = scalar_lea.vmem %s5, %s731
        $region68: #{text_encoder_forward.1} parent=59 // pred_fallthru
          _
        // Predicated region
        $region69: #{text_encoder_forward.1} parent=59 // pred_check
          %p733 = pneg %p217
        $region70: #{text_encoder_forward.1} parent=59 // pred_check_branch
          %735 = sbr.rel (%p733) target = $region72
        $region71: #{text_encoder_forward.1} parent=59 // pred_region
          %s736 = sand.u32 %s39, 1
          %s737 = scalar_lea.sflag [#allocation7], %s736
          %s738 = sand.u32 %s207, 1
          %s739 = smul.addr %s738, 64
          %s740 = scalar_lea.vmem [#allocation6], %s739
          %742 = vsyncadd %s737, 0
          %s743 = smul.addr %s47, 16
          %s744 = smul.addr %s743, 4
          %s745 = scalar_lea.hbm %s6, %s744
          %s746 = sshll.u32 %s745, 4
          %s747 = int_to_ptr.hbm [resolvable:$true] %s746
          %s748 = sshll.u32 %s740, 4
          %s749 = int_to_ptr.vmem [resolvable:$true] %s748
          %754 = dma.hbm_to_vmem [thread:$0]  %s747, 1024, %s749, %s737, 64, 64, 4
        $region72: #{text_encoder_forward.1} parent=59 // pred_fallthru
          _
        // Predicated region
        $region73: #{text_encoder_forward.1} parent=59 // pred_check
          %p755 = pneg %p243
        $region74: #{text_encoder_forward.1} parent=59 // pred_check_branch
          %757 = sbr.rel (%p755) target = $region76
        $region75: #{text_encoder_forward.1} parent=59 // pred_region
          %p758 = scmp.lt.s32.totalorder %s47, 1
          %s759 = scalar_select %p758, %s47, 1
          %s760 = scalar_lea.vmem %s7, %s759
        $region76: #{text_encoder_forward.1} parent=59 // pred_fallthru
          _
        // Predicated region
        $region77: #{text_encoder_forward.1} parent=59 // pred_check
          %p761 = pneg %p269
        $region78: #{text_encoder_forward.1} parent=59 // pred_check_branch
          %763 = sbr.rel (%p761) target = $region80
        $region79: #{text_encoder_forward.1} parent=59 // pred_region
          %p764 = scmp.lt.s32.totalorder %s47, 1
          %s765 = scalar_select %p764, %s47, 1
          %s766 = scalar_lea.vmem %s8, %s765
        $region80: #{text_encoder_forward.1} parent=59 // pred_fallthru
          _
        // Predicated region
        $region81: #{text_encoder_forward.1} parent=59 // pred_check
          %p767 = pneg %p295
        $region82: #{text_encoder_forward.1} parent=59 // pred_check_branch
          %769 = sbr.rel (%p767) target = $region84
        $region83: #{text_encoder_forward.1} parent=59 // pred_region
          %p770 = scmp.lt.s32.totalorder %s47, 1
          %s771 = scalar_select %p770, %s47, 1
          %s772 = scalar_lea.vmem %s9, %s771
        $region84: #{text_encoder_forward.1} parent=59 // pred_fallthru
          _
        // Predicated region
        $region85: #{text_encoder_forward.1} parent=59 // pred_check
          %p773 = pneg %p321
        $region86: #{text_encoder_forward.1} parent=59 // pred_check_branch
          %775 = sbr.rel (%p773) target = $region88
        $region87: #{text_encoder_forward.1} parent=59 // pred_region
          %s776 = sand.u32 %s39, 1
          %s777 = scalar_lea.sflag [#allocation7], %s776
          %s778 = sand.u32 %s311, 1
          %s779 = smul.addr %s778, 128
          %s780 = scalar_lea.vmem [#allocation8], %s779
          %782 = vsyncadd %s777, 0
          %s783 = smul.addr %s47, 32
          %s784 = smul.addr %s783, 4
          %s785 = scalar_lea.hbm %s10, %s784
          %s786 = sshll.u32 %s785, 4
          %s787 = int_to_ptr.hbm [resolvable:$true] %s786
          %s788 = sshll.u32 %s780, 4
          %s789 = int_to_ptr.vmem [resolvable:$true] %s788
          %794 = dma.hbm_to_vmem [thread:$0]  %s787, 2048, %s789, %s777, 128, 128, 8
        $region88: #{text_encoder_forward.1} parent=59 // pred_fallthru
          _
        // Predicated region
        $region89: #{text_encoder_forward.1} parent=59 // pred_check
          %p795 = pneg %p347
        $region90: #{text_encoder_forward.1} parent=59 // pred_check_branch
          %797 = sbr.rel (%p795) target = $region92
        $region91: #{text_encoder_forward.1} parent=59 // pred_region
          %p798 = scmp.lt.s32.totalorder %s47, 1
          %s799 = scalar_select %p798, %s47, 1
          %s800 = smul.addr %s799, 2
          %s801 = scalar_lea.vmem %s11, %s800
        $region92: #{text_encoder_forward.1} parent=59 // pred_fallthru
          _
        // Predicated region
        $region93: #{text_encoder_forward.1} parent=59 // pred_check
          %p802 = pneg %p373
        $region94: #{text_encoder_forward.1} parent=59 // pred_check_branch
          %804 = sbr.rel (%p802) target = $region96
        $region95: #{text_encoder_forward.1} parent=59 // pred_region
          %s805 = sand.u32 %s39, 1
          %s806 = scalar_lea.sflag [#allocation10], %s805
          %s807 = sand.u32 %s363, 1
          %s808 = smul.addr %s807, 128
          %s809 = scalar_lea.vmem [#allocation9], %s808
          %811 = vsyncadd %s806, 0
          %s812 = smul.addr %s47, 32
          %s813 = smul.addr %s812, 4
          %s814 = scalar_lea.hbm %s12, %s813
          %s815 = sshll.u32 %s814, 4
          %s816 = int_to_ptr.hbm [resolvable:$true] %s815
          %s817 = sshll.u32 %s809, 4
          %s818 = int_to_ptr.vmem [resolvable:$true] %s817
          %823 = dma.hbm_to_vmem [thread:$0]  %s816, 2048, %s818, %s806, 64, 64, 4
        $region96: #{text_encoder_forward.1} parent=59 // pred_fallthru
          _
        // Predicated region
        $region97: #{text_encoder_forward.1} parent=59 // pred_check
          %p824 = pneg %p399
        $region98: #{text_encoder_forward.1} parent=59 // pred_check_branch
          %826 = sbr.rel (%p824) target = $region100
        $region99: #{text_encoder_forward.1} parent=59 // pred_region
          %p827 = scmp.lt.s32.totalorder %s47, 1
          %s828 = scalar_select %p827, %s47, 1
          %s829 = scalar_lea.vmem %s13, %s828
        $region100: #{text_encoder_forward.1} parent=59 // pred_fallthru
          _
        // Predicated region
        $region101: #{text_encoder_forward.1} parent=59 // pred_check
          %p830 = pneg %p425
        $region102: #{text_encoder_forward.1} parent=59 // pred_check_branch
          %832 = sbr.rel (%p830) target = $region104
        $region103: #{text_encoder_forward.1} parent=59 // pred_region
          %p833 = scmp.lt.s32.totalorder %s47, 1
          %s834 = scalar_select %p833, %s47, 1
          %s835 = scalar_lea.vmem %s14, %s834
        $region104: #{text_encoder_forward.1} parent=59 // pred_fallthru
          _
        // Predicated region
        $region105: #{text_encoder_forward.1} parent=59 // pred_check
          %p836 = pneg %p451
        $region106: #{text_encoder_forward.1} parent=59 // pred_check_branch
          %838 = sbr.rel (%p836) target = $region108
        $region107: #{text_encoder_forward.1} parent=59 // pred_region
          %p839 = scmp.lt.s32.totalorder %s47, 1
          %s840 = scalar_select %p839, %s47, 1
          %s841 = scalar_lea.vmem %s15, %s840
        $region108: #{text_encoder_forward.1} parent=59 // pred_fallthru
          _
      $region60: #{text_encoder_forward.1} parent=5 // pred_fallthru
        _
      %p842 = scmp.le.s32.totalorder 1, %s39
      %p843 = scmp.lt.s32.totalorder %s39, 3
      %p844 = pnand %p842, %p843
      %p845 = pneg %p844
      // Predicated region
      $region109: #{text_encoder_forward.1} parent=5 // pred_check
        _
      $region110: #{text_encoder_forward.1} parent=5 // pred_check_branch
        %847 = sbr.rel (%p844) target = $region112
      $region111: #{text_encoder_forward.1} parent=5 // pred_region
        %s848 = ssub.s32 %s39, 1
        %s849 = sand.u32 %s158, 1
        %s850 = scalar_lea.sflag [#allocation4], %s849
        %s851 = sand.u32 %s158, 1
        %s852 = smul.addr %s851, 192
        %s853 = scalar_lea.vmem [#allocation3], %s852
        // Predicated region
        $region113: #{text_encoder_forward.1} parent=111 // pred_check
          %p854 = pneg %p171
        $region114: #{text_encoder_forward.1} parent=111 // pred_check_branch
          %856 = sbr.rel (%p854) target = $region116
        $region115: #{text_encoder_forward.1} parent=111 // pred_region
          %858 = dma.done %s850, 3072
        $region116: #{text_encoder_forward.1} parent=111 // pred_fallthru
          _
        %s859 = sand.u32 %s44, 1
        %s860 = scalar_lea.sflag [#allocation7], %s859
        %s861 = sand.u32 %s210, 1
        %s862 = smul.addr %s861, 64
        %s863 = scalar_lea.vmem [#allocation6], %s862
        // Predicated region
        $region117: #{text_encoder_forward.1} parent=111 // pred_check
          %p864 = pneg %p223
        $region118: #{text_encoder_forward.1} parent=111 // pred_check_branch
          %866 = sbr.rel (%p864) target = $region120
        $region119: #{text_encoder_forward.1} parent=111 // pred_region
          %868 = dma.done %s860, 1024
        $region120: #{text_encoder_forward.1} parent=111 // pred_fallthru
          _
        %s869 = sand.u32 %s44, 1
        %s870 = scalar_lea.sflag [#allocation7], %s869
        %s871 = sand.u32 %s314, 1
        %s872 = smul.addr %s871, 128
        %s873 = scalar_lea.vmem [#allocation8], %s872
        // Predicated region
        $region121: #{text_encoder_forward.1} parent=111 // pred_check
          %p874 = pneg %p327
        $region122: #{text_encoder_forward.1} parent=111 // pred_check_branch
          %876 = sbr.rel (%p874) target = $region124
        $region123: #{text_encoder_forward.1} parent=111 // pred_region
          %878 = dma.done %s870, 2048
        $region124: #{text_encoder_forward.1} parent=111 // pred_fallthru
          _
        %s879 = sand.u32 %s44, 1
        %s880 = scalar_lea.sflag [#allocation10], %s879
        %s881 = sand.u32 %s366, 1
        %s882 = smul.addr %s881, 128
        %s883 = scalar_lea.vmem [#allocation9], %s882
        // Predicated region
        $region125: #{text_encoder_forward.1} parent=111 // pred_check
          %p884 = pneg %p379
        $region126: #{text_encoder_forward.1} parent=111 // pred_check_branch
          %886 = sbr.rel (%p884) target = $region128
        $region127: #{text_encoder_forward.1} parent=111 // pred_region
          %888 = dma.done %s880, 2048
        $region128: #{text_encoder_forward.1} parent=111 // pred_fallthru
          _
        // Predicated region
        $region129: #{text_encoder_forward.1} parent=111 // pred_check
          %p889 = pneg %p541
        $region130: #{text_encoder_forward.1} parent=111 // pred_check_branch
          %891 = sbr.rel (%p889) target = $region132
        $region131: #{text_encoder_forward.1} parent=111 // pred_region
          %893 = dma.done [#allocation10], 2048
        $region132: #{text_encoder_forward.1} parent=111 // pred_fallthru
          _
        %s894 = smul.u32 2, %s48
        %p895 = scmp.lt.s32.totalorder %s894, 1
        %s896 = scalar_select %p895, %s894, 1
        %s897 = smul.addr %s896, 4
        %s898 = scalar_lea.vmem %s0, %s897
        %p899 = pneg %p77
        %p900 = pneg %p74
        %s901 = smul.u32 2, %s48
        %p902 = scmp.lt.s32.totalorder %s901, 1
        %s903 = scalar_select %p902, %s901, 1
        %s904 = scalar_lea.vmem %s1, %s903
        %p905 = pneg %p103
        %p906 = pneg %p100
        %p907 = pneg %p124
        %p908 = pneg %p121
        %p909 = pneg %p145
        %p910 = pneg %p142
        %s911 = sand.u32 %s158, 1
        %s912 = scalar_lea.sflag [#allocation4], %s911
        %s913 = sand.u32 %s158, 1
        %s914 = smul.addr %s913, 192
        %s915 = scalar_lea.vmem [#allocation3], %s914
        %p916 = pneg %p171
        %p917 = pneg %p168
        %p918 = scmp.lt.s32.totalorder %s49, 1
        %s919 = scalar_select %p918, %s49, 1
        %s920 = smul.addr %s919, 3
        %s921 = scalar_lea.vmem %s5, %s920
        %p922 = pneg %p197
        %p923 = pneg %p194
        %s924 = sand.u32 %s44, 1
        %s925 = scalar_lea.sflag [#allocation7], %s924
        %s926 = sand.u32 %s210, 1
        %s927 = smul.addr %s926, 64
        %s928 = scalar_lea.vmem [#allocation6], %s927
        %p929 = pneg %p223
        %p930 = pneg %p220
        %p931 = scmp.lt.s32.totalorder %s49, 1
        %s932 = scalar_select %p931, %s49, 1
        %s933 = scalar_lea.vmem %s7, %s932
        %p934 = pneg %p249
        %p935 = pneg %p246
        %p936 = scmp.lt.s32.totalorder %s49, 1
        %s937 = scalar_select %p936, %s49, 1
        %s938 = scalar_lea.vmem %s8, %s937
        %p939 = pneg %p275
        %p940 = pneg %p272
        %p941 = scmp.lt.s32.totalorder %s49, 1
        %s942 = scalar_select %p941, %s49, 1
        %s943 = scalar_lea.vmem %s9, %s942
        %p944 = pneg %p301
        %p945 = pneg %p298
        %s946 = sand.u32 %s44, 1
        %s947 = scalar_lea.sflag [#allocation7], %s946
        %s948 = sand.u32 %s314, 1
        %s949 = smul.addr %s948, 128
        %s950 = scalar_lea.vmem [#allocation8], %s949
        %p951 = pneg %p327
        %p952 = pneg %p324
        %p953 = scmp.lt.s32.totalorder %s49, 1
        %s954 = scalar_select %p953, %s49, 1
        %s955 = smul.addr %s954, 2
        %s956 = scalar_lea.vmem %s11, %s955
        %p957 = pneg %p353
        %p958 = pneg %p350
        %s959 = sand.u32 %s44, 1
        %s960 = scalar_lea.sflag [#allocation10], %s959
        %s961 = sand.u32 %s366, 1
        %s962 = smul.addr %s961, 128
        %s963 = scalar_lea.vmem [#allocation9], %s962
        %p964 = pneg %p379
        %p965 = pneg %p376
        %p966 = scmp.lt.s32.totalorder %s49, 1
        %s967 = scalar_select %p966, %s49, 1
        %s968 = scalar_lea.vmem %s13, %s967
        %p969 = pneg %p405
        %p970 = pneg %p402
        %p971 = scmp.lt.s32.totalorder %s49, 1
        %s972 = scalar_select %p971, %s49, 1
        %s973 = scalar_lea.vmem %s14, %s972
        %p974 = pneg %p431
        %p975 = pneg %p428
        %p976 = scmp.lt.s32.totalorder %s49, 1
        %s977 = scalar_select %p976, %s49, 1
        %s978 = scalar_lea.vmem %s15, %s977
        %p979 = pneg %p457
        %p980 = pneg %p454
        %p981 = pneg %p478
        %p982 = pneg %p475
        %p983 = pneg %p499
        %p984 = pneg %p496
        %p985 = pneg %p520
        %p986 = pneg %p517
        %p987 = pneg %p541
        %p988 = pneg %p538
        %p989 = pneg %p562
        %p990 = pneg %p559
        %p991 = pneg %p583
        %p992 = pneg %p580
        %p993 = pneg %p604
        %p994 = pneg %p601
        %p995 = pneg %p630
        %p996 = pneg %p627
        %s997 = smul.u32 2, %s48
        %p998 = scmp.lt.s32.totalorder %s997, 1
        %s999 = scalar_select %p998, %s997, 1
        %s1000 = smul.addr %s999, 4
        %s1001 = scalar_lea.vmem %s0, %s1000
        %s1002 = smul.u32 2, %s48
        %s1003 = smul.u32 2, %s48
        %p1004 = scmp.lt.s32.totalorder %s1003, 1
        %s1005 = scalar_select %p1004, %s1003, 1
        %s1006 = scalar_lea.vmem %s1, %s1005
        %s1007 = smul.u32 2, %s48
        %p1008 = scmp.lt.s32.totalorder %s49, 1
        %s1009 = scalar_select %p1008, %s49, 1
        %s1010 = smul.addr %s1009, 3
        %s1011 = scalar_lea.vmem %s5, %s1010
        %p1012 = scmp.lt.s32.totalorder %s49, 1
        %s1013 = scalar_select %p1012, %s49, 1
        %s1014 = scalar_lea.vmem %s7, %s1013
        %p1015 = scmp.lt.s32.totalorder %s49, 1
        %s1016 = scalar_select %p1015, %s49, 1
        %s1017 = scalar_lea.vmem %s8, %s1016
        %p1018 = scmp.lt.s32.totalorder %s49, 1
        %s1019 = scalar_select %p1018, %s49, 1
        %s1020 = scalar_lea.vmem %s9, %s1019
        %p1021 = scmp.lt.s32.totalorder %s49, 1
        %s1022 = scalar_select %p1021, %s49, 1
        %s1023 = smul.addr %s1022, 2
        %s1024 = scalar_lea.vmem %s11, %s1023
        %p1025 = scmp.lt.s32.totalorder %s49, 1
        %s1026 = scalar_select %p1025, %s49, 1
        %s1027 = scalar_lea.vmem %s13, %s1026
        %p1028 = scmp.lt.s32.totalorder %s49, 1
        %s1029 = scalar_select %p1028, %s49, 1
        %s1030 = scalar_lea.vmem %s14, %s1029
        %p1031 = scmp.lt.s32.totalorder %s49, 1
        %s1032 = scalar_select %p1031, %s49, 1
        %s1033 = scalar_lea.vmem %s15, %s1032
        %s1034 = smul.u32 2, %s48
        %v1036 = vld [vmem:[%s1006] sm:$0x1]
        %v1037 = vld [vmem:[%s1006 + $0x1] sm:$0x1]
        %vm1038 = vcmp.gt.f32.partialorder %v1036, 0.5
        %vm1039 = vcmp.gt.f32.partialorder %v1037, 0.5
        %v1040 = vsel %vm1038, 0.0, -1e+30
        %v1041 = vsel %vm1039, 0.0, -1e+30
        %p1042 = scmp.eq.s32.totalorder %s49, 0
        // Predicated region
        $region133: #{text_encoder_forward.1} parent=111 // pred_check
          %p1043 = pneg %p1042
        $region134: #{text_encoder_forward.1} parent=111 // pred_check_branch
          %1045 = sbr.rel (%p1043) target = $region136
        $region135: #{text_encoder_forward.1} parent=111 // pred_region
          %v1046 = vld [vmem:[%s1001] sm:$0xf]
          %v1047 = vld [vmem:[%s1001 + $0x4] sm:$0xf]
          %v1048 = vld [vmem:[%s2] sm:$0x1]
          %v1049 = vld [vmem:[%s3] sm:$0x1]
          %v1050 = vunpack.c.l.bf16 %v1046
          %v1051 = vunpack.c.l.bf16 %v1047
          %1052 = vadd.xlane.f32.xlu0 %v1050
          %v1053 = vpop.xlane.xlu0 %1052
          %1054 = vadd.xlane.f32.xlu0 %v1051
          %v1055 = vpop.xlane.xlu0 %1054
          %v1056 = vrcp.pop 128.0
          %v1057 = vmul.f32 128.0, %v1056
          %v1058 = vsub.f32 1.0, %v1057
          %v1059 = vmul.f32 %v1056, %v1058
          %v1060 = vadd.f32 %v1056, %v1059
          %vm1061 = vweird.f32 %v1056
          %v1062 = vsel %vm1061, %v1056, %v1060
          %v1063 = vmul.f32 %v1053, %v1062
          %v1064 = vmul.f32 %v1055, %v1062
          %v1065 = vmul.f32 %v1050, %v1050
          %v1066 = vmul.f32 %v1051, %v1051
          %1067 = vadd.xlane.f32.xlu0 %v1065
          %v1068 = vpop.xlane.xlu0 %1067
          %1069 = vadd.xlane.f32.xlu0 %v1066
          %v1070 = vpop.xlane.xlu0 %1069
          %v1071 = vmul.f32 %v1068, %v1062
          %v1072 = vmul.f32 %v1070, %v1062
          %v1073 = vmul.f32 %v1063, %v1063
          %v1074 = vmul.f32 %v1064, %v1064
          %v1075 = vsub.f32 %v1071, %v1073
          %v1076 = vsub.f32 %v1072, %v1074
          %v1077 = vsub.f32 %v1050, %v1063
          %v1078 = vsub.f32 %v1051, %v1064
          %v1079 = vadd.f32 %v1075, 1e-12
          %v1080 = vadd.f32 %v1076, 1e-12
          %v1081 = vrsqrt.pop %v1079
          %v1082 = vmul.f32 %v1081, %v1079
          %v1083 = vmul.f32 %v1082, %v1081
          %v1084 = vmul.f32 0.5, %v1083
          %v1085 = vsub.f32 1.5, %v1084
          %v1086 = vmul.f32 %v1081, %v1085
          %vm1087 = vweird.f32 %v1079
          %vm1088 = vweird.f32 %v1081
          %vm1089 = vmor %vm1087, %vm1088
          %v1090 = vsel %vm1089, %v1081, %v1086
          %v1091 = vrsqrt.pop %v1080
          %v1092 = vmul.f32 %v1091, %v1080
          %v1093 = vmul.f32 %v1092, %v1091
          %v1094 = vmul.f32 0.5, %v1093
          %v1095 = vsub.f32 1.5, %v1094
          %v1096 = vmul.f32 %v1091, %v1095
          %vm1097 = vweird.f32 %v1080
          %vm1098 = vweird.f32 %v1091
          %vm1099 = vmor %vm1097, %vm1098
          %v1100 = vsel %vm1099, %v1091, %v1096
          %v1101 = vmul.f32 %v1077, %v1090
          %v1102 = vmul.f32 %v1078, %v1100
          %v1104 = vperm.slane %v1048, 0
          %v1106 = vmul.f32 %v1101, %v1104
          %v1107 = vmul.f32 %v1102, %v1104
          %v1109 = vperm.slane %v1049, 0
          %v1111 = vadd.f32 %v1106, %v1109
          %v1112 = vadd.f32 %v1107, %v1109
          %1113 = vst [vmem:[#allocation2] sm:$0xff] %v1111
          %1114 = vst [vmem:[#allocation2 + $0x8] sm:$0xff] %v1112
        $region136: #{text_encoder_forward.1} parent=111 // pred_fallthru
          _
        %v1115 = vld [vmem:[#allocation2] sm:$0xff]
        %v1116 = vld [vmem:[#allocation2 + $0x8] sm:$0xff]
        %v1117 = vld [vmem:[%s853] sm:$0xff]
        %v1118 = vld [vmem:[%s853 + $0x8] sm:$0xf]
        %v1119 = vld [vmem:[%s853 + $0xc] sm:$0xff]
        %v1120 = vld [vmem:[%s853 + $0x14] sm:$0xf]
        %v1121 = vld [vmem:[%s853 + $0x18] sm:$0xff]
        %v1122 = vld [vmem:[%s853 + $0x20] sm:$0xf]
        %v1123 = vld [vmem:[%s853 + $0x24] sm:$0xff]
        %v1124 = vld [vmem:[%s853 + $0x2c] sm:$0xf]
        %v1125 = vld [vmem:[%s853 + $0x30] sm:$0xff]
        %v1126 = vld [vmem:[%s853 + $0x38] sm:$0xf]
        %v1127 = vld [vmem:[%s853 + $0x3c] sm:$0xff]
        %v1128 = vld [vmem:[%s853 + $0x44] sm:$0xf]
        %v1129 = vld [vmem:[%s853 + $0x48] sm:$0xff]
        %v1130 = vld [vmem:[%s853 + $0x50] sm:$0xf]
        %v1131 = vld [vmem:[%s853 + $0x54] sm:$0xff]
        %v1132 = vld [vmem:[%s853 + $0x5c] sm:$0xf]
        %v1133 = vld [vmem:[%s853 + $0x60] sm:$0xff]
        %v1134 = vld [vmem:[%s853 + $0x68] sm:$0xf]
        %v1135 = vld [vmem:[%s853 + $0x6c] sm:$0xff]
        %v1136 = vld [vmem:[%s853 + $0x74] sm:$0xf]
        %v1137 = vld [vmem:[%s853 + $0x78] sm:$0xff]
        %v1138 = vld [vmem:[%s853 + $0x80] sm:$0xf]
        %v1139 = vld [vmem:[%s853 + $0x84] sm:$0xff]
        %v1140 = vld [vmem:[%s853 + $0x8c] sm:$0xf]
        %v1141 = vld [vmem:[%s853 + $0x90] sm:$0xff]
        %v1142 = vld [vmem:[%s853 + $0x98] sm:$0xf]
        %v1143 = vld [vmem:[%s853 + $0x9c] sm:$0xff]
        %v1144 = vld [vmem:[%s853 + $0xa4] sm:$0xf]
        %v1145 = vld [vmem:[%s853 + $0xa8] sm:$0xff]
        %v1146 = vld [vmem:[%s853 + $0xb0] sm:$0xf]
        %v1147 = vld [vmem:[%s853 + $0xb4] sm:$0xff]
        %v1148 = vld [vmem:[%s853 + $0xbc] sm:$0xf]
        %v1149 = vpack.c.bf16 %v1116, %v1115
        %v1150 = vld [vmem:[%s1011] sm:$0x7]
        %v1152 = vperm.slane %v1150, 0
        %v1153 = vperm.slane %v1150, 1
        %v1154 = vperm.slane %v1150, 2
        %v1190 = vunpack.c.l.b16 %v1117
        %v1191 = vunpack.c.h.b16 %v1117
        %v1192 = vunpack.c.l.b16 %v1118
        %v1193 = vunpack.c.l.b16 %v1119
        %v1194 = vunpack.c.h.b16 %v1119
        %v1195 = vunpack.c.l.b16 %v1120
        %v1196 = vunpack.c.l.b16 %v1121
        %v1197 = vunpack.c.h.b16 %v1121
        %v1198 = vunpack.c.l.b16 %v1122
        %v1199 = vunpack.c.l.b16 %v1123
        %v1200 = vunpack.c.h.b16 %v1123
        %v1201 = vunpack.c.l.b16 %v1124
        %v1202 = vunpack.c.l.b16 %v1125
        %v1203 = vunpack.c.h.b16 %v1125
        %v1204 = vunpack.c.l.b16 %v1126
        %v1205 = vunpack.c.l.b16 %v1127
        %v1206 = vunpack.c.h.b16 %v1127
        %v1207 = vunpack.c.l.b16 %v1128
        %v1208 = vunpack.c.l.b16 %v1129
        %v1209 = vunpack.c.h.b16 %v1129
        %v1210 = vunpack.c.l.b16 %v1130
        %v1211 = vunpack.c.l.b16 %v1131
        %v1212 = vunpack.c.h.b16 %v1131
        %v1213 = vunpack.c.l.b16 %v1132
        %v1214 = vunpack.c.l.b16 %v1133
        %v1215 = vunpack.c.h.b16 %v1133
        %v1216 = vunpack.c.l.b16 %v1134
        %v1217 = vunpack.c.l.b16 %v1135
        %v1218 = vunpack.c.h.b16 %v1135
        %v1219 = vunpack.c.l.b16 %v1136
        %v1220 = vunpack.c.l.b16 %v1137
        %v1221 = vunpack.c.h.b16 %v1137
        %v1222 = vunpack.c.l.b16 %v1138
        %v1223 = vunpack.c.l.b16 %v1139
        %v1224 = vunpack.c.h.b16 %v1139
        %v1225 = vunpack.c.l.b16 %v1140
        %v1226 = vunpack.c.l.b16 %v1141
        %v1227 = vunpack.c.h.b16 %v1141
        %v1228 = vunpack.c.l.b16 %v1142
        %v1229 = vunpack.c.l.b16 %v1143
        %v1230 = vunpack.c.h.b16 %v1143
        %v1231 = vunpack.c.l.b16 %v1144
        %v1232 = vunpack.c.l.b16 %v1145
        %v1233 = vunpack.c.h.b16 %v1145
        %v1234 = vunpack.c.l.b16 %v1146
        %v1235 = vunpack.c.l.b16 %v1147
        %v1236 = vunpack.c.h.b16 %v1147
        %v1237 = vunpack.c.l.b16 %v1148
        %v1238 = vpack.c.b16 %v1193, %v1190
        %v1239 = vpack.c.b16 %v1194, %v1191
        %v1240 = vpack.c.b16 %v1195, %v1192
        %v1241 = vpack.c.b16 %v1199, %v1196
        %v1242 = vpack.c.b16 %v1200, %v1197
        %v1243 = vpack.c.b16 %v1201, %v1198
        %v1244 = vpack.c.b16 %v1205, %v1202
        %v1245 = vpack.c.b16 %v1206, %v1203
        %v1246 = vpack.c.b16 %v1207, %v1204
        %v1247 = vpack.c.b16 %v1211, %v1208
        %v1248 = vpack.c.b16 %v1212, %v1209
        %v1249 = vpack.c.b16 %v1213, %v1210
        %v1250 = vpack.c.b16 %v1217, %v1214
        %v1251 = vpack.c.b16 %v1218, %v1215
        %v1252 = vpack.c.b16 %v1219, %v1216
        %v1253 = vpack.c.b16 %v1223, %v1220
        %v1254 = vpack.c.b16 %v1224, %v1221
        %v1255 = vpack.c.b16 %v1225, %v1222
        %v1256 = vpack.c.b16 %v1229, %v1226
        %v1257 = vpack.c.b16 %v1230, %v1227
        %v1258 = vpack.c.b16 %v1231, %v1228
        %v1259 = vpack.c.b16 %v1235, %v1232
        %v1260 = vpack.c.b16 %v1236, %v1233
        %v1261 = vpack.c.b16 %v1237, %v1234
        %1286 = vmatpush.bf16.msra.mxu0 %v1259
        %1287 = vmatpush.bf16.msra.mxu0 %v1256
        %1288 = vmatpush.bf16.msra.mxu0 %v1253
        %1289 = vmatpush.bf16.msra.mxu0 %v1250
        %1290 = vmatpush.bf16.msra.mxu0 %v1247
        %1291 = vmatpush.bf16.msra.mxu0 %v1244
        %1292 = vmatpush.bf16.msra.mxu0 %v1241
        %1293 = vmatpush.bf16.msra.mxu0 %v1238
        %1294 = vmatmul.bf16.gmra.mxu0 %v1149
        %v1295 = vpop.f32.mrf.mxu0
        %v1296 = vadd.f32 %v1152, %v1295
        %v1297 = vpop.f32.mrf.mxu0
        %v1298 = vadd.f32 %v1152, %v1297
        %1299 = vdwg.mxu0
        %1300 = vmatpush.bf16.msra.mxu0 %v1260
        %1301 = vmatpush.bf16.msra.mxu0 %v1257
        %1302 = vmatpush.bf16.msra.mxu0 %v1254
        %1303 = vmatpush.bf16.msra.mxu0 %v1251
        %1304 = vmatpush.bf16.msra.mxu0 %v1248
        %1305 = vmatpush.bf16.msra.mxu0 %v1245
        %1306 = vmatpush.bf16.msra.mxu0 %v1242
        %1307 = vmatpush.bf16.msra.mxu0 %v1239
        %1308 = vmatmul.bf16.gmra.mxu0 %v1149
        %v1309 = vpop.f32.mrf.mxu0
        %v1310 = vadd.f32 %v1153, %v1309
        %v1311 = vpop.f32.mrf.mxu0
        %v1312 = vadd.f32 %v1153, %v1311
        %1313 = vdwg.mxu0
        %1314 = vmatpush.bf16.msra.mxu0 %v1261
        %1315 = vmatpush.bf16.msra.mxu0 %v1258
        %1316 = vmatpush.bf16.msra.mxu0 %v1255
        %1317 = vmatpush.bf16.msra.mxu0 %v1252
        %1318 = vmatpush.bf16.msra.mxu0 %v1249
        %1319 = vmatpush.bf16.msra.mxu0 %v1246
        %1320 = vmatpush.bf16.msra.mxu0 %v1243
        %1321 = vmatpush.bf16.msra.mxu0 %v1240
        %1322 = vmatmul.bf16.gmra.mxu0 %v1149
        %v1323 = vpop.f32.mrf.mxu0
        %v1324 = vadd.f32 %v1154, %v1323
        %v1325 = vpop.f32.mrf.mxu0
        %v1326 = vadd.f32 %v1154, %v1325
        %1327 = vdwg.mxu0
        %v1328 = vpack.c.bf16 %v1296, %v1296
        %v1329 = vpack.c.bf16 %v1298, %v1298
        %v1330 = vpack.c.bf16 %v1310, %v1310
        %v1331 = vpack.c.bf16 %v1312, %v1312
        %v1332 = vpack.c.bf16 %v1324, %v1324
        %v1333 = vpack.c.bf16 %v1326, %v1326
        %vm1334 = vcmask 130048
        %v1336 = vsel %vm1334, %v1328, 0
        %v1339 = vsel %vm1334, %v1330, 0
        %1341 = vmatpush.bf16.xpose.msra.mxu0 0
        %1342 = vmatpush.bf16.xpose.msra.mxu0 0
        %1343 = vmatpush.bf16.xpose.msra.mxu0 0
        %1344 = vmatpush.bf16.xpose.msra.mxu0 0
        %1345 = vmatpush.bf16.xpose.msra.mxu0 0
        %1346 = vmatpush.bf16.xpose.msra.mxu0 0
        %1347 = vmatpush.bf16.xpose.msra.mxu0 0
        %1348 = vmatpush.bf16.xpose.msra.mxu0 %v1339
        %1349 = vmatmul.bf16.gmra.mxu0 %v1336
        %v1350 = vpop.f32.mrf.mxu0
        %v1351 = vadd.f32 0.0, %v1350
        %v1352 = vpop.f32.mrf.mxu0
        %1353 = vdwg.mxu0
        %v1355 = vsel %vm1334, %v1329, 0
        %v1358 = vsel %vm1334, %v1331, 0
        %1360 = vmatpush.bf16.xpose.msra.mxu0 0
        %1361 = vmatpush.bf16.xpose.msra.mxu0 0
        %1362 = vmatpush.bf16.xpose.msra.mxu0 0
        %1363 = vmatpush.bf16.xpose.msra.mxu0 0
        %1364 = vmatpush.bf16.xpose.msra.mxu0 0
        %1365 = vmatpush.bf16.xpose.msra.mxu0 0
        %1366 = vmatpush.bf16.xpose.msra.mxu0 0
        %1367 = vmatpush.bf16.xpose.msra.mxu0 %v1358
        %1368 = vmatmul.bf16.gmra.mxu0 %v1355
        %v1369 = vpop.f32.mrf.mxu0
        %v1370 = vadd.f32 0.0, %v1369
        %v1371 = vpop.f32.mrf.mxu0
        %1372 = vdwg.mxu0
        %v1373 = vmul.f32 %v1351, 0.25
        %v1374 = vmul.f32 %v1370, 0.25
        %v1377 = vperm.slane %v1040, 0
        %v1378 = vperm.slane %v1041, 0
        %v1381 = vadd.f32 %v1373, %v1377
        %v1382 = vadd.f32 %v1374, %v1378
        %vm1383 = vcmask 64512
        %v1384 = vsel %vm1383, %v1381, -inf
        %1385 = vmax.xlane.f32.xlu0 %v1384
        %v1386 = vpop.xlane.xlu0 %1385
        %v1387 = vsel %vm1383, %v1382, -inf
        %1388 = vmax.xlane.f32.xlu0 %v1387
        %v1389 = vpop.xlane.xlu0 %1388
        %v1390 = vsub.f32 %v1381, %v1386
        %v1391 = vsub.f32 %v1382, %v1389
        %v1392 = vmul.f32 %v1390, 1.442695
        %v1393 = vpow.pop %v1392
        %v1394 = vmul.f32 %v1391, 1.442695
        %v1395 = vpow.pop %v1394
        %v1396 = vsel %vm1383, %v1393, 0.0
        %1397 = vadd.xlane.f32.xlu0 %v1396
        %v1398 = vpop.xlane.xlu0 %1397
        %v1399 = vsel %vm1383, %v1395, 0.0
        %1400 = vadd.xlane.f32.xlu0 %v1399
        %v1401 = vpop.xlane.xlu0 %1400
        %v1402 = vrcp.pop %v1398
        %v1403 = vrcp.pop %v1401
        %v1404 = vmul.f32 %v1393, %v1402
        %v1405 = vmul.f32 %v1395, %v1403
        %v1406 = vpack.c.bf16 %v1404, %v1404
        %v1407 = vpack.c.bf16 %v1405, %v1405
        %v1409 = vsel %vm1383, %v1406, 0
        %vm1411 = vcmask 1043456
        %v1413 = vsel %vm1411, %v1332, 0
        %1415 = vmatpush.bf16.msra.mxu0 0
        %1416 = vmatpush.bf16.msra.mxu0 0
        %1417 = vmatpush.bf16.msra.mxu0 0
        %1418 = vmatpush.bf16.msra.mxu0 0
        %1419 = vmatpush.bf16.msra.mxu0 0
        %1420 = vmatpush.bf16.msra.mxu0 0
        %1421 = vmatpush.bf16.msra.mxu0 0
        %1422 = vmatpush.bf16.msra.mxu0 %v1413
        %1423 = vmatmul.bf16.gmra.mxu0 %v1409
        %v1424 = vpop.f32.mrf.mxu0
        %v1425 = vadd.f32 0.0, %v1424
        %v1426 = vpop.f32.mrf.mxu0
        %1427 = vdwg.mxu0
        %v1429 = vsel %vm1383, %v1407, 0
        %v1432 = vsel %vm1411, %v1333, 0
        %1434 = vmatpush.bf16.msra.mxu0 0
        %1435 = vmatpush.bf16.msra.mxu0 0
        %1436 = vmatpush.bf16.msra.mxu0 0
        %1437 = vmatpush.bf16.msra.mxu0 0
        %1438 = vmatpush.bf16.msra.mxu0 0
        %1439 = vmatpush.bf16.msra.mxu0 0
        %1440 = vmatpush.bf16.msra.mxu0 0
        %1441 = vmatpush.bf16.msra.mxu0 %v1432
        %1442 = vmatmul.bf16.gmra.mxu0 %v1429
        %v1443 = vpop.f32.mrf.mxu0
        %v1444 = vadd.f32 0.0, %v1443
        %v1445 = vpop.f32.mrf.mxu0
        %1446 = vdwg.mxu0
        %v1448 = vunpack.c.l.b16 %v1328
        %v1449 = vpack.c.b16 %v1448, %v1448
        %1450 = vrot.lane.b32.xlu0 %v1449, 112
        %v1451 = vpop.permute.xlu0 %1450
        %v1453 = vunpack.c.l.b16 %v1330
        %v1454 = vpack.c.b16 %v1453, %v1453
        %1455 = vrot.lane.b32.xlu0 %v1454, 112
        %v1456 = vpop.permute.xlu0 %1455
        %v1458 = vsel %vm1334, %v1451, 0
        %v1461 = vsel %vm1334, %v1456, 0
        %1463 = vmatpush.bf16.xpose.msra.mxu0 0
        %1464 = vmatpush.bf16.xpose.msra.mxu0 0
        %1465 = vmatpush.bf16.xpose.msra.mxu0 0
        %1466 = vmatpush.bf16.xpose.msra.mxu0 0
        %1467 = vmatpush.bf16.xpose.msra.mxu0 0
        %1468 = vmatpush.bf16.xpose.msra.mxu0 0
        %1469 = vmatpush.bf16.xpose.msra.mxu0 0
        %1470 = vmatpush.bf16.xpose.msra.mxu0 %v1461
        %1471 = vmatmul.bf16.gmra.mxu0 %v1458
        %v1472 = vpop.f32.mrf.mxu0
        %v1473 = vadd.f32 0.0, %v1472
        %v1474 = vpop.f32.mrf.mxu0
        %1475 = vdwg.mxu0
        %v1477 = vunpack.c.l.b16 %v1329
        %v1478 = vpack.c.b16 %v1477, %v1477
        %1479 = vrot.lane.b32.xlu0 %v1478, 112
        %v1480 = vpop.permute.xlu0 %1479
        %v1482 = vunpack.c.l.b16 %v1331
        %v1483 = vpack.c.b16 %v1482, %v1482
        %1484 = vrot.lane.b32.xlu0 %v1483, 112
        %v1485 = vpop.permute.xlu0 %1484
        %v1487 = vsel %vm1334, %v1480, 0
        %v1490 = vsel %vm1334, %v1485, 0
        %1492 = vmatpush.bf16.xpose.msra.mxu0 0
        %1493 = vmatpush.bf16.xpose.msra.mxu0 0
        %1494 = vmatpush.bf16.xpose.msra.mxu0 0
        %1495 = vmatpush.bf16.xpose.msra.mxu0 0
        %1496 = vmatpush.bf16.xpose.msra.mxu0 0
        %1497 = vmatpush.bf16.xpose.msra.mxu0 0
        %1498 = vmatpush.bf16.xpose.msra.mxu0 0
        %1499 = vmatpush.bf16.xpose.msra.mxu0 %v1490
        %1500 = vmatmul.bf16.gmra.mxu0 %v1487
        %v1501 = vpop.f32.mrf.mxu0
        %v1502 = vadd.f32 0.0, %v1501
        %v1503 = vpop.f32.mrf.mxu0
        %1504 = vdwg.mxu0
        %v1505 = vmul.f32 %v1473, 0.25
        %v1506 = vmul.f32 %v1502, 0.25
        %v1507 = vadd.f32 %v1505, %v1377
        %v1508 = vadd.f32 %v1506, %v1378
        %v1509 = vsel %vm1383, %v1507, -inf
        %1510 = vmax.xlane.f32.xlu0 %v1509
        %v1511 = vpop.xlane.xlu0 %1510
        %v1512 = vsel %vm1383, %v1508, -inf
        %1513 = vmax.xlane.f32.xlu0 %v1512
        %v1514 = vpop.xlane.xlu0 %1513
        %v1515 = vsub.f32 %v1507, %v1511
        %v1516 = vsub.f32 %v1508, %v1514
        %v1517 = vmul.f32 %v1515, 1.442695
        %v1518 = vpow.pop %v1517
        %v1519 = vmul.f32 %v1516, 1.442695
        %v1520 = vpow.pop %v1519
        %v1521 = vsel %vm1383, %v1518, 0.0
        %1522 = vadd.xlane.f32.xlu0 %v1521
        %v1523 = vpop.xlane.xlu0 %1522
        %v1524 = vsel %vm1383, %v1520, 0.0
        %1525 = vadd.xlane.f32.xlu0 %v1524
        %v1526 = vpop.xlane.xlu0 %1525
        %v1527 = vrcp.pop %v1523
        %v1528 = vrcp.pop %v1526
        %v1529 = vmul.f32 %v1518, %v1527
        %v1530 = vmul.f32 %v1520, %v1528
        %v1531 = vpack.c.bf16 %v1529, %v1529
        %v1532 = vpack.c.bf16 %v1530, %v1530
        %v1534 = vunpack.c.l.b16 %v1332
        %v1535 = vpack.c.b16 %v1534, %v1534
        %1536 = vrot.lane.b32.xlu0 %v1535, 112
        %v1537 = vpop.permute.xlu0 %1536
        %v1539 = vsel %vm1383, %v1531, 0
        %v1542 = vsel %vm1411, %v1537, 0
        %1544 = vmatpush.bf16.msra.mxu0 0
        %1545 = vmatpush.bf16.msra.mxu0 0
        %1546 = vmatpush.bf16.msra.mxu0 0
        %1547 = vmatpush.bf16.msra.mxu0 0
        %1548 = vmatpush.bf16.msra.mxu0 0
        %1549 = vmatpush.bf16.msra.mxu0 0
        %1550 = vmatpush.bf16.msra.mxu0 0
        %1551 = vmatpush.bf16.msra.mxu0 %v1542
        %1552 = vmatmul.bf16.gmra.mxu0 %v1539
        %v1553 = vpop.f32.mrf.mxu0
        %v1554 = vadd.f32 0.0, %v1553
        %v1555 = vpop.f32.mrf.mxu0
        %1556 = vdwg.mxu0
        %v1558 = vunpack.c.l.b16 %v1333
        %v1559 = vpack.c.b16 %v1558, %v1558
        %1560 = vrot.lane.b32.xlu0 %v1559, 112
        %v1561 = vpop.permute.xlu0 %1560
        %v1563 = vsel %vm1383, %v1532, 0
        %v1566 = vsel %vm1411, %v1561, 0
        %1568 = vmatpush.bf16.msra.mxu0 0
        %1569 = vmatpush.bf16.msra.mxu0 0
        %1570 = vmatpush.bf16.msra.mxu0 0
        %1571 = vmatpush.bf16.msra.mxu0 0
        %1572 = vmatpush.bf16.msra.mxu0 0
        %1573 = vmatpush.bf16.msra.mxu0 0
        %1574 = vmatpush.bf16.msra.mxu0 0
        %1575 = vmatpush.bf16.msra.mxu0 %v1566
        %1576 = vmatmul.bf16.gmra.mxu0 %v1563
        %v1577 = vpop.f32.mrf.mxu0
        %v1578 = vadd.f32 0.0, %v1577
        %v1579 = vpop.f32.mrf.mxu0
        %1580 = vdwg.mxu0
        %1581 = vrot.lane.b32.xlu0 %v1449, 96
        %v1582 = vpop.permute.xlu0 %1581
        %1583 = vrot.lane.b32.xlu0 %v1454, 96
        %v1584 = vpop.permute.xlu0 %1583
        %v1586 = vsel %vm1334, %v1582, 0
        %v1589 = vsel %vm1334, %v1584, 0
        %1591 = vmatpush.bf16.xpose.msra.mxu0 0
        %1592 = vmatpush.bf16.xpose.msra.mxu0 0
        %1593 = vmatpush.bf16.xpose.msra.mxu0 0
        %1594 = vmatpush.bf16.xpose.msra.mxu0 0
        %1595 = vmatpush.bf16.xpose.msra.mxu0 0
        %1596 = vmatpush.bf16.xpose.msra.mxu0 0
        %1597 = vmatpush.bf16.xpose.msra.mxu0 0
        %1598 = vmatpush.bf16.xpose.msra.mxu0 %v1589
        %1599 = vmatmul.bf16.gmra.mxu0 %v1586
        %v1600 = vpop.f32.mrf.mxu0
        %v1601 = vadd.f32 0.0, %v1600
        %v1602 = vpop.f32.mrf.mxu0
        %1603 = vdwg.mxu0
        %1604 = vrot.lane.b32.xlu0 %v1478, 96
        %v1605 = vpop.permute.xlu0 %1604
        %1606 = vrot.lane.b32.xlu0 %v1483, 96
        %v1607 = vpop.permute.xlu0 %1606
        %v1609 = vsel %vm1334, %v1605, 0
        %v1612 = vsel %vm1334, %v1607, 0
        %1614 = vmatpush.bf16.xpose.msra.mxu0 0
        %1615 = vmatpush.bf16.xpose.msra.mxu0 0
        %1616 = vmatpush.bf16.xpose.msra.mxu0 0
        %1617 = vmatpush.bf16.xpose.msra.mxu0 0
        %1618 = vmatpush.bf16.xpose.msra.mxu0 0
        %1619 = vmatpush.bf16.xpose.msra.mxu0 0
        %1620 = vmatpush.bf16.xpose.msra.mxu0 0
        %1621 = vmatpush.bf16.xpose.msra.mxu0 %v1612
        %1622 = vmatmul.bf16.gmra.mxu0 %v1609
        %v1623 = vpop.f32.mrf.mxu0
        %v1624 = vadd.f32 0.0, %v1623
        %v1625 = vpop.f32.mrf.mxu0
        %1626 = vdwg.mxu0
        %v1627 = vmul.f32 %v1601, 0.25
        %v1628 = vmul.f32 %v1624, 0.25
        %v1629 = vadd.f32 %v1627, %v1377
        %v1630 = vadd.f32 %v1628, %v1378
        %v1631 = vsel %vm1383, %v1629, -inf
        %1632 = vmax.xlane.f32.xlu0 %v1631
        %v1633 = vpop.xlane.xlu0 %1632
        %v1634 = vsel %vm1383, %v1630, -inf
        %1635 = vmax.xlane.f32.xlu0 %v1634
        %v1636 = vpop.xlane.xlu0 %1635
        %v1637 = vsub.f32 %v1629, %v1633
        %v1638 = vsub.f32 %v1630, %v1636
        %v1639 = vmul.f32 %v1637, 1.442695
        %v1640 = vpow.pop %v1639
        %v1641 = vmul.f32 %v1638, 1.442695
        %v1642 = vpow.pop %v1641
        %v1643 = vsel %vm1383, %v1640, 0.0
        %1644 = vadd.xlane.f32.xlu0 %v1643
        %v1645 = vpop.xlane.xlu0 %1644
        %v1646 = vsel %vm1383, %v1642, 0.0
        %1647 = vadd.xlane.f32.xlu0 %v1646
        %v1648 = vpop.xlane.xlu0 %1647
        %v1649 = vrcp.pop %v1645
        %v1650 = vrcp.pop %v1648
        %v1651 = vmul.f32 %v1640, %v1649
        %v1652 = vmul.f32 %v1642, %v1650
        %v1653 = vpack.c.bf16 %v1651, %v1651
        %v1654 = vpack.c.bf16 %v1652, %v1652
        %1655 = vrot.lane.b32.xlu0 %v1535, 96
        %v1656 = vpop.permute.xlu0 %1655
        %v1658 = vsel %vm1383, %v1653, 0
        %v1661 = vsel %vm1411, %v1656, 0
        %1663 = vmatpush.bf16.msra.mxu0 0
        %1664 = vmatpush.bf16.msra.mxu0 0
        %1665 = vmatpush.bf16.msra.mxu0 0
        %1666 = vmatpush.bf16.msra.mxu0 0
        %1667 = vmatpush.bf16.msra.mxu0 0
        %1668 = vmatpush.bf16.msra.mxu0 0
        %1669 = vmatpush.bf16.msra.mxu0 0
        %1670 = vmatpush.bf16.msra.mxu0 %v1661
        %1671 = vmatmul.bf16.gmra.mxu0 %v1658
        %v1672 = vpop.f32.mrf.mxu0
        %v1673 = vadd.f32 0.0, %v1672
        %v1674 = vpop.f32.mrf.mxu0
        %1675 = vdwg.mxu0
        %1676 = vrot.lane.b32.xlu0 %v1559, 96
        %v1677 = vpop.permute.xlu0 %1676
        %v1679 = vsel %vm1383, %v1654, 0
        %v1682 = vsel %vm1411, %v1677, 0
        %1684 = vmatpush.bf16.msra.mxu0 0
        %1685 = vmatpush.bf16.msra.mxu0 0
        %1686 = vmatpush.bf16.msra.mxu0 0
        %1687 = vmatpush.bf16.msra.mxu0 0
        %1688 = vmatpush.bf16.msra.mxu0 0
        %1689 = vmatpush.bf16.msra.mxu0 0
        %1690 = vmatpush.bf16.msra.mxu0 0
        %1691 = vmatpush.bf16.msra.mxu0 %v1682
        %1692 = vmatmul.bf16.gmra.mxu0 %v1679
        %v1693 = vpop.f32.mrf.mxu0
        %v1694 = vadd.f32 0.0, %v1693
        %v1695 = vpop.f32.mrf.mxu0
        %1696 = vdwg.mxu0
        %1697 = vrot.lane.b32.xlu0 %v1449, 80
        %v1698 = vpop.permute.xlu0 %1697
        %1699 = vrot.lane.b32.xlu0 %v1454, 80
        %v1700 = vpop.permute.xlu0 %1699
        %v1702 = vsel %vm1334, %v1698, 0
        %v1705 = vsel %vm1334, %v1700, 0
        %1707 = vmatpush.bf16.xpose.msra.mxu0 0
        %1708 = vmatpush.bf16.xpose.msra.mxu0 0
        %1709 = vmatpush.bf16.xpose.msra.mxu0 0
        %1710 = vmatpush.bf16.xpose.msra.mxu0 0
        %1711 = vmatpush.bf16.xpose.msra.mxu0 0
        %1712 = vmatpush.bf16.xpose.msra.mxu0 0
        %1713 = vmatpush.bf16.xpose.msra.mxu0 0
        %1714 = vmatpush.bf16.xpose.msra.mxu0 %v1705
        %1715 = vmatmul.bf16.gmra.mxu0 %v1702
        %v1716 = vpop.f32.mrf.mxu0
        %v1717 = vadd.f32 0.0, %v1716
        %v1718 = vpop.f32.mrf.mxu0
        %1719 = vdwg.mxu0
        %1720 = vrot.lane.b32.xlu0 %v1478, 80
        %v1721 = vpop.permute.xlu0 %1720
        %1722 = vrot.lane.b32.xlu0 %v1483, 80
        %v1723 = vpop.permute.xlu0 %1722
        %v1725 = vsel %vm1334, %v1721, 0
        %v1728 = vsel %vm1334, %v1723, 0
        %1730 = vmatpush.bf16.xpose.msra.mxu0 0
        %1731 = vmatpush.bf16.xpose.msra.mxu0 0
        %1732 = vmatpush.bf16.xpose.msra.mxu0 0
        %1733 = vmatpush.bf16.xpose.msra.mxu0 0
        %1734 = vmatpush.bf16.xpose.msra.mxu0 0
        %1735 = vmatpush.bf16.xpose.msra.mxu0 0
        %1736 = vmatpush.bf16.xpose.msra.mxu0 0
        %1737 = vmatpush.bf16.xpose.msra.mxu0 %v1728
        %1738 = vmatmul.bf16.gmra.mxu0 %v1725
        %v1739 = vpop.f32.mrf.mxu0
        %v1740 = vadd.f32 0.0, %v1739
        %v1741 = vpop.f32.mrf.mxu0
        %1742 = vdwg.mxu0
        %v1743 = vmul.f32 %v1717, 0.25
        %v1744 = vmul.f32 %v1740, 0.25
        %v1745 = vadd.f32 %v1743, %v1377
        %v1746 = vadd.f32 %v1744, %v1378
        %v1747 = vsel %vm1383, %v1745, -inf
        %1748 = vmax.xlane.f32.xlu0 %v1747
        %v1749 = vpop.xlane.xlu0 %1748
        %v1750 = vsel %vm1383, %v1746, -inf
        %1751 = vmax.xlane.f32.xlu0 %v1750
        %v1752 = vpop.xlane.xlu0 %1751
        %v1753 = vsub.f32 %v1745, %v1749
        %v1754 = vsub.f32 %v1746, %v1752
        %v1755 = vmul.f32 %v1753, 1.442695
        %v1756 = vpow.pop %v1755
        %v1757 = vmul.f32 %v1754, 1.442695
        %v1758 = vpow.pop %v1757
        %v1759 = vsel %vm1383, %v1756, 0.0
        %1760 = vadd.xlane.f32.xlu0 %v1759
        %v1761 = vpop.xlane.xlu0 %1760
        %v1762 = vsel %vm1383, %v1758, 0.0
        %1763 = vadd.xlane.f32.xlu0 %v1762
        %v1764 = vpop.xlane.xlu0 %1763
        %v1765 = vrcp.pop %v1761
        %v1766 = vrcp.pop %v1764
        %v1767 = vmul.f32 %v1756, %v1765
        %v1768 = vmul.f32 %v1758, %v1766
        %v1769 = vpack.c.bf16 %v1767, %v1767
        %v1770 = vpack.c.bf16 %v1768, %v1768
        %1771 = vrot.lane.b32.xlu0 %v1535, 80
        %v1772 = vpop.permute.xlu0 %1771
        %v1774 = vsel %vm1383, %v1769, 0
        %v1777 = vsel %vm1411, %v1772, 0
        %1779 = vmatpush.bf16.msra.mxu0 0
        %1780 = vmatpush.bf16.msra.mxu0 0
        %1781 = vmatpush.bf16.msra.mxu0 0
        %1782 = vmatpush.bf16.msra.mxu0 0
        %1783 = vmatpush.bf16.msra.mxu0 0
        %1784 = vmatpush.bf16.msra.mxu0 0
        %1785 = vmatpush.bf16.msra.mxu0 0
        %1786 = vmatpush.bf16.msra.mxu0 %v1777
        %1787 = vmatmul.bf16.gmra.mxu0 %v1774
        %v1788 = vpop.f32.mrf.mxu0
        %v1789 = vadd.f32 0.0, %v1788
        %v1790 = vpop.f32.mrf.mxu0
        %1791 = vdwg.mxu0
        %1792 = vrot.lane.b32.xlu0 %v1559, 80
        %v1793 = vpop.permute.xlu0 %1792
        %v1795 = vsel %vm1383, %v1770, 0
        %v1798 = vsel %vm1411, %v1793, 0
        %1800 = vmatpush.bf16.msra.mxu0 0
        %1801 = vmatpush.bf16.msra.mxu0 0
        %1802 = vmatpush.bf16.msra.mxu0 0
        %1803 = vmatpush.bf16.msra.mxu0 0
        %1804 = vmatpush.bf16.msra.mxu0 0
        %1805 = vmatpush.bf16.msra.mxu0 0
        %1806 = vmatpush.bf16.msra.mxu0 0
        %1807 = vmatpush.bf16.msra.mxu0 %v1798
        %1808 = vmatmul.bf16.gmra.mxu0 %v1795
        %v1809 = vpop.f32.mrf.mxu0
        %v1810 = vadd.f32 0.0, %v1809
        %v1811 = vpop.f32.mrf.mxu0
        %1812 = vdwg.mxu0
        %1813 = vrot.lane.b32.xlu0 %v1449, 64
        %v1814 = vpop.permute.xlu0 %1813
        %1815 = vrot.lane.b32.xlu0 %v1454, 64
        %v1816 = vpop.permute.xlu0 %1815
        %v1818 = vsel %vm1334, %v1814, 0
        %v1821 = vsel %vm1334, %v1816, 0
        %1823 = vmatpush.bf16.xpose.msra.mxu0 0
        %1824 = vmatpush.bf16.xpose.msra.mxu0 0
        %1825 = vmatpush.bf16.xpose.msra.mxu0 0
        %1826 = vmatpush.bf16.xpose.msra.mxu0 0
        %1827 = vmatpush.bf16.xpose.msra.mxu0 0
        %1828 = vmatpush.bf16.xpose.msra.mxu0 0
        %1829 = vmatpush.bf16.xpose.msra.mxu0 0
        %1830 = vmatpush.bf16.xpose.msra.mxu0 %v1821
        %1831 = vmatmul.bf16.gmra.mxu0 %v1818
        %v1832 = vpop.f32.mrf.mxu0
        %v1833 = vadd.f32 0.0, %v1832
        %v1834 = vpop.f32.mrf.mxu0
        %1835 = vdwg.mxu0
        %1836 = vrot.lane.b32.xlu0 %v1478, 64
        %v1837 = vpop.permute.xlu0 %1836
        %1838 = vrot.lane.b32.xlu0 %v1483, 64
        %v1839 = vpop.permute.xlu0 %1838
        %v1841 = vsel %vm1334, %v1837, 0
        %v1844 = vsel %vm1334, %v1839, 0
        %1846 = vmatpush.bf16.xpose.msra.mxu0 0
        %1847 = vmatpush.bf16.xpose.msra.mxu0 0
        %1848 = vmatpush.bf16.xpose.msra.mxu0 0
        %1849 = vmatpush.bf16.xpose.msra.mxu0 0
        %1850 = vmatpush.bf16.xpose.msra.mxu0 0
        %1851 = vmatpush.bf16.xpose.msra.mxu0 0
        %1852 = vmatpush.bf16.xpose.msra.mxu0 0
        %1853 = vmatpush.bf16.xpose.msra.mxu0 %v1844
        %1854 = vmatmul.bf16.gmra.mxu0 %v1841
        %v1855 = vpop.f32.mrf.mxu0
        %v1856 = vadd.f32 0.0, %v1855
        %v1857 = vpop.f32.mrf.mxu0
        %1858 = vdwg.mxu0
        %v1859 = vmul.f32 %v1833, 0.25
        %v1860 = vmul.f32 %v1856, 0.25
        %v1861 = vadd.f32 %v1859, %v1377
        %v1862 = vadd.f32 %v1860, %v1378
        %v1863 = vsel %vm1383, %v1861, -inf
        %1864 = vmax.xlane.f32.xlu0 %v1863
        %v1865 = vpop.xlane.xlu0 %1864
        %v1866 = vsel %vm1383, %v1862, -inf
        %1867 = vmax.xlane.f32.xlu0 %v1866
        %v1868 = vpop.xlane.xlu0 %1867
        %v1869 = vsub.f32 %v1861, %v1865
        %v1870 = vsub.f32 %v1862, %v1868
        %v1871 = vmul.f32 %v1869, 1.442695
        %v1872 = vpow.pop %v1871
        %v1873 = vmul.f32 %v1870, 1.442695
        %v1874 = vpow.pop %v1873
        %v1875 = vsel %vm1383, %v1872, 0.0
        %1876 = vadd.xlane.f32.xlu0 %v1875
        %v1877 = vpop.xlane.xlu0 %1876
        %v1878 = vsel %vm1383, %v1874, 0.0
        %1879 = vadd.xlane.f32.xlu0 %v1878
        %v1880 = vpop.xlane.xlu0 %1879
        %v1881 = vrcp.pop %v1877
        %v1882 = vrcp.pop %v1880
        %v1883 = vmul.f32 %v1872, %v1881
        %v1884 = vmul.f32 %v1874, %v1882
        %v1885 = vpack.c.bf16 %v1883, %v1883
        %v1886 = vpack.c.bf16 %v1884, %v1884
        %1887 = vrot.lane.b32.xlu0 %v1535, 64
        %v1888 = vpop.permute.xlu0 %1887
        %v1890 = vsel %vm1383, %v1885, 0
        %v1893 = vsel %vm1411, %v1888, 0
        %1895 = vmatpush.bf16.msra.mxu0 0
        %1896 = vmatpush.bf16.msra.mxu0 0
        %1897 = vmatpush.bf16.msra.mxu0 0
        %1898 = vmatpush.bf16.msra.mxu0 0
        %1899 = vmatpush.bf16.msra.mxu0 0
        %1900 = vmatpush.bf16.msra.mxu0 0
        %1901 = vmatpush.bf16.msra.mxu0 0
        %1902 = vmatpush.bf16.msra.mxu0 %v1893
        %1903 = vmatmul.bf16.gmra.mxu0 %v1890
        %v1904 = vpop.f32.mrf.mxu0
        %v1905 = vadd.f32 0.0, %v1904
        %v1906 = vpop.f32.mrf.mxu0
        %1907 = vdwg.mxu0
        %1908 = vrot.lane.b32.xlu0 %v1559, 64
        %v1909 = vpop.permute.xlu0 %1908
        %v1911 = vsel %vm1383, %v1886, 0
        %v1914 = vsel %vm1411, %v1909, 0
        %1916 = vmatpush.bf16.msra.mxu0 0
        %1917 = vmatpush.bf16.msra.mxu0 0
        %1918 = vmatpush.bf16.msra.mxu0 0
        %1919 = vmatpush.bf16.msra.mxu0 0
        %1920 = vmatpush.bf16.msra.mxu0 0
        %1921 = vmatpush.bf16.msra.mxu0 0
        %1922 = vmatpush.bf16.msra.mxu0 0
        %1923 = vmatpush.bf16.msra.mxu0 %v1914
        %1924 = vmatmul.bf16.gmra.mxu0 %v1911
        %v1925 = vpop.f32.mrf.mxu0
        %v1926 = vadd.f32 0.0, %v1925
        %v1927 = vpop.f32.mrf.mxu0
        %1928 = vdwg.mxu0
        %1929 = vrot.lane.b32.xlu0 %v1449, 48
        %v1930 = vpop.permute.xlu0 %1929
        %1931 = vrot.lane.b32.xlu0 %v1454, 48
        %v1932 = vpop.permute.xlu0 %1931
        %v1934 = vsel %vm1334, %v1930, 0
        %v1937 = vsel %vm1334, %v1932, 0
        %1939 = vmatpush.bf16.xpose.msra.mxu0 0
        %1940 = vmatpush.bf16.xpose.msra.mxu0 0
        %1941 = vmatpush.bf16.xpose.msra.mxu0 0
        %1942 = vmatpush.bf16.xpose.msra.mxu0 0
        %1943 = vmatpush.bf16.xpose.msra.mxu0 0
        %1944 = vmatpush.bf16.xpose.msra.mxu0 0
        %1945 = vmatpush.bf16.xpose.msra.mxu0 0
        %1946 = vmatpush.bf16.xpose.msra.mxu0 %v1937
        %1947 = vmatmul.bf16.gmra.mxu0 %v1934
        %v1948 = vpop.f32.mrf.mxu0
        %v1949 = vadd.f32 0.0, %v1948
        %v1950 = vpop.f32.mrf.mxu0
        %1951 = vdwg.mxu0
        %1952 = vrot.lane.b32.xlu0 %v1478, 48
        %v1953 = vpop.permute.xlu0 %1952
        %1954 = vrot.lane.b32.xlu0 %v1483, 48
        %v1955 = vpop.permute.xlu0 %1954
        %v1957 = vsel %vm1334, %v1953, 0
        %v1960 = vsel %vm1334, %v1955, 0
        %1962 = vmatpush.bf16.xpose.msra.mxu0 0
        %1963 = vmatpush.bf16.xpose.msra.mxu0 0
        %1964 = vmatpush.bf16.xpose.msra.mxu0 0
        %1965 = vmatpush.bf16.xpose.msra.mxu0 0
        %1966 = vmatpush.bf16.xpose.msra.mxu0 0
        %1967 = vmatpush.bf16.xpose.msra.mxu0 0
        %1968 = vmatpush.bf16.xpose.msra.mxu0 0
        %1969 = vmatpush.bf16.xpose.msra.mxu0 %v1960
        %1970 = vmatmul.bf16.gmra.mxu0 %v1957
        %v1971 = vpop.f32.mrf.mxu0
        %v1972 = vadd.f32 0.0, %v1971
        %v1973 = vpop.f32.mrf.mxu0
        %1974 = vdwg.mxu0
        %v1975 = vmul.f32 %v1949, 0.25
        %v1976 = vmul.f32 %v1972, 0.25
        %v1977 = vadd.f32 %v1975, %v1377
        %v1978 = vadd.f32 %v1976, %v1378
        %v1979 = vsel %vm1383, %v1977, -inf
        %1980 = vmax.xlane.f32.xlu0 %v1979
        %v1981 = vpop.xlane.xlu0 %1980
        %v1982 = vsel %vm1383, %v1978, -inf
        %1983 = vmax.xlane.f32.xlu0 %v1982
        %v1984 = vpop.xlane.xlu0 %1983
        %v1985 = vsub.f32 %v1977, %v1981
        %v1986 = vsub.f32 %v1978, %v1984
        %v1987 = vmul.f32 %v1985, 1.442695
        %v1988 = vpow.pop %v1987
        %v1989 = vmul.f32 %v1986, 1.442695
        %v1990 = vpow.pop %v1989
        %v1991 = vsel %vm1383, %v1988, 0.0
        %1992 = vadd.xlane.f32.xlu0 %v1991
        %v1993 = vpop.xlane.xlu0 %1992
        %v1994 = vsel %vm1383, %v1990, 0.0
        %1995 = vadd.xlane.f32.xlu0 %v1994
        %v1996 = vpop.xlane.xlu0 %1995
        %v1997 = vrcp.pop %v1993
        %v1998 = vrcp.pop %v1996
        %v1999 = vmul.f32 %v1988, %v1997
        %v2000 = vmul.f32 %v1990, %v1998
        %v2001 = vpack.c.bf16 %v1999, %v1999
        %v2002 = vpack.c.bf16 %v2000, %v2000
        %2003 = vrot.lane.b32.xlu0 %v1535, 48
        %v2004 = vpop.permute.xlu0 %2003
        %v2006 = vsel %vm1383, %v2001, 0
        %v2009 = vsel %vm1411, %v2004, 0
        %2011 = vmatpush.bf16.msra.mxu0 0
        %2012 = vmatpush.bf16.msra.mxu0 0
        %2013 = vmatpush.bf16.msra.mxu0 0
        %2014 = vmatpush.bf16.msra.mxu0 0
        %2015 = vmatpush.bf16.msra.mxu0 0
        %2016 = vmatpush.bf16.msra.mxu0 0
        %2017 = vmatpush.bf16.msra.mxu0 0
        %2018 = vmatpush.bf16.msra.mxu0 %v2009
        %2019 = vmatmul.bf16.gmra.mxu0 %v2006
        %v2020 = vpop.f32.mrf.mxu0
        %v2021 = vadd.f32 0.0, %v2020
        %v2022 = vpop.f32.mrf.mxu0
        %2023 = vdwg.mxu0
        %2024 = vrot.lane.b32.xlu0 %v1559, 48
        %v2025 = vpop.permute.xlu0 %2024
        %v2027 = vsel %vm1383, %v2002, 0
        %v2030 = vsel %vm1411, %v2025, 0
        %2032 = vmatpush.bf16.msra.mxu0 0
        %2033 = vmatpush.bf16.msra.mxu0 0
        %2034 = vmatpush.bf16.msra.mxu0 0
        %2035 = vmatpush.bf16.msra.mxu0 0
        %2036 = vmatpush.bf16.msra.mxu0 0
        %2037 = vmatpush.bf16.msra.mxu0 0
        %2038 = vmatpush.bf16.msra.mxu0 0
        %2039 = vmatpush.bf16.msra.mxu0 %v2030
        %2040 = vmatmul.bf16.gmra.mxu0 %v2027
        %v2041 = vpop.f32.mrf.mxu0
        %v2042 = vadd.f32 0.0, %v2041
        %v2043 = vpop.f32.mrf.mxu0
        %2044 = vdwg.mxu0
        %2045 = vrot.lane.b32.xlu0 %v1449, 32
        %v2046 = vpop.permute.xlu0 %2045
        %2047 = vrot.lane.b32.xlu0 %v1454, 32
        %v2048 = vpop.permute.xlu0 %2047
        %v2050 = vsel %vm1334, %v2046, 0
        %v2053 = vsel %vm1334, %v2048, 0
        %2055 = vmatpush.bf16.xpose.msra.mxu0 0
        %2056 = vmatpush.bf16.xpose.msra.mxu0 0
        %2057 = vmatpush.bf16.xpose.msra.mxu0 0
        %2058 = vmatpush.bf16.xpose.msra.mxu0 0
        %2059 = vmatpush.bf16.xpose.msra.mxu0 0
        %2060 = vmatpush.bf16.xpose.msra.mxu0 0
        %2061 = vmatpush.bf16.xpose.msra.mxu0 0
        %2062 = vmatpush.bf16.xpose.msra.mxu0 %v2053
        %2063 = vmatmul.bf16.gmra.mxu0 %v2050
        %v2064 = vpop.f32.mrf.mxu0
        %v2065 = vadd.f32 0.0, %v2064
        %v2066 = vpop.f32.mrf.mxu0
        %2067 = vdwg.mxu0
        %2068 = vrot.lane.b32.xlu0 %v1478, 32
        %v2069 = vpop.permute.xlu0 %2068
        %2070 = vrot.lane.b32.xlu0 %v1483, 32
        %v2071 = vpop.permute.xlu0 %2070
        %v2073 = vsel %vm1334, %v2069, 0
        %v2076 = vsel %vm1334, %v2071, 0
        %2078 = vmatpush.bf16.xpose.msra.mxu0 0
        %2079 = vmatpush.bf16.xpose.msra.mxu0 0
        %2080 = vmatpush.bf16.xpose.msra.mxu0 0
        %2081 = vmatpush.bf16.xpose.msra.mxu0 0
        %2082 = vmatpush.bf16.xpose.msra.mxu0 0
        %2083 = vmatpush.bf16.xpose.msra.mxu0 0
        %2084 = vmatpush.bf16.xpose.msra.mxu0 0
        %2085 = vmatpush.bf16.xpose.msra.mxu0 %v2076
        %2086 = vmatmul.bf16.gmra.mxu0 %v2073
        %v2087 = vpop.f32.mrf.mxu0
        %v2088 = vadd.f32 0.0, %v2087
        %v2089 = vpop.f32.mrf.mxu0
        %2090 = vdwg.mxu0
        %v2091 = vmul.f32 %v2065, 0.25
        %v2092 = vmul.f32 %v2088, 0.25
        %v2093 = vadd.f32 %v2091, %v1377
        %v2094 = vadd.f32 %v2092, %v1378
        %v2095 = vsel %vm1383, %v2093, -inf
        %2096 = vmax.xlane.f32.xlu0 %v2095
        %v2097 = vpop.xlane.xlu0 %2096
        %v2098 = vsel %vm1383, %v2094, -inf
        %2099 = vmax.xlane.f32.xlu0 %v2098
        %v2100 = vpop.xlane.xlu0 %2099
        %v2101 = vsub.f32 %v2093, %v2097
        %v2102 = vsub.f32 %v2094, %v2100
        %v2103 = vmul.f32 %v2101, 1.442695
        %v2104 = vpow.pop %v2103
        %v2105 = vmul.f32 %v2102, 1.442695
        %v2106 = vpow.pop %v2105
        %v2107 = vsel %vm1383, %v2104, 0.0
        %2108 = vadd.xlane.f32.xlu0 %v2107
        %v2109 = vpop.xlane.xlu0 %2108
        %v2110 = vsel %vm1383, %v2106, 0.0
        %2111 = vadd.xlane.f32.xlu0 %v2110
        %v2112 = vpop.xlane.xlu0 %2111
        %v2113 = vrcp.pop %v2109
        %v2114 = vrcp.pop %v2112
        %v2115 = vmul.f32 %v2104, %v2113
        %v2116 = vmul.f32 %v2106, %v2114
        %v2117 = vpack.c.bf16 %v2115, %v2115
        %v2118 = vpack.c.bf16 %v2116, %v2116
        %2119 = vrot.lane.b32.xlu0 %v1535, 32
        %v2120 = vpop.permute.xlu0 %2119
        %v2122 = vsel %vm1383, %v2117, 0
        %v2125 = vsel %vm1411, %v2120, 0
        %2127 = vmatpush.bf16.msra.mxu0 0
        %2128 = vmatpush.bf16.msra.mxu0 0
        %2129 = vmatpush.bf16.msra.mxu0 0
        %2130 = vmatpush.bf16.msra.mxu0 0
        %2131 = vmatpush.bf16.msra.mxu0 0
        %2132 = vmatpush.bf16.msra.mxu0 0
        %2133 = vmatpush.bf16.msra.mxu0 0
        %2134 = vmatpush.bf16.msra.mxu0 %v2125
        %2135 = vmatmul.bf16.gmra.mxu0 %v2122
        %v2136 = vpop.f32.mrf.mxu0
        %v2137 = vadd.f32 0.0, %v2136
        %v2138 = vpop.f32.mrf.mxu0
        %2139 = vdwg.mxu0
        %2140 = vrot.lane.b32.xlu0 %v1559, 32
        %v2141 = vpop.permute.xlu0 %2140
        %v2143 = vsel %vm1383, %v2118, 0
        %v2146 = vsel %vm1411, %v2141, 0
        %2148 = vmatpush.bf16.msra.mxu0 0
        %2149 = vmatpush.bf16.msra.mxu0 0
        %2150 = vmatpush.bf16.msra.mxu0 0
        %2151 = vmatpush.bf16.msra.mxu0 0
        %2152 = vmatpush.bf16.msra.mxu0 0
        %2153 = vmatpush.bf16.msra.mxu0 0
        %2154 = vmatpush.bf16.msra.mxu0 0
        %2155 = vmatpush.bf16.msra.mxu0 %v2146
        %2156 = vmatmul.bf16.gmra.mxu0 %v2143
        %v2157 = vpop.f32.mrf.mxu0
        %v2158 = vadd.f32 0.0, %v2157
        %v2159 = vpop.f32.mrf.mxu0
        %2160 = vdwg.mxu0
        %2161 = vrot.lane.b32.xlu0 %v1449, 16
        %v2162 = vpop.permute.xlu0 %2161
        %2163 = vrot.lane.b32.xlu0 %v1454, 16
        %v2164 = vpop.permute.xlu0 %2163
        %v2166 = vsel %vm1334, %v2162, 0
        %v2169 = vsel %vm1334, %v2164, 0
        %2171 = vmatpush.bf16.xpose.msra.mxu0 0
        %2172 = vmatpush.bf16.xpose.msra.mxu0 0
        %2173 = vmatpush.bf16.xpose.msra.mxu0 0
        %2174 = vmatpush.bf16.xpose.msra.mxu0 0
        %2175 = vmatpush.bf16.xpose.msra.mxu0 0
        %2176 = vmatpush.bf16.xpose.msra.mxu0 0
        %2177 = vmatpush.bf16.xpose.msra.mxu0 0
        %2178 = vmatpush.bf16.xpose.msra.mxu0 %v2169
        %2179 = vmatmul.bf16.gmra.mxu0 %v2166
        %v2180 = vpop.f32.mrf.mxu0
        %v2181 = vadd.f32 0.0, %v2180
        %v2182 = vpop.f32.mrf.mxu0
        %2183 = vdwg.mxu0
        %2184 = vrot.lane.b32.xlu0 %v1478, 16
        %v2185 = vpop.permute.xlu0 %2184
        %2186 = vrot.lane.b32.xlu0 %v1483, 16
        %v2187 = vpop.permute.xlu0 %2186
        %v2189 = vsel %vm1334, %v2185, 0
        %v2192 = vsel %vm1334, %v2187, 0
        %2194 = vmatpush.bf16.xpose.msra.mxu0 0
        %2195 = vmatpush.bf16.xpose.msra.mxu0 0
        %2196 = vmatpush.bf16.xpose.msra.mxu0 0
        %2197 = vmatpush.bf16.xpose.msra.mxu0 0
        %2198 = vmatpush.bf16.xpose.msra.mxu0 0
        %2199 = vmatpush.bf16.xpose.msra.mxu0 0
        %2200 = vmatpush.bf16.xpose.msra.mxu0 0
        %2201 = vmatpush.bf16.xpose.msra.mxu0 %v2192
        %2202 = vmatmul.bf16.gmra.mxu0 %v2189
        %v2203 = vpop.f32.mrf.mxu0
        %v2204 = vadd.f32 0.0, %v2203
        %v2205 = vpop.f32.mrf.mxu0
        %2206 = vdwg.mxu0
        %v2207 = vmul.f32 %v2181, 0.25
        %v2208 = vmul.f32 %v2204, 0.25
        %v2209 = vadd.f32 %v2207, %v1377
        %v2210 = vadd.f32 %v2208, %v1378
        %v2211 = vsel %vm1383, %v2209, -inf
        %2212 = vmax.xlane.f32.xlu0 %v2211
        %v2213 = vpop.xlane.xlu0 %2212
        %v2214 = vsel %vm1383, %v2210, -inf
        %2215 = vmax.xlane.f32.xlu0 %v2214
        %v2216 = vpop.xlane.xlu0 %2215
        %v2217 = vsub.f32 %v2209, %v2213
        %v2218 = vsub.f32 %v2210, %v2216
        %v2219 = vmul.f32 %v2217, 1.442695
        %v2220 = vpow.pop %v2219
        %v2221 = vmul.f32 %v2218, 1.442695
        %v2222 = vpow.pop %v2221
        %v2223 = vsel %vm1383, %v2220, 0.0
        %2224 = vadd.xlane.f32.xlu0 %v2223
        %v2225 = vpop.xlane.xlu0 %2224
        %v2226 = vsel %vm1383, %v2222, 0.0
        %2227 = vadd.xlane.f32.xlu0 %v2226
        %v2228 = vpop.xlane.xlu0 %2227
        %v2229 = vrcp.pop %v2225
        %v2230 = vrcp.pop %v2228
        %v2231 = vmul.f32 %v2220, %v2229
        %v2232 = vmul.f32 %v2222, %v2230
        %v2233 = vpack.c.bf16 %v2231, %v2231
        %v2234 = vpack.c.bf16 %v2232, %v2232
        %2235 = vrot.lane.b32.xlu0 %v1535, 16
        %v2236 = vpop.permute.xlu0 %2235
        %v2238 = vsel %vm1383, %v2233, 0
        %v2241 = vsel %vm1411, %v2236, 0
        %2243 = vmatpush.bf16.msra.mxu0 0
        %2244 = vmatpush.bf16.msra.mxu0 0
        %2245 = vmatpush.bf16.msra.mxu0 0
        %2246 = vmatpush.bf16.msra.mxu0 0
        %2247 = vmatpush.bf16.msra.mxu0 0
        %2248 = vmatpush.bf16.msra.mxu0 0
        %2249 = vmatpush.bf16.msra.mxu0 0
        %2250 = vmatpush.bf16.msra.mxu0 %v2241
        %2251 = vmatmul.bf16.gmra.mxu0 %v2238
        %v2252 = vpop.f32.mrf.mxu0
        %v2253 = vadd.f32 0.0, %v2252
        %v2254 = vpop.f32.mrf.mxu0
        %2255 = vdwg.mxu0
        %2256 = vrot.lane.b32.xlu0 %v1559, 16
        %v2257 = vpop.permute.xlu0 %2256
        %v2259 = vsel %vm1383, %v2234, 0
        %v2262 = vsel %vm1411, %v2257, 0
        %2264 = vmatpush.bf16.msra.mxu0 0
        %2265 = vmatpush.bf16.msra.mxu0 0
        %2266 = vmatpush.bf16.msra.mxu0 0
        %2267 = vmatpush.bf16.msra.mxu0 0
        %2268 = vmatpush.bf16.msra.mxu0 0
        %2269 = vmatpush.bf16.msra.mxu0 0
        %2270 = vmatpush.bf16.msra.mxu0 0
        %2271 = vmatpush.bf16.msra.mxu0 %v2262
        %2272 = vmatmul.bf16.gmra.mxu0 %v2259
        %v2273 = vpop.f32.mrf.mxu0
        %v2274 = vadd.f32 0.0, %v2273
        %v2275 = vpop.f32.mrf.mxu0
        %2276 = vdwg.mxu0
        %2279 = vrot.lane.b32.xlu0 %v1554, 16
        %v2280 = vpop.permute.xlu0 %2279
        %2281 = vrot.lane.b32.xlu0 %v1578, 16
        %v2282 = vpop.permute.xlu0 %2281
        %2287 = vrot.lane.b32.xlu0 %v1673, 32
        %v2288 = vpop.permute.xlu0 %2287
        %2289 = vrot.lane.b32.xlu0 %v1694, 32
        %v2290 = vpop.permute.xlu0 %2289
        %2295 = vrot.lane.b32.xlu0 %v1789, 48
        %v2296 = vpop.permute.xlu0 %2295
        %2297 = vrot.lane.b32.xlu0 %v1810, 48
        %v2298 = vpop.permute.xlu0 %2297
        %2303 = vrot.lane.b32.xlu0 %v1905, 64
        %v2304 = vpop.permute.xlu0 %2303
        %2305 = vrot.lane.b32.xlu0 %v1926, 64
        %v2306 = vpop.permute.xlu0 %2305
        %2311 = vrot.lane.b32.xlu0 %v2021, 80
        %v2312 = vpop.permute.xlu0 %2311
        %2313 = vrot.lane.b32.xlu0 %v2042, 80
        %v2314 = vpop.permute.xlu0 %2313
        %2319 = vrot.lane.b32.xlu0 %v2137, 96
        %v2320 = vpop.permute.xlu0 %2319
        %2321 = vrot.lane.b32.xlu0 %v2158, 96
        %v2322 = vpop.permute.xlu0 %2321
        %2327 = vrot.lane.b32.xlu0 %v2253, 112
        %v2328 = vpop.permute.xlu0 %2327
        %2329 = vrot.lane.b32.xlu0 %v2274, 112
        %v2330 = vpop.permute.xlu0 %2329
        %v2333 = vsel %vm1334, %v1425, %v2280
        %v2334 = vsel %vm1334, %v1444, %v2282
        %vm2335 = vcmask 261120
        %v2336 = vsel %vm2335, %v2333, %v2288
        %v2337 = vsel %vm2335, %v2334, %v2290
        %vm2338 = vcmask 392192
        %v2339 = vsel %vm2338, %v2336, %v2296
        %v2340 = vsel %vm2338, %v2337, %v2298
        %vm2341 = vcmask 523264
        %v2342 = vsel %vm2341, %v2339, %v2304
        %v2343 = vsel %vm2341, %v2340, %v2306
        %vm2344 = vcmask 654336
        %v2345 = vsel %vm2344, %v2342, %v2312
        %v2346 = vsel %vm2344, %v2343, %v2314
        %vm2347 = vcmask 785408
        %v2348 = vsel %vm2347, %v2345, %v2320
        %v2349 = vsel %vm2347, %v2346, %v2322
        %vm2350 = vcmask 916480
        %v2351 = vsel %vm2350, %v2348, %v2328
        %v2352 = vsel %vm2350, %v2349, %v2330
        %v2353 = vld [vmem:[%s863] sm:$0xf]
        %v2354 = vld [vmem:[%s863 + $0x4] sm:$0xf]
        %v2355 = vld [vmem:[%s863 + $0x8] sm:$0xf]
        %v2356 = vld [vmem:[%s863 + $0xc] sm:$0xf]
        %v2357 = vld [vmem:[%s863 + $0x10] sm:$0xf]
        %v2358 = vld [vmem:[%s863 + $0x14] sm:$0xf]
        %v2359 = vld [vmem:[%s863 + $0x18] sm:$0xf]
        %v2360 = vld [vmem:[%s863 + $0x1c] sm:$0xf]
        %v2361 = vld [vmem:[%s863 + $0x20] sm:$0xf]
        %v2362 = vld [vmem:[%s863 + $0x24] sm:$0xf]
        %v2363 = vld [vmem:[%s863 + $0x28] sm:$0xf]
        %v2364 = vld [vmem:[%s863 + $0x2c] sm:$0xf]
        %v2365 = vld [vmem:[%s863 + $0x30] sm:$0xf]
        %v2366 = vld [vmem:[%s863 + $0x34] sm:$0xf]
        %v2367 = vld [vmem:[%s863 + $0x38] sm:$0xf]
        %v2368 = vld [vmem:[%s863 + $0x3c] sm:$0xf]
        %v2369 = vpack.c.bf16 %v2352, %v2351
        %v2370 = vld [vmem:[%s1014] sm:$0x1]
        %v2372 = vperm.slane %v2370, 0
        %v2390 = vunpack.c.l.b16 %v2353
        %v2391 = vunpack.c.l.b16 %v2354
        %v2392 = vunpack.c.l.b16 %v2355
        %v2393 = vunpack.c.l.b16 %v2356
        %v2394 = vunpack.c.l.b16 %v2357
        %v2395 = vunpack.c.l.b16 %v2358
        %v2396 = vunpack.c.l.b16 %v2359
        %v2397 = vunpack.c.l.b16 %v2360
        %v2398 = vunpack.c.l.b16 %v2361
        %v2399 = vunpack.c.l.b16 %v2362
        %v2400 = vunpack.c.l.b16 %v2363
        %v2401 = vunpack.c.l.b16 %v2364
        %v2402 = vunpack.c.l.b16 %v2365
        %v2403 = vunpack.c.l.b16 %v2366
        %v2404 = vunpack.c.l.b16 %v2367
        %v2405 = vunpack.c.l.b16 %v2368
        %v2406 = vpack.c.b16 %v2391, %v2390
        %v2407 = vpack.c.b16 %v2393, %v2392
        %v2408 = vpack.c.b16 %v2395, %v2394
        %v2409 = vpack.c.b16 %v2397, %v2396
        %v2410 = vpack.c.b16 %v2399, %v2398
        %v2411 = vpack.c.b16 %v2401, %v2400
        %v2412 = vpack.c.b16 %v2403, %v2402
        %v2413 = vpack.c.b16 %v2405, %v2404
        %2422 = vmatpush.bf16.msra.mxu0 %v2413
        %2423 = vmatpush.bf16.msra.mxu0 %v2412
        %2424 = vmatpush.bf16.msra.mxu0 %v2411
        %2425 = vmatpush.bf16.msra.mxu0 %v2410
        %2426 = vmatpush.bf16.msra.mxu0 %v2409
        %2427 = vmatpush.bf16.msra.mxu0 %v2408
        %2428 = vmatpush.bf16.msra.mxu0 %v2407
        %2429 = vmatpush.bf16.msra.mxu0 %v2406
        %2430 = vmatmul.bf16.gmra.mxu0 %v2369
        %v2431 = vpop.f32.mrf.mxu0
        %v2432 = vadd.f32 %v2372, %v2431
        %v2433 = vpop.f32.mrf.mxu0
        %v2434 = vadd.f32 %v2372, %v2433
        %2435 = vdwg.mxu0
        %v2436 = vadd.f32 %v2432, %v1115
        %v2437 = vadd.f32 %v2434, %v1116
        %v2438 = vld [vmem:[%s1017] sm:$0x1]
        %v2439 = vld [vmem:[%s1020] sm:$0x1]
        %2440 = vadd.xlane.f32.xlu0 %v2436
        %v2441 = vpop.xlane.xlu0 %2440
        %2442 = vadd.xlane.f32.xlu0 %v2437
        %v2443 = vpop.xlane.xlu0 %2442
        %v2444 = vrcp.pop 128.0
        %v2445 = vmul.f32 128.0, %v2444
        %v2446 = vsub.f32 1.0, %v2445
        %v2447 = vmul.f32 %v2444, %v2446
        %v2448 = vadd.f32 %v2444, %v2447
        %vm2449 = vweird.f32 %v2444
        %v2450 = vsel %vm2449, %v2444, %v2448
        %v2451 = vmul.f32 %v2441, %v2450
        %v2452 = vmul.f32 %v2443, %v2450
        %v2453 = vmul.f32 %v2436, %v2436
        %v2454 = vmul.f32 %v2437, %v2437
        %2455 = vadd.xlane.f32.xlu0 %v2453
        %v2456 = vpop.xlane.xlu0 %2455
        %2457 = vadd.xlane.f32.xlu0 %v2454
        %v2458 = vpop.xlane.xlu0 %2457
        %v2459 = vmul.f32 %v2456, %v2450
        %v2460 = vmul.f32 %v2458, %v2450
        %v2461 = vmul.f32 %v2451, %v2451
        %v2462 = vmul.f32 %v2452, %v2452
        %v2463 = vsub.f32 %v2459, %v2461
        %v2464 = vsub.f32 %v2460, %v2462
        %v2465 = vsub.f32 %v2436, %v2451
        %v2466 = vsub.f32 %v2437, %v2452
        %v2467 = vadd.f32 %v2463, 1e-12
        %v2468 = vadd.f32 %v2464, 1e-12
        %v2469 = vrsqrt.pop %v2467
        %v2470 = vmul.f32 %v2469, %v2467
        %v2471 = vmul.f32 %v2470, %v2469
        %v2472 = vmul.f32 0.5, %v2471
        %v2473 = vsub.f32 1.5, %v2472
        %v2474 = vmul.f32 %v2469, %v2473
        %vm2475 = vweird.f32 %v2467
        %vm2476 = vweird.f32 %v2469
        %vm2477 = vmor %vm2475, %vm2476
        %v2478 = vsel %vm2477, %v2469, %v2474
        %v2479 = vrsqrt.pop %v2468
        %v2480 = vmul.f32 %v2479, %v2468
        %v2481 = vmul.f32 %v2480, %v2479
        %v2482 = vmul.f32 0.5, %v2481
        %v2483 = vsub.f32 1.5, %v2482
        %v2484 = vmul.f32 %v2479, %v2483
        %vm2485 = vweird.f32 %v2468
        %vm2486 = vweird.f32 %v2479
        %vm2487 = vmor %vm2485, %vm2486
        %v2488 = vsel %vm2487, %v2479, %v2484
        %v2489 = vmul.f32 %v2465, %v2478
        %v2490 = vmul.f32 %v2466, %v2488
        %v2492 = vperm.slane %v2438, 0
        %v2494 = vmul.f32 %v2489, %v2492
        %v2495 = vmul.f32 %v2490, %v2492
        %v2497 = vperm.slane %v2439, 0
        %v2499 = vadd.f32 %v2494, %v2497
        %v2500 = vadd.f32 %v2495, %v2497
        %v2501 = vld [vmem:[%s873] sm:$0xff]
        %v2502 = vld [vmem:[%s873 + $0x8] sm:$0xff]
        %v2503 = vld [vmem:[%s873 + $0x10] sm:$0xff]
        %v2504 = vld [vmem:[%s873 + $0x18] sm:$0xff]
        %v2505 = vld [vmem:[%s873 + $0x20] sm:$0xff]
        %v2506 = vld [vmem:[%s873 + $0x28] sm:$0xff]
        %v2507 = vld [vmem:[%s873 + $0x30] sm:$0xff]
        %v2508 = vld [vmem:[%s873 + $0x38] sm:$0xff]
        %v2509 = vld [vmem:[%s873 + $0x40] sm:$0xff]
        %v2510 = vld [vmem:[%s873 + $0x48] sm:$0xff]
        %v2511 = vld [vmem:[%s873 + $0x50] sm:$0xff]
        %v2512 = vld [vmem:[%s873 + $0x58] sm:$0xff]
        %v2513 = vld [vmem:[%s873 + $0x60] sm:$0xff]
        %v2514 = vld [vmem:[%s873 + $0x68] sm:$0xff]
        %v2515 = vld [vmem:[%s873 + $0x70] sm:$0xff]
        %v2516 = vld [vmem:[%s873 + $0x78] sm:$0xff]
        %v2517 = vpack.c.bf16 %v2500, %v2499
        %v2518 = vld [vmem:[%s1024] sm:$0x3]
        %v2520 = vperm.slane %v2518, 0
        %v2521 = vperm.slane %v2518, 1
        %v2540 = vunpack.c.l.b16 %v2501
        %v2541 = vunpack.c.h.b16 %v2501
        %v2542 = vunpack.c.l.b16 %v2502
        %v2543 = vunpack.c.h.b16 %v2502
        %v2544 = vunpack.c.l.b16 %v2503
        %v2545 = vunpack.c.h.b16 %v2503
        %v2546 = vunpack.c.l.b16 %v2504
        %v2547 = vunpack.c.h.b16 %v2504
        %v2548 = vunpack.c.l.b16 %v2505
        %v2549 = vunpack.c.h.b16 %v2505
        %v2550 = vunpack.c.l.b16 %v2506
        %v2551 = vunpack.c.h.b16 %v2506
        %v2552 = vunpack.c.l.b16 %v2507
        %v2553 = vunpack.c.h.b16 %v2507
        %v2554 = vunpack.c.l.b16 %v2508
        %v2555 = vunpack.c.h.b16 %v2508
        %v2556 = vunpack.c.l.b16 %v2509
        %v2557 = vunpack.c.h.b16 %v2509
        %v2558 = vunpack.c.l.b16 %v2510
        %v2559 = vunpack.c.h.b16 %v2510
        %v2560 = vunpack.c.l.b16 %v2511
        %v2561 = vunpack.c.h.b16 %v2511
        %v2562 = vunpack.c.l.b16 %v2512
        %v2563 = vunpack.c.h.b16 %v2512
        %v2564 = vunpack.c.l.b16 %v2513
        %v2565 = vunpack.c.h.b16 %v2513
        %v2566 = vunpack.c.l.b16 %v2514
        %v2567 = vunpack.c.h.b16 %v2514
        %v2568 = vunpack.c.l.b16 %v2515
        %v2569 = vunpack.c.h.b16 %v2515
        %v2570 = vunpack.c.l.b16 %v2516
        %v2571 = vunpack.c.h.b16 %v2516
        %v2572 = vpack.c.b16 %v2542, %v2540
        %v2573 = vpack.c.b16 %v2543, %v2541
        %v2574 = vpack.c.b16 %v2546, %v2544
        %v2575 = vpack.c.b16 %v2547, %v2545
        %v2576 = vpack.c.b16 %v2550, %v2548
        %v2577 = vpack.c.b16 %v2551, %v2549
        %v2578 = vpack.c.b16 %v2554, %v2552
        %v2579 = vpack.c.b16 %v2555, %v2553
        %v2580 = vpack.c.b16 %v2558, %v2556
        %v2581 = vpack.c.b16 %v2559, %v2557
        %v2582 = vpack.c.b16 %v2562, %v2560
        %v2583 = vpack.c.b16 %v2563, %v2561
        %v2584 = vpack.c.b16 %v2566, %v2564
        %v2585 = vpack.c.b16 %v2567, %v2565
        %v2586 = vpack.c.b16 %v2570, %v2568
        %v2587 = vpack.c.b16 %v2571, %v2569
        %2604 = vmatpush.bf16.msra.mxu0 %v2586
        %2605 = vmatpush.bf16.msra.mxu0 %v2584
        %2606 = vmatpush.bf16.msra.mxu0 %v2582
        %2607 = vmatpush.bf16.msra.mxu0 %v2580
        %2608 = vmatpush.bf16.msra.mxu0 %v2578
        %2609 = vmatpush.bf16.msra.mxu0 %v2576
        %2610 = vmatpush.bf16.msra.mxu0 %v2574
        %2611 = vmatpush.bf16.msra.mxu0 %v2572
        %2612 = vmatmul.bf16.gmra.mxu0 %v2517
        %v2613 = vpop.f32.mrf.mxu0
        %v2614 = vadd.f32 %v2520, %v2613
        %v2615 = vpop.f32.mrf.mxu0
        %v2616 = vadd.f32 %v2520, %v2615
        %2617 = vdwg.mxu0
        %2618 = vmatpush.bf16.msra.mxu0 %v2587
        %2619 = vmatpush.bf16.msra.mxu0 %v2585
        %2620 = vmatpush.bf16.msra.mxu0 %v2583
        %2621 = vmatpush.bf16.msra.mxu0 %v2581
        %2622 = vmatpush.bf16.msra.mxu0 %v2579
        %2623 = vmatpush.bf16.msra.mxu0 %v2577
        %2624 = vmatpush.bf16.msra.mxu0 %v2575
        %2625 = vmatpush.bf16.msra.mxu0 %v2573
        %2626 = vmatmul.bf16.gmra.mxu0 %v2517
        %v2627 = vpop.f32.mrf.mxu0
        %v2628 = vadd.f32 %v2521, %v2627
        %v2629 = vpop.f32.mrf.mxu0
        %v2630 = vadd.f32 %v2521, %v2629
        %2631 = vdwg.mxu0
        %v2632 = vmul.f32 %v2614, %v2614
        %v2633 = vmul.f32 %v2628, %v2628
        %v2634 = vmul.f32 %v2616, %v2616
        %v2635 = vmul.f32 %v2630, %v2630
        %v2636 = vmul.f32 %v2614, %v2632
        %v2637 = vmul.f32 %v2628, %v2633
        %v2638 = vmul.f32 %v2616, %v2634
        %v2639 = vmul.f32 %v2630, %v2635
        %v2640 = vmul.f32 %v2636, 0.044715
        %v2641 = vmul.f32 %v2637, 0.044715
        %v2642 = vmul.f32 %v2638, 0.044715
        %v2643 = vmul.f32 %v2639, 0.044715
        %v2644 = vadd.f32 %v2614, %v2640
        %v2645 = vadd.f32 %v2628, %v2641
        %v2646 = vadd.f32 %v2616, %v2642
        %v2647 = vadd.f32 %v2630, %v2643
        %v2648 = vmul.f32 %v2644, 0.7978846
        %v2649 = vmul.f32 %v2645, 0.7978846
        %v2650 = vmul.f32 %v2646, 0.7978846
        %v2651 = vmul.f32 %v2647, 0.7978846
        %v2652 = vtanh.pop %v2648
        %v2653 = vtanh.pop %v2649
        %v2654 = vtanh.pop %v2650
        %v2655 = vtanh.pop %v2651
        %v2656 = vadd.f32 %v2652, 1.0
        %v2657 = vadd.f32 %v2653, 1.0
        %v2658 = vadd.f32 %v2654, 1.0
        %v2659 = vadd.f32 %v2655, 1.0
        %v2660 = vmul.f32 %v2656, 0.5
        %v2661 = vmul.f32 %v2657, 0.5
        %v2662 = vmul.f32 %v2658, 0.5
        %v2663 = vmul.f32 %v2659, 0.5
        %v2664 = vmul.f32 %v2614, %v2660
        %v2665 = vmul.f32 %v2628, %v2661
        %v2666 = vmul.f32 %v2616, %v2662
        %v2667 = vmul.f32 %v2630, %v2663
        %v2668 = vld [vmem:[%s883] sm:$0xf]
        %v2669 = vld [vmem:[%s883 + $0x4] sm:$0xf]
        %v2670 = vld [vmem:[%s883 + $0x8] sm:$0xf]
        %v2671 = vld [vmem:[%s883 + $0xc] sm:$0xf]
        %v2672 = vld [vmem:[%s883 + $0x10] sm:$0xf]
        %v2673 = vld [vmem:[%s883 + $0x14] sm:$0xf]
        %v2674 = vld [vmem:[%s883 + $0x18] sm:$0xf]
        %v2675 = vld [vmem:[%s883 + $0x1c] sm:$0xf]
        %v2676 = vld [vmem:[%s883 + $0x20] sm:$0xf]
        %v2677 = vld [vmem:[%s883 + $0x24] sm:$0xf]
        %v2678 = vld [vmem:[%s883 + $0x28] sm:$0xf]
        %v2679 = vld [vmem:[%s883 + $0x2c] sm:$0xf]
        %v2680 = vld [vmem:[%s883 + $0x30] sm:$0xf]
        %v2681 = vld [vmem:[%s883 + $0x34] sm:$0xf]
        %v2682 = vld [vmem:[%s883 + $0x38] sm:$0xf]
        %v2683 = vld [vmem:[%s883 + $0x3c] sm:$0xf]
        %v2684 = vld [vmem:[%s883 + $0x40] sm:$0xf]
        %v2685 = vld [vmem:[%s883 + $0x44] sm:$0xf]
        %v2686 = vld [vmem:[%s883 + $0x48] sm:$0xf]
        %v2687 = vld [vmem:[%s883 + $0x4c] sm:$0xf]
        %v2688 = vld [vmem:[%s883 + $0x50] sm:$0xf]
        %v2689 = vld [vmem:[%s883 + $0x54] sm:$0xf]
        %v2690 = vld [vmem:[%s883 + $0x58] sm:$0xf]
        %v2691 = vld [vmem:[%s883 + $0x5c] sm:$0xf]
        %v2692 = vld [vmem:[%s883 + $0x60] sm:$0xf]
        %v2693 = vld [vmem:[%s883 + $0x64] sm:$0xf]
        %v2694 = vld [vmem:[%s883 + $0x68] sm:$0xf]
        %v2695 = vld [vmem:[%s883 + $0x6c] sm:$0xf]
        %v2696 = vld [vmem:[%s883 + $0x70] sm:$0xf]
        %v2697 = vld [vmem:[%s883 + $0x74] sm:$0xf]
        %v2698 = vld [vmem:[%s883 + $0x78] sm:$0xf]
        %v2699 = vld [vmem:[%s883 + $0x7c] sm:$0xf]
        %v2700 = vpack.c.bf16 %v2666, %v2664
        %v2701 = vpack.c.bf16 %v2667, %v2665
        %v2702 = vld [vmem:[%s1027] sm:$0x1]
        %v2704 = vperm.slane %v2702, 0
        %v2738 = vunpack.c.l.b16 %v2668
        %v2739 = vunpack.c.l.b16 %v2669
        %v2740 = vunpack.c.l.b16 %v2670
        %v2741 = vunpack.c.l.b16 %v2671
        %v2742 = vunpack.c.l.b16 %v2672
        %v2743 = vunpack.c.l.b16 %v2673
        %v2744 = vunpack.c.l.b16 %v2674
        %v2745 = vunpack.c.l.b16 %v2675
        %v2746 = vunpack.c.l.b16 %v2676
        %v2747 = vunpack.c.l.b16 %v2677
        %v2748 = vunpack.c.l.b16 %v2678
        %v2749 = vunpack.c.l.b16 %v2679
        %v2750 = vunpack.c.l.b16 %v2680
        %v2751 = vunpack.c.l.b16 %v2681
        %v2752 = vunpack.c.l.b16 %v2682
        %v2753 = vunpack.c.l.b16 %v2683
        %v2754 = vunpack.c.l.b16 %v2684
        %v2755 = vunpack.c.l.b16 %v2685
        %v2756 = vunpack.c.l.b16 %v2686
        %v2757 = vunpack.c.l.b16 %v2687
        %v2758 = vunpack.c.l.b16 %v2688
        %v2759 = vunpack.c.l.b16 %v2689
        %v2760 = vunpack.c.l.b16 %v2690
        %v2761 = vunpack.c.l.b16 %v2691
        %v2762 = vunpack.c.l.b16 %v2692
        %v2763 = vunpack.c.l.b16 %v2693
        %v2764 = vunpack.c.l.b16 %v2694
        %v2765 = vunpack.c.l.b16 %v2695
        %v2766 = vunpack.c.l.b16 %v2696
        %v2767 = vunpack.c.l.b16 %v2697
        %v2768 = vunpack.c.l.b16 %v2698
        %v2769 = vunpack.c.l.b16 %v2699
        %v2770 = vpack.c.b16 %v2739, %v2738
        %v2771 = vpack.c.b16 %v2741, %v2740
        %v2772 = vpack.c.b16 %v2743, %v2742
        %v2773 = vpack.c.b16 %v2745, %v2744
        %v2774 = vpack.c.b16 %v2747, %v2746
        %v2775 = vpack.c.b16 %v2749, %v2748
        %v2776 = vpack.c.b16 %v2751, %v2750
        %v2777 = vpack.c.b16 %v2753, %v2752
        %v2778 = vpack.c.b16 %v2755, %v2754
        %v2779 = vpack.c.b16 %v2757, %v2756
        %v2780 = vpack.c.b16 %v2759, %v2758
        %v2781 = vpack.c.b16 %v2761, %v2760
        %v2782 = vpack.c.b16 %v2763, %v2762
        %v2783 = vpack.c.b16 %v2765, %v2764
        %v2784 = vpack.c.b16 %v2767, %v2766
        %v2785 = vpack.c.b16 %v2769, %v2768
        %2802 = vmatpush.bf16.msra.mxu0 %v2777
        %2803 = vmatpush.bf16.msra.mxu0 %v2776
        %2804 = vmatpush.bf16.msra.mxu0 %v2775
        %2805 = vmatpush.bf16.msra.mxu0 %v2774
        %2806 = vmatpush.bf16.msra.mxu0 %v2773
        %2807 = vmatpush.bf16.msra.mxu0 %v2772
        %2808 = vmatpush.bf16.msra.mxu0 %v2771
        %2809 = vmatpush.bf16.msra.mxu0 %v2770
        %2810 = vmatmul.bf16.gmra.mxu0 %v2700
        %v2811 = vpop.f32.mrf.mxu0
        %v2812 = vadd.f32 %v2704, %v2811
        %v2813 = vpop.f32.mrf.mxu0
        %v2814 = vadd.f32 %v2704, %v2813
        %2815 = vdwg.mxu0
        %2816 = vmatpush.bf16.msra.mxu0 %v2785
        %2817 = vmatpush.bf16.msra.mxu0 %v2784
        %2818 = vmatpush.bf16.msra.mxu0 %v2783
        %2819 = vmatpush.bf16.msra.mxu0 %v2782
        %2820 = vmatpush.bf16.msra.mxu0 %v2781
        %2821 = vmatpush.bf16.msra.mxu0 %v2780
        %2822 = vmatpush.bf16.msra.mxu0 %v2779
        %2823 = vmatpush.bf16.msra.mxu0 %v2778
        %2824 = vmatmul.bf16.gmra.mxu0 %v2701
        %v2825 = vpop.f32.mrf.mxu0
        %v2826 = vadd.f32 %v2812, %v2825
        %v2827 = vpop.f32.mrf.mxu0
        %v2828 = vadd.f32 %v2814, %v2827
        %2829 = vdwg.mxu0
        %v2830 = vadd.f32 %v2826, %v2499
        %v2831 = vadd.f32 %v2828, %v2500
        %v2832 = vld [vmem:[%s1030] sm:$0x1]
        %v2833 = vld [vmem:[%s1033] sm:$0x1]
        %2834 = vadd.xlane.f32.xlu0 %v2830
        %v2835 = vpop.xlane.xlu0 %2834
        %2836 = vadd.xlane.f32.xlu0 %v2831
        %v2837 = vpop.xlane.xlu0 %2836
        %v2838 = vmul.f32 %v2835, %v2450
        %v2839 = vmul.f32 %v2837, %v2450
        %v2840 = vmul.f32 %v2830, %v2830
        %v2841 = vmul.f32 %v2831, %v2831
        %2842 = vadd.xlane.f32.xlu0 %v2840
        %v2843 = vpop.xlane.xlu0 %2842
        %2844 = vadd.xlane.f32.xlu0 %v2841
        %v2845 = vpop.xlane.xlu0 %2844
        %v2846 = vmul.f32 %v2843, %v2450
        %v2847 = vmul.f32 %v2845, %v2450
        %v2848 = vmul.f32 %v2838, %v2838
        %v2849 = vmul.f32 %v2839, %v2839
        %v2850 = vsub.f32 %v2846, %v2848
        %v2851 = vsub.f32 %v2847, %v2849
        %v2852 = vsub.f32 %v2830, %v2838
        %v2853 = vsub.f32 %v2831, %v2839
        %v2854 = vadd.f32 %v2850, 1e-12
        %v2855 = vadd.f32 %v2851, 1e-12
        %v2856 = vrsqrt.pop %v2854
        %v2857 = vmul.f32 %v2856, %v2854
        %v2858 = vmul.f32 %v2857, %v2856
        %v2859 = vmul.f32 0.5, %v2858
        %v2860 = vsub.f32 1.5, %v2859
        %v2861 = vmul.f32 %v2856, %v2860
        %vm2862 = vweird.f32 %v2854
        %vm2863 = vweird.f32 %v2856
        %vm2864 = vmor %vm2862, %vm2863
        %v2865 = vsel %vm2864, %v2856, %v2861
        %v2866 = vrsqrt.pop %v2855
        %v2867 = vmul.f32 %v2866, %v2855
        %v2868 = vmul.f32 %v2867, %v2866
        %v2869 = vmul.f32 0.5, %v2868
        %v2870 = vsub.f32 1.5, %v2869
        %v2871 = vmul.f32 %v2866, %v2870
        %vm2872 = vweird.f32 %v2855
        %vm2873 = vweird.f32 %v2866
        %vm2874 = vmor %vm2872, %vm2873
        %v2875 = vsel %vm2874, %v2866, %v2871
        %v2876 = vmul.f32 %v2852, %v2865
        %v2877 = vmul.f32 %v2853, %v2875
        %v2879 = vperm.slane %v2832, 0
        %v2881 = vmul.f32 %v2876, %v2879
        %v2882 = vmul.f32 %v2877, %v2879
        %v2884 = vperm.slane %v2833, 0
        %v2886 = vadd.f32 %v2881, %v2884
        %v2887 = vadd.f32 %v2882, %v2884
        %2888 = vst [vmem:[#allocation2] sm:$0xff] %v2886
        %2889 = vst [vmem:[#allocation2 + $0x8] sm:$0xff] %v2887
        %p2890 = scmp.eq.s32.totalorder %s49, 1
        // Predicated region
        $region137: #{text_encoder_forward.1} parent=111 // pred_check
          %p2891 = pneg %p2890
        $region138: #{text_encoder_forward.1} parent=111 // pred_check_branch
          %2893 = sbr.rel (%p2891) target = $region140
        $region139: #{text_encoder_forward.1} parent=111 // pred_region
          %v2894 = vld [vmem:[%s16] sm:$0xf]
          %v2895 = vld [vmem:[%s16 + $0x4] sm:$0xf]
          %v2896 = vld [vmem:[%s16 + $0x8] sm:$0xf]
          %v2897 = vld [vmem:[%s16 + $0xc] sm:$0xf]
          %v2898 = vld [vmem:[%s16 + $0x10] sm:$0xf]
          %v2899 = vld [vmem:[%s16 + $0x14] sm:$0xf]
          %v2900 = vld [vmem:[%s16 + $0x18] sm:$0xf]
          %v2901 = vld [vmem:[%s16 + $0x1c] sm:$0xf]
          %v2902 = vld [vmem:[%s16 + $0x20] sm:$0xf]
          %v2903 = vld [vmem:[%s16 + $0x24] sm:$0xf]
          %v2904 = vld [vmem:[%s16 + $0x28] sm:$0xf]
          %v2905 = vld [vmem:[%s16 + $0x2c] sm:$0xf]
          %v2906 = vld [vmem:[%s16 + $0x30] sm:$0xf]
          %v2907 = vld [vmem:[%s16 + $0x34] sm:$0xf]
          %v2908 = vld [vmem:[%s16 + $0x38] sm:$0xf]
          %v2909 = vld [vmem:[%s16 + $0x3c] sm:$0xf]
          %v2910 = vpack.c.bf16 %v2887, %v2886
          %v2911 = vld [vmem:[%s17] sm:$0x1]
          %v2913 = vperm.slane %v2911, 0
          %v2931 = vunpack.c.l.b16 %v2894
          %v2932 = vunpack.c.l.b16 %v2895
          %v2933 = vunpack.c.l.b16 %v2896
          %v2934 = vunpack.c.l.b16 %v2897
          %v2935 = vunpack.c.l.b16 %v2898
          %v2936 = vunpack.c.l.b16 %v2899
          %v2937 = vunpack.c.l.b16 %v2900
          %v2938 = vunpack.c.l.b16 %v2901
          %v2939 = vunpack.c.l.b16 %v2902
          %v2940 = vunpack.c.l.b16 %v2903
          %v2941 = vunpack.c.l.b16 %v2904
          %v2942 = vunpack.c.l.b16 %v2905
          %v2943 = vunpack.c.l.b16 %v2906
          %v2944 = vunpack.c.l.b16 %v2907
          %v2945 = vunpack.c.l.b16 %v2908
          %v2946 = vunpack.c.l.b16 %v2909
          %v2947 = vpack.c.b16 %v2932, %v2931
          %v2948 = vpack.c.b16 %v2934, %v2933
          %v2949 = vpack.c.b16 %v2936, %v2935
          %v2950 = vpack.c.b16 %v2938, %v2937
          %v2951 = vpack.c.b16 %v2940, %v2939
          %v2952 = vpack.c.b16 %v2942, %v2941
          %v2953 = vpack.c.b16 %v2944, %v2943
          %v2954 = vpack.c.b16 %v2946, %v2945
          %2963 = vmatpush.bf16.msra.mxu0 %v2954
          %2964 = vmatpush.bf16.msra.mxu0 %v2953
          %2965 = vmatpush.bf16.msra.mxu0 %v2952
          %2966 = vmatpush.bf16.msra.mxu0 %v2951
          %2967 = vmatpush.bf16.msra.mxu0 %v2950
          %2968 = vmatpush.bf16.msra.mxu0 %v2949
          %2969 = vmatpush.bf16.msra.mxu0 %v2948
          %2970 = vmatpush.bf16.msra.mxu0 %v2947
          %2971 = vmatmul.bf16.gmra.mxu0 %v2910
          %v2972 = vpop.f32.mrf.mxu0
          %v2973 = vadd.f32 %v2913, %v2972
          %v2974 = vpop.f32.mrf.mxu0
          %v2975 = vadd.f32 %v2913, %v2974
          %2976 = vdwg.mxu0
          %v2977 = vmul.f32 %v2973, %v2973
          %v2978 = vmul.f32 %v2975, %v2975
          %v2979 = vmul.f32 %v2973, %v2977
          %v2980 = vmul.f32 %v2975, %v2978
          %v2981 = vmul.f32 %v2979, 0.044715
          %v2982 = vmul.f32 %v2980, 0.044715
          %v2983 = vadd.f32 %v2973, %v2981
          %v2984 = vadd.f32 %v2975, %v2982
          %v2985 = vmul.f32 %v2983, 0.7978846
          %v2986 = vmul.f32 %v2984, 0.7978846
          %v2987 = vtanh.pop %v2985
          %v2988 = vtanh.pop %v2986
          %v2989 = vadd.f32 %v2987, 1.0
          %v2990 = vadd.f32 %v2988, 1.0
          %v2991 = vmul.f32 %v2989, 0.5
          %v2992 = vmul.f32 %v2990, 0.5
          %v2993 = vmul.f32 %v2973, %v2991
          %v2994 = vmul.f32 %v2975, %v2992
          %v2995 = vld [vmem:[#allocation11] sm:$0xff]
          %v2996 = vld [vmem:[#allocation11 + $0x8] sm:$0xff]
          %v2997 = vld [vmem:[#allocation11 + $0x10] sm:$0xff]
          %v2998 = vld [vmem:[#allocation11 + $0x18] sm:$0xff]
          %v2999 = vld [vmem:[#allocation11 + $0x20] sm:$0xff]
          %v3000 = vld [vmem:[#allocation11 + $0x28] sm:$0xff]
          %v3001 = vld [vmem:[#allocation11 + $0x30] sm:$0xff]
          %v3002 = vld [vmem:[#allocation11 + $0x38] sm:$0xff]
          %v3003 = vld [vmem:[#allocation11 + $0x40] sm:$0xff]
          %v3004 = vld [vmem:[#allocation11 + $0x48] sm:$0xff]
          %v3005 = vld [vmem:[#allocation11 + $0x50] sm:$0xff]
          %v3006 = vld [vmem:[#allocation11 + $0x58] sm:$0xff]
          %v3007 = vld [vmem:[#allocation11 + $0x60] sm:$0xff]
          %v3008 = vld [vmem:[#allocation11 + $0x68] sm:$0xff]
          %v3009 = vld [vmem:[#allocation11 + $0x70] sm:$0xff]
          %v3010 = vld [vmem:[#allocation11 + $0x78] sm:$0xff]
          %v3011 = vpack.c.bf16 %v2994, %v2993
          %v3012 = vld [vmem:[%s20] sm:$0x3]
          %v3014 = vperm.slane %v3012, 0
          %v3015 = vperm.slane %v3012, 1
          %v3034 = vunpack.c.l.b16 %v2995
          %v3035 = vunpack.c.h.b16 %v2995
          %v3036 = vunpack.c.l.b16 %v2996
          %v3037 = vunpack.c.h.b16 %v2996
          %v3038 = vunpack.c.l.b16 %v2997
          %v3039 = vunpack.c.h.b16 %v2997
          %v3040 = vunpack.c.l.b16 %v2998
          %v3041 = vunpack.c.h.b16 %v2998
          %v3042 = vunpack.c.l.b16 %v2999
          %v3043 = vunpack.c.h.b16 %v2999
          %v3044 = vunpack.c.l.b16 %v3000
          %v3045 = vunpack.c.h.b16 %v3000
          %v3046 = vunpack.c.l.b16 %v3001
          %v3047 = vunpack.c.h.b16 %v3001
          %v3048 = vunpack.c.l.b16 %v3002
          %v3049 = vunpack.c.h.b16 %v3002
          %v3050 = vunpack.c.l.b16 %v3003
          %v3051 = vunpack.c.h.b16 %v3003
          %v3052 = vunpack.c.l.b16 %v3004
          %v3053 = vunpack.c.h.b16 %v3004
          %v3054 = vunpack.c.l.b16 %v3005
          %v3055 = vunpack.c.h.b16 %v3005
          %v3056 = vunpack.c.l.b16 %v3006
          %v3057 = vunpack.c.h.b16 %v3006
          %v3058 = vunpack.c.l.b16 %v3007
          %v3059 = vunpack.c.h.b16 %v3007
          %v3060 = vunpack.c.l.b16 %v3008
          %v3061 = vunpack.c.h.b16 %v3008
          %v3062 = vunpack.c.l.b16 %v3009
          %v3063 = vunpack.c.h.b16 %v3009
          %v3064 = vunpack.c.l.b16 %v3010
          %v3065 = vunpack.c.h.b16 %v3010
          %v3066 = vpack.c.b16 %v3036, %v3034
          %v3067 = vpack.c.b16 %v3037, %v3035
          %v3068 = vpack.c.b16 %v3040, %v3038
          %v3069 = vpack.c.b16 %v3041, %v3039
          %v3070 = vpack.c.b16 %v3044, %v3042
          %v3071 = vpack.c.b16 %v3045, %v3043
          %v3072 = vpack.c.b16 %v3048, %v3046
          %v3073 = vpack.c.b16 %v3049, %v3047
          %v3074 = vpack.c.b16 %v3052, %v3050
          %v3075 = vpack.c.b16 %v3053, %v3051
          %v3076 = vpack.c.b16 %v3056, %v3054
          %v3077 = vpack.c.b16 %v3057, %v3055
          %v3078 = vpack.c.b16 %v3060, %v3058
          %v3079 = vpack.c.b16 %v3061, %v3059
          %v3080 = vpack.c.b16 %v3064, %v3062
          %v3081 = vpack.c.b16 %v3065, %v3063
          %3098 = vmatpush.bf16.msra.mxu0 %v3080
          %3099 = vmatpush.bf16.msra.mxu0 %v3078
          %3100 = vmatpush.bf16.msra.mxu0 %v3076
          %3101 = vmatpush.bf16.msra.mxu0 %v3074
          %3102 = vmatpush.bf16.msra.mxu0 %v3072
          %3103 = vmatpush.bf16.msra.mxu0 %v3070
          %3104 = vmatpush.bf16.msra.mxu0 %v3068
          %3105 = vmatpush.bf16.msra.mxu0 %v3066
          %3106 = vmatmul.bf16.gmra.mxu0 %v3011
          %v3107 = vpop.f32.mrf.mxu0
          %v3108 = vadd.f32 %v3014, %v3107
          %v3109 = vpop.f32.mrf.mxu0
          %v3110 = vadd.f32 %v3014, %v3109
          %3111 = vdwg.mxu0
          %3112 = vmatpush.bf16.msra.mxu0 %v3081
          %3113 = vmatpush.bf16.msra.mxu0 %v3079
          %3114 = vmatpush.bf16.msra.mxu0 %v3077
          %3115 = vmatpush.bf16.msra.mxu0 %v3075
          %3116 = vmatpush.bf16.msra.mxu0 %v3073
          %3117 = vmatpush.bf16.msra.mxu0 %v3071
          %3118 = vmatpush.bf16.msra.mxu0 %v3069
          %3119 = vmatpush.bf16.msra.mxu0 %v3067
          %3120 = vmatmul.bf16.gmra.mxu0 %v3011
          %v3121 = vpop.f32.mrf.mxu0
          %v3122 = vadd.f32 %v3015, %v3121
          %v3123 = vpop.f32.mrf.mxu0
          %v3124 = vadd.f32 %v3015, %v3123
          %3125 = vdwg.mxu0
          %v3126 = vld [vmem:[%s18] sm:$0x1]
          %v3127 = vpack.c.bf16 %v3126, %v3126
          %v3128 = vpack.c.bf16 %v3108, %v3108
          %v3129 = vpack.c.bf16 %v3110, %v3110
          %v3130 = vpack.c.bf16 %v3122, %v3122
          %v3131 = vpack.c.bf16 %v3124, %v3124
          %v3133 = vsel %vm1334, %v3127, 0
          %v3136 = vsel %vm1334, %v3128, 0
          %3138 = vmatpush.bf16.xpose.msra.mxu0 0
          %3139 = vmatpush.bf16.xpose.msra.mxu0 0
          %3140 = vmatpush.bf16.xpose.msra.mxu0 0
          %3141 = vmatpush.bf16.xpose.msra.mxu0 0
          %3142 = vmatpush.bf16.xpose.msra.mxu0 0
          %3143 = vmatpush.bf16.xpose.msra.mxu0 0
          %3144 = vmatpush.bf16.xpose.msra.mxu0 0
          %3145 = vmatpush.bf16.xpose.msra.mxu0 %v3136
          %3146 = vmatmul.bf16.gmra.mxu0 %v3133
          %v3147 = vpop.f32.mrf.mxu0
          %v3148 = vadd.f32 0.0, %v3147
          %v3149 = vpop.f32.mrf.mxu0
          %3150 = vdwg.mxu0
          %v3152 = vsel %vm1334, %v3129, 0
          %3154 = vmatpush.bf16.xpose.msra.mxu0 0
          %3155 = vmatpush.bf16.xpose.msra.mxu0 0
          %3156 = vmatpush.bf16.xpose.msra.mxu0 0
          %3157 = vmatpush.bf16.xpose.msra.mxu0 0
          %3158 = vmatpush.bf16.xpose.msra.mxu0 0
          %3159 = vmatpush.bf16.xpose.msra.mxu0 0
          %3160 = vmatpush.bf16.xpose.msra.mxu0 0
          %3161 = vmatpush.bf16.xpose.msra.mxu0 %v3152
          %3162 = vmatmul.bf16.gmra.mxu0 %v3133
          %v3163 = vpop.f32.mrf.mxu0
          %v3164 = vadd.f32 0.0, %v3163
          %v3165 = vpop.f32.mrf.mxu0
          %3166 = vdwg.mxu0
          %v3167 = vmul.f32 %v3148, 0.25
          %v3168 = vmul.f32 %v3164, 0.25
          %v3169 = vadd.f32 %v3167, %v1040
          %v3170 = vadd.f32 %v3168, %v1041
          %vm3171 = vcmask 57344
          %v3172 = vsel %vm3171, %v3169, -inf
          %3173 = vmax.xlane.f32.xlu0 %v3172
          %v3174 = vpop.xlane.xlu0 %3173
          %v3175 = vsel %vm3171, %v3170, -inf
          %3176 = vmax.xlane.f32.xlu0 %v3175
          %v3177 = vpop.xlane.xlu0 %3176
          %v3178 = vsub.f32 %v3169, %v3174
          %v3179 = vsub.f32 %v3170, %v3177
          %v3180 = vmul.f32 %v3178, 1.442695
          %v3181 = vpow.pop %v3180
          %v3182 = vmul.f32 %v3179, 1.442695
          %v3183 = vpow.pop %v3182
          %v3184 = vsel %vm3171, %v3181, 0.0
          %3185 = vadd.xlane.f32.xlu0 %v3184
          %v3186 = vpop.xlane.xlu0 %3185
          %v3187 = vsel %vm3171, %v3183, 0.0
          %3188 = vadd.xlane.f32.xlu0 %v3187
          %v3189 = vpop.xlane.xlu0 %3188
          %v3190 = vrcp.pop %v3186
          %v3191 = vrcp.pop %v3189
          %v3192 = vmul.f32 %v3181, %v3190
          %v3193 = vmul.f32 %v3183, %v3191
          %v3194 = vpack.c.bf16 %v3192, %v3192
          %v3195 = vpack.c.bf16 %v3193, %v3193
          %v3197 = vsel %vm1383, %v3194, 0
          %v3200 = vsel %vm1411, %v3130, 0
          %3202 = vmatpush.bf16.msra.mxu0 0
          %3203 = vmatpush.bf16.msra.mxu0 0
          %3204 = vmatpush.bf16.msra.mxu0 0
          %3205 = vmatpush.bf16.msra.mxu0 0
          %3206 = vmatpush.bf16.msra.mxu0 0
          %3207 = vmatpush.bf16.msra.mxu0 0
          %3208 = vmatpush.bf16.msra.mxu0 0
          %3209 = vmatpush.bf16.msra.mxu0 %v3200
          %3210 = vmatmul.bf16.gmra.mxu0 %v3197
          %v3211 = vpop.f32.mrf.mxu0
          %v3212 = vadd.f32 0.0, %v3211
          %v3213 = vpop.f32.mrf.mxu0
          %3214 = vdwg.mxu0
          %v3216 = vsel %vm1383, %v3195, 0
          %v3219 = vsel %vm1411, %v3131, 0
          %3221 = vmatpush.bf16.msra.mxu0 0
          %3222 = vmatpush.bf16.msra.mxu0 0
          %3223 = vmatpush.bf16.msra.mxu0 0
          %3224 = vmatpush.bf16.msra.mxu0 0
          %3225 = vmatpush.bf16.msra.mxu0 0
          %3226 = vmatpush.bf16.msra.mxu0 0
          %3227 = vmatpush.bf16.msra.mxu0 0
          %3228 = vmatpush.bf16.msra.mxu0 %v3219
          %3229 = vmatmul.bf16.gmra.mxu0 %v3216
          %v3230 = vpop.f32.mrf.mxu0
          %v3231 = vadd.f32 0.0, %v3230
          %v3232 = vpop.f32.mrf.mxu0
          %3233 = vdwg.mxu0
          %v3235 = vunpack.c.l.b16 %v3127
          %v3236 = vpack.c.b16 %v3235, %v3235
          %3237 = vrot.lane.b32.xlu0 %v3236, 112
          %v3238 = vpop.permute.xlu0 %3237
          %v3240 = vunpack.c.l.b16 %v3128
          %v3241 = vpack.c.b16 %v3240, %v3240
          %3242 = vrot.lane.b32.xlu0 %v3241, 112
          %v3243 = vpop.permute.xlu0 %3242
          %v3245 = vsel %vm1334, %v3238, 0
          %v3248 = vsel %vm1334, %v3243, 0
          %3250 = vmatpush.bf16.xpose.msra.mxu0 0
          %3251 = vmatpush.bf16.xpose.msra.mxu0 0
          %3252 = vmatpush.bf16.xpose.msra.mxu0 0
          %3253 = vmatpush.bf16.xpose.msra.mxu0 0
          %3254 = vmatpush.bf16.xpose.msra.mxu0 0
          %3255 = vmatpush.bf16.xpose.msra.mxu0 0
          %3256 = vmatpush.bf16.xpose.msra.mxu0 0
          %3257 = vmatpush.bf16.xpose.msra.mxu0 %v3248
          %3258 = vmatmul.bf16.gmra.mxu0 %v3245
          %v3259 = vpop.f32.mrf.mxu0
          %v3260 = vadd.f32 0.0, %v3259
          %v3261 = vpop.f32.mrf.mxu0
          %3262 = vdwg.mxu0
          %v3264 = vunpack.c.l.b16 %v3129
          %v3265 = vpack.c.b16 %v3264, %v3264
          %3266 = vrot.lane.b32.xlu0 %v3265, 112
          %v3267 = vpop.permute.xlu0 %3266
          %v3269 = vsel %vm1334, %v3267, 0
          %3271 = vmatpush.bf16.xpose.msra.mxu0 0
          %3272 = vmatpush.bf16.xpose.msra.mxu0 0
          %3273 = vmatpush.bf16.xpose.msra.mxu0 0
          %3274 = vmatpush.bf16.xpose.msra.mxu0 0
          %3275 = vmatpush.bf16.xpose.msra.mxu0 0
          %3276 = vmatpush.bf16.xpose.msra.mxu0 0
          %3277 = vmatpush.bf16.xpose.msra.mxu0 0
          %3278 = vmatpush.bf16.xpose.msra.mxu0 %v3269
          %3279 = vmatmul.bf16.gmra.mxu0 %v3245
          %v3280 = vpop.f32.mrf.mxu0
          %v3281 = vadd.f32 0.0, %v3280
          %v3282 = vpop.f32.mrf.mxu0
          %3283 = vdwg.mxu0
          %v3284 = vmul.f32 %v3260, 0.25
          %v3285 = vmul.f32 %v3281, 0.25
          %v3286 = vadd.f32 %v3284, %v1040
          %v3287 = vadd.f32 %v3285, %v1041
          %v3288 = vsel %vm3171, %v3286, -inf
          %3289 = vmax.xlane.f32.xlu0 %v3288
          %v3290 = vpop.xlane.xlu0 %3289
          %v3291 = vsel %vm3171, %v3287, -inf
          %3292 = vmax.xlane.f32.xlu0 %v3291
          %v3293 = vpop.xlane.xlu0 %3292
          %v3294 = vsub.f32 %v3286, %v3290
          %v3295 = vsub.f32 %v3287, %v3293
          %v3296 = vmul.f32 %v3294, 1.442695
          %v3297 = vpow.pop %v3296
          %v3298 = vmul.f32 %v3295, 1.442695
          %v3299 = vpow.pop %v3298
          %v3300 = vsel %vm3171, %v3297, 0.0
          %3301 = vadd.xlane.f32.xlu0 %v3300
          %v3302 = vpop.xlane.xlu0 %3301
          %v3303 = vsel %vm3171, %v3299, 0.0
          %3304 = vadd.xlane.f32.xlu0 %v3303
          %v3305 = vpop.xlane.xlu0 %3304
          %v3306 = vrcp.pop %v3302
          %v3307 = vrcp.pop %v3305
          %v3308 = vmul.f32 %v3297, %v3306
          %v3309 = vmul.f32 %v3299, %v3307
          %v3310 = vpack.c.bf16 %v3308, %v3308
          %v3311 = vpack.c.bf16 %v3309, %v3309
          %v3313 = vunpack.c.l.b16 %v3130
          %v3314 = vpack.c.b16 %v3313, %v3313
          %3315 = vrot.lane.b32.xlu0 %v3314, 112
          %v3316 = vpop.permute.xlu0 %3315
          %v3318 = vsel %vm1383, %v3310, 0
          %v3321 = vsel %vm1411, %v3316, 0
          %3323 = vmatpush.bf16.msra.mxu0 0
          %3324 = vmatpush.bf16.msra.mxu0 0
          %3325 = vmatpush.bf16.msra.mxu0 0
          %3326 = vmatpush.bf16.msra.mxu0 0
          %3327 = vmatpush.bf16.msra.mxu0 0
          %3328 = vmatpush.bf16.msra.mxu0 0
          %3329 = vmatpush.bf16.msra.mxu0 0
          %3330 = vmatpush.bf16.msra.mxu0 %v3321
          %3331 = vmatmul.bf16.gmra.mxu0 %v3318
          %v3332 = vpop.f32.mrf.mxu0
          %v3333 = vadd.f32 0.0, %v3332
          %v3334 = vpop.f32.mrf.mxu0
          %3335 = vdwg.mxu0
          %v3337 = vunpack.c.l.b16 %v3131
          %v3338 = vpack.c.b16 %v3337, %v3337
          %3339 = vrot.lane.b32.xlu0 %v3338, 112
          %v3340 = vpop.permute.xlu0 %3339
          %v3342 = vsel %vm1383, %v3311, 0
          %v3345 = vsel %vm1411, %v3340, 0
          %3347 = vmatpush.bf16.msra.mxu0 0
          %3348 = vmatpush.bf16.msra.mxu0 0
          %3349 = vmatpush.bf16.msra.mxu0 0
          %3350 = vmatpush.bf16.msra.mxu0 0
          %3351 = vmatpush.bf16.msra.mxu0 0
          %3352 = vmatpush.bf16.msra.mxu0 0
          %3353 = vmatpush.bf16.msra.mxu0 0
          %3354 = vmatpush.bf16.msra.mxu0 %v3345
          %3355 = vmatmul.bf16.gmra.mxu0 %v3342
          %v3356 = vpop.f32.mrf.mxu0
          %v3357 = vadd.f32 0.0, %v3356
          %v3358 = vpop.f32.mrf.mxu0
          %3359 = vdwg.mxu0
          %3360 = vrot.lane.b32.xlu0 %v3236, 96
          %v3361 = vpop.permute.xlu0 %3360
          %3362 = vrot.lane.b32.xlu0 %v3241, 96
          %v3363 = vpop.permute.xlu0 %3362
          %v3365 = vsel %vm1334, %v3361, 0
          %v3368 = vsel %vm1334, %v3363, 0
          %3370 = vmatpush.bf16.xpose.msra.mxu0 0
          %3371 = vmatpush.bf16.xpose.msra.mxu0 0
          %3372 = vmatpush.bf16.xpose.msra.mxu0 0
          %3373 = vmatpush.bf16.xpose.msra.mxu0 0
          %3374 = vmatpush.bf16.xpose.msra.mxu0 0
          %3375 = vmatpush.bf16.xpose.msra.mxu0 0
          %3376 = vmatpush.bf16.xpose.msra.mxu0 0
          %3377 = vmatpush.bf16.xpose.msra.mxu0 %v3368
          %3378 = vmatmul.bf16.gmra.mxu0 %v3365
          %v3379 = vpop.f32.mrf.mxu0
          %v3380 = vadd.f32 0.0, %v3379
          %v3381 = vpop.f32.mrf.mxu0
          %3382 = vdwg.mxu0
          %3383 = vrot.lane.b32.xlu0 %v3265, 96
          %v3384 = vpop.permute.xlu0 %3383
          %v3386 = vsel %vm1334, %v3384, 0
          %3388 = vmatpush.bf16.xpose.msra.mxu0 0
          %3389 = vmatpush.bf16.xpose.msra.mxu0 0
          %3390 = vmatpush.bf16.xpose.msra.mxu0 0
          %3391 = vmatpush.bf16.xpose.msra.mxu0 0
          %3392 = vmatpush.bf16.xpose.msra.mxu0 0
          %3393 = vmatpush.bf16.xpose.msra.mxu0 0
          %3394 = vmatpush.bf16.xpose.msra.mxu0 0
          %3395 = vmatpush.bf16.xpose.msra.mxu0 %v3386
          %3396 = vmatmul.bf16.gmra.mxu0 %v3365
          %v3397 = vpop.f32.mrf.mxu0
          %v3398 = vadd.f32 0.0, %v3397
          %v3399 = vpop.f32.mrf.mxu0
          %3400 = vdwg.mxu0
          %v3401 = vmul.f32 %v3380, 0.25
          %v3402 = vmul.f32 %v3398, 0.25
          %v3403 = vadd.f32 %v3401, %v1040
          %v3404 = vadd.f32 %v3402, %v1041
          %v3405 = vsel %vm3171, %v3403, -inf
          %3406 = vmax.xlane.f32.xlu0 %v3405
          %v3407 = vpop.xlane.xlu0 %3406
          %v3408 = vsel %vm3171, %v3404, -inf
          %3409 = vmax.xlane.f32.xlu0 %v3408
          %v3410 = vpop.xlane.xlu0 %3409
          %v3411 = vsub.f32 %v3403, %v3407
          %v3412 = vsub.f32 %v3404, %v3410
          %v3413 = vmul.f32 %v3411, 1.442695
          %v3414 = vpow.pop %v3413
          %v3415 = vmul.f32 %v3412, 1.442695
          %v3416 = vpow.pop %v3415
          %v3417 = vsel %vm3171, %v3414, 0.0
          %3418 = vadd.xlane.f32.xlu0 %v3417
          %v3419 = vpop.xlane.xlu0 %3418
          %v3420 = vsel %vm3171, %v3416, 0.0
          %3421 = vadd.xlane.f32.xlu0 %v3420
          %v3422 = vpop.xlane.xlu0 %3421
          %v3423 = vrcp.pop %v3419
          %v3424 = vrcp.pop %v3422
          %v3425 = vmul.f32 %v3414, %v3423
          %v3426 = vmul.f32 %v3416, %v3424
          %v3427 = vpack.c.bf16 %v3425, %v3425
          %v3428 = vpack.c.bf16 %v3426, %v3426
          %3429 = vrot.lane.b32.xlu0 %v3314, 96
          %v3430 = vpop.permute.xlu0 %3429
          %v3432 = vsel %vm1383, %v3427, 0
          %v3435 = vsel %vm1411, %v3430, 0
          %3437 = vmatpush.bf16.msra.mxu0 0
          %3438 = vmatpush.bf16.msra.mxu0 0
          %3439 = vmatpush.bf16.msra.mxu0 0
          %3440 = vmatpush.bf16.msra.mxu0 0
          %3441 = vmatpush.bf16.msra.mxu0 0
          %3442 = vmatpush.bf16.msra.mxu0 0
          %3443 = vmatpush.bf16.msra.mxu0 0
          %3444 = vmatpush.bf16.msra.mxu0 %v3435
          %3445 = vmatmul.bf16.gmra.mxu0 %v3432
          %v3446 = vpop.f32.mrf.mxu0
          %v3447 = vadd.f32 0.0, %v3446
          %v3448 = vpop.f32.mrf.mxu0
          %3449 = vdwg.mxu0
          %3450 = vrot.lane.b32.xlu0 %v3338, 96
          %v3451 = vpop.permute.xlu0 %3450
          %v3453 = vsel %vm1383, %v3428, 0
          %v3456 = vsel %vm1411, %v3451, 0
          %3458 = vmatpush.bf16.msra.mxu0 0
          %3459 = vmatpush.bf16.msra.mxu0 0
          %3460 = vmatpush.bf16.msra.mxu0 0
          %3461 = vmatpush.bf16.msra.mxu0 0
          %3462 = vmatpush.bf16.msra.mxu0 0
          %3463 = vmatpush.bf16.msra.mxu0 0
          %3464 = vmatpush.bf16.msra.mxu0 0
          %3465 = vmatpush.bf16.msra.mxu0 %v3456
          %3466 = vmatmul.bf16.gmra.mxu0 %v3453
          %v3467 = vpop.f32.mrf.mxu0
          %v3468 = vadd.f32 0.0, %v3467
          %v3469 = vpop.f32.mrf.mxu0
          %3470 = vdwg.mxu0
          %3471 = vrot.lane.b32.xlu0 %v3236, 80
          %v3472 = vpop.permute.xlu0 %3471
          %3473 = vrot.lane.b32.xlu0 %v3241, 80
          %v3474 = vpop.permute.xlu0 %3473
          %v3476 = vsel %vm1334, %v3472, 0
          %v3479 = vsel %vm1334, %v3474, 0
          %3481 = vmatpush.bf16.xpose.msra.mxu0 0
          %3482 = vmatpush.bf16.xpose.msra.mxu0 0
          %3483 = vmatpush.bf16.xpose.msra.mxu0 0
          %3484 = vmatpush.bf16.xpose.msra.mxu0 0
          %3485 = vmatpush.bf16.xpose.msra.mxu0 0
          %3486 = vmatpush.bf16.xpose.msra.mxu0 0
          %3487 = vmatpush.bf16.xpose.msra.mxu0 0
          %3488 = vmatpush.bf16.xpose.msra.mxu0 %v3479
          %3489 = vmatmul.bf16.gmra.mxu0 %v3476
          %v3490 = vpop.f32.mrf.mxu0
          %v3491 = vadd.f32 0.0, %v3490
          %v3492 = vpop.f32.mrf.mxu0
          %3493 = vdwg.mxu0
          %3494 = vrot.lane.b32.xlu0 %v3265, 80
          %v3495 = vpop.permute.xlu0 %3494
          %v3497 = vsel %vm1334, %v3495, 0
          %3499 = vmatpush.bf16.xpose.msra.mxu0 0
          %3500 = vmatpush.bf16.xpose.msra.mxu0 0
          %3501 = vmatpush.bf16.xpose.msra.mxu0 0
          %3502 = vmatpush.bf16.xpose.msra.mxu0 0
          %3503 = vmatpush.bf16.xpose.msra.mxu0 0
          %3504 = vmatpush.bf16.xpose.msra.mxu0 0
          %3505 = vmatpush.bf16.xpose.msra.mxu0 0
          %3506 = vmatpush.bf16.xpose.msra.mxu0 %v3497
          %3507 = vmatmul.bf16.gmra.mxu0 %v3476
          %v3508 = vpop.f32.mrf.mxu0
          %v3509 = vadd.f32 0.0, %v3508
          %v3510 = vpop.f32.mrf.mxu0
          %3511 = vdwg.mxu0
          %v3512 = vmul.f32 %v3491, 0.25
          %v3513 = vmul.f32 %v3509, 0.25
          %v3514 = vadd.f32 %v3512, %v1040
          %v3515 = vadd.f32 %v3513, %v1041
          %v3516 = vsel %vm3171, %v3514, -inf
          %3517 = vmax.xlane.f32.xlu0 %v3516
          %v3518 = vpop.xlane.xlu0 %3517
          %v3519 = vsel %vm3171, %v3515, -inf
          %3520 = vmax.xlane.f32.xlu0 %v3519
          %v3521 = vpop.xlane.xlu0 %3520
          %v3522 = vsub.f32 %v3514, %v3518
          %v3523 = vsub.f32 %v3515, %v3521
          %v3524 = vmul.f32 %v3522, 1.442695
          %v3525 = vpow.pop %v3524
          %v3526 = vmul.f32 %v3523, 1.442695
          %v3527 = vpow.pop %v3526
          %v3528 = vsel %vm3171, %v3525, 0.0
          %3529 = vadd.xlane.f32.xlu0 %v3528
          %v3530 = vpop.xlane.xlu0 %3529
          %v3531 = vsel %vm3171, %v3527, 0.0
          %3532 = vadd.xlane.f32.xlu0 %v3531
          %v3533 = vpop.xlane.xlu0 %3532
          %v3534 = vrcp.pop %v3530
          %v3535 = vrcp.pop %v3533
          %v3536 = vmul.f32 %v3525, %v3534
          %v3537 = vmul.f32 %v3527, %v3535
          %v3538 = vpack.c.bf16 %v3536, %v3536
          %v3539 = vpack.c.bf16 %v3537, %v3537
          %3540 = vrot.lane.b32.xlu0 %v3314, 80
          %v3541 = vpop.permute.xlu0 %3540
          %v3543 = vsel %vm1383, %v3538, 0
          %v3546 = vsel %vm1411, %v3541, 0
          %3548 = vmatpush.bf16.msra.mxu0 0
          %3549 = vmatpush.bf16.msra.mxu0 0
          %3550 = vmatpush.bf16.msra.mxu0 0
          %3551 = vmatpush.bf16.msra.mxu0 0
          %3552 = vmatpush.bf16.msra.mxu0 0
          %3553 = vmatpush.bf16.msra.mxu0 0
          %3554 = vmatpush.bf16.msra.mxu0 0
          %3555 = vmatpush.bf16.msra.mxu0 %v3546
          %3556 = vmatmul.bf16.gmra.mxu0 %v3543
          %v3557 = vpop.f32.mrf.mxu0
          %v3558 = vadd.f32 0.0, %v3557
          %v3559 = vpop.f32.mrf.mxu0
          %3560 = vdwg.mxu0
          %3561 = vrot.lane.b32.xlu0 %v3338, 80
          %v3562 = vpop.permute.xlu0 %3561
          %v3564 = vsel %vm1383, %v3539, 0
          %v3567 = vsel %vm1411, %v3562, 0
          %3569 = vmatpush.bf16.msra.mxu0 0
          %3570 = vmatpush.bf16.msra.mxu0 0
          %3571 = vmatpush.bf16.msra.mxu0 0
          %3572 = vmatpush.bf16.msra.mxu0 0
          %3573 = vmatpush.bf16.msra.mxu0 0
          %3574 = vmatpush.bf16.msra.mxu0 0
          %3575 = vmatpush.bf16.msra.mxu0 0
          %3576 = vmatpush.bf16.msra.mxu0 %v3567
          %3577 = vmatmul.bf16.gmra.mxu0 %v3564
          %v3578 = vpop.f32.mrf.mxu0
          %v3579 = vadd.f32 0.0, %v3578
          %v3580 = vpop.f32.mrf.mxu0
          %3581 = vdwg.mxu0
          %3582 = vrot.lane.b32.xlu0 %v3236, 64
          %v3583 = vpop.permute.xlu0 %3582
          %3584 = vrot.lane.b32.xlu0 %v3241, 64
          %v3585 = vpop.permute.xlu0 %3584
          %v3587 = vsel %vm1334, %v3583, 0
          %v3590 = vsel %vm1334, %v3585, 0
          %3592 = vmatpush.bf16.xpose.msra.mxu0 0
          %3593 = vmatpush.bf16.xpose.msra.mxu0 0
          %3594 = vmatpush.bf16.xpose.msra.mxu0 0
          %3595 = vmatpush.bf16.xpose.msra.mxu0 0
          %3596 = vmatpush.bf16.xpose.msra.mxu0 0
          %3597 = vmatpush.bf16.xpose.msra.mxu0 0
          %3598 = vmatpush.bf16.xpose.msra.mxu0 0
          %3599 = vmatpush.bf16.xpose.msra.mxu0 %v3590
          %3600 = vmatmul.bf16.gmra.mxu0 %v3587
          %v3601 = vpop.f32.mrf.mxu0
          %v3602 = vadd.f32 0.0, %v3601
          %v3603 = vpop.f32.mrf.mxu0
          %3604 = vdwg.mxu0
          %3605 = vrot.lane.b32.xlu0 %v3265, 64
          %v3606 = vpop.permute.xlu0 %3605
          %v3608 = vsel %vm1334, %v3606, 0
          %3610 = vmatpush.bf16.xpose.msra.mxu0 0
          %3611 = vmatpush.bf16.xpose.msra.mxu0 0
          %3612 = vmatpush.bf16.xpose.msra.mxu0 0
          %3613 = vmatpush.bf16.xpose.msra.mxu0 0
          %3614 = vmatpush.bf16.xpose.msra.mxu0 0
          %3615 = vmatpush.bf16.xpose.msra.mxu0 0
          %3616 = vmatpush.bf16.xpose.msra.mxu0 0
          %3617 = vmatpush.bf16.xpose.msra.mxu0 %v3608
          %3618 = vmatmul.bf16.gmra.mxu0 %v3587
          %v3619 = vpop.f32.mrf.mxu0
          %v3620 = vadd.f32 0.0, %v3619
          %v3621 = vpop.f32.mrf.mxu0
          %3622 = vdwg.mxu0
          %v3623 = vmul.f32 %v3602, 0.25
          %v3624 = vmul.f32 %v3620, 0.25
          %v3625 = vadd.f32 %v3623, %v1040
          %v3626 = vadd.f32 %v3624, %v1041
          %v3627 = vsel %vm3171, %v3625, -inf
          %3628 = vmax.xlane.f32.xlu0 %v3627
          %v3629 = vpop.xlane.xlu0 %3628
          %v3630 = vsel %vm3171, %v3626, -inf
          %3631 = vmax.xlane.f32.xlu0 %v3630
          %v3632 = vpop.xlane.xlu0 %3631
          %v3633 = vsub.f32 %v3625, %v3629
          %v3634 = vsub.f32 %v3626, %v3632
          %v3635 = vmul.f32 %v3633, 1.442695
          %v3636 = vpow.pop %v3635
          %v3637 = vmul.f32 %v3634, 1.442695
          %v3638 = vpow.pop %v3637
          %v3639 = vsel %vm3171, %v3636, 0.0
          %3640 = vadd.xlane.f32.xlu0 %v3639
          %v3641 = vpop.xlane.xlu0 %3640
          %v3642 = vsel %vm3171, %v3638, 0.0
          %3643 = vadd.xlane.f32.xlu0 %v3642
          %v3644 = vpop.xlane.xlu0 %3643
          %v3645 = vrcp.pop %v3641
          %v3646 = vrcp.pop %v3644
          %v3647 = vmul.f32 %v3636, %v3645
          %v3648 = vmul.f32 %v3638, %v3646
          %v3649 = vpack.c.bf16 %v3647, %v3647
          %v3650 = vpack.c.bf16 %v3648, %v3648
          %3651 = vrot.lane.b32.xlu0 %v3314, 64
          %v3652 = vpop.permute.xlu0 %3651
          %v3654 = vsel %vm1383, %v3649, 0
          %v3657 = vsel %vm1411, %v3652, 0
          %3659 = vmatpush.bf16.msra.mxu0 0
          %3660 = vmatpush.bf16.msra.mxu0 0
          %3661 = vmatpush.bf16.msra.mxu0 0
          %3662 = vmatpush.bf16.msra.mxu0 0
          %3663 = vmatpush.bf16.msra.mxu0 0
          %3664 = vmatpush.bf16.msra.mxu0 0
          %3665 = vmatpush.bf16.msra.mxu0 0
          %3666 = vmatpush.bf16.msra.mxu0 %v3657
          %3667 = vmatmul.bf16.gmra.mxu0 %v3654
          %v3668 = vpop.f32.mrf.mxu0
          %v3669 = vadd.f32 0.0, %v3668
          %v3670 = vpop.f32.mrf.mxu0
          %3671 = vdwg.mxu0
          %3672 = vrot.lane.b32.xlu0 %v3338, 64
          %v3673 = vpop.permute.xlu0 %3672
          %v3675 = vsel %vm1383, %v3650, 0
          %v3678 = vsel %vm1411, %v3673, 0
          %3680 = vmatpush.bf16.msra.mxu0 0
          %3681 = vmatpush.bf16.msra.mxu0 0
          %3682 = vmatpush.bf16.msra.mxu0 0
          %3683 = vmatpush.bf16.msra.mxu0 0
          %3684 = vmatpush.bf16.msra.mxu0 0
          %3685 = vmatpush.bf16.msra.mxu0 0
          %3686 = vmatpush.bf16.msra.mxu0 0
          %3687 = vmatpush.bf16.msra.mxu0 %v3678
          %3688 = vmatmul.bf16.gmra.mxu0 %v3675
          %v3689 = vpop.f32.mrf.mxu0
          %v3690 = vadd.f32 0.0, %v3689
          %v3691 = vpop.f32.mrf.mxu0
          %3692 = vdwg.mxu0
          %3693 = vrot.lane.b32.xlu0 %v3236, 48
          %v3694 = vpop.permute.xlu0 %3693
          %3695 = vrot.lane.b32.xlu0 %v3241, 48
          %v3696 = vpop.permute.xlu0 %3695
          %v3698 = vsel %vm1334, %v3694, 0
          %v3701 = vsel %vm1334, %v3696, 0
          %3703 = vmatpush.bf16.xpose.msra.mxu0 0
          %3704 = vmatpush.bf16.xpose.msra.mxu0 0
          %3705 = vmatpush.bf16.xpose.msra.mxu0 0
          %3706 = vmatpush.bf16.xpose.msra.mxu0 0
          %3707 = vmatpush.bf16.xpose.msra.mxu0 0
          %3708 = vmatpush.bf16.xpose.msra.mxu0 0
          %3709 = vmatpush.bf16.xpose.msra.mxu0 0
          %3710 = vmatpush.bf16.xpose.msra.mxu0 %v3701
          %3711 = vmatmul.bf16.gmra.mxu0 %v3698
          %v3712 = vpop.f32.mrf.mxu0
          %v3713 = vadd.f32 0.0, %v3712
          %v3714 = vpop.f32.mrf.mxu0
          %3715 = vdwg.mxu0
          %3716 = vrot.lane.b32.xlu0 %v3265, 48
          %v3717 = vpop.permute.xlu0 %3716
          %v3719 = vsel %vm1334, %v3717, 0
          %3721 = vmatpush.bf16.xpose.msra.mxu0 0
          %3722 = vmatpush.bf16.xpose.msra.mxu0 0
          %3723 = vmatpush.bf16.xpose.msra.mxu0 0
          %3724 = vmatpush.bf16.xpose.msra.mxu0 0
          %3725 = vmatpush.bf16.xpose.msra.mxu0 0
          %3726 = vmatpush.bf16.xpose.msra.mxu0 0
          %3727 = vmatpush.bf16.xpose.msra.mxu0 0
          %3728 = vmatpush.bf16.xpose.msra.mxu0 %v3719
          %3729 = vmatmul.bf16.gmra.mxu0 %v3698
          %v3730 = vpop.f32.mrf.mxu0
          %v3731 = vadd.f32 0.0, %v3730
          %v3732 = vpop.f32.mrf.mxu0
          %3733 = vdwg.mxu0
          %v3734 = vmul.f32 %v3713, 0.25
          %v3735 = vmul.f32 %v3731, 0.25
          %v3736 = vadd.f32 %v3734, %v1040
          %v3737 = vadd.f32 %v3735, %v1041
          %v3738 = vsel %vm3171, %v3736, -inf
          %3739 = vmax.xlane.f32.xlu0 %v3738
          %v3740 = vpop.xlane.xlu0 %3739
          %v3741 = vsel %vm3171, %v3737, -inf
          %3742 = vmax.xlane.f32.xlu0 %v3741
          %v3743 = vpop.xlane.xlu0 %3742
          %v3744 = vsub.f32 %v3736, %v3740
          %v3745 = vsub.f32 %v3737, %v3743
          %v3746 = vmul.f32 %v3744, 1.442695
          %v3747 = vpow.pop %v3746
          %v3748 = vmul.f32 %v3745, 1.442695
          %v3749 = vpow.pop %v3748
          %v3750 = vsel %vm3171, %v3747, 0.0
          %3751 = vadd.xlane.f32.xlu0 %v3750
          %v3752 = vpop.xlane.xlu0 %3751
          %v3753 = vsel %vm3171, %v3749, 0.0
          %3754 = vadd.xlane.f32.xlu0 %v3753
          %v3755 = vpop.xlane.xlu0 %3754
          %v3756 = vrcp.pop %v3752
          %v3757 = vrcp.pop %v3755
          %v3758 = vmul.f32 %v3747, %v3756
          %v3759 = vmul.f32 %v3749, %v3757
          %v3760 = vpack.c.bf16 %v3758, %v3758
          %v3761 = vpack.c.bf16 %v3759, %v3759
          %3762 = vrot.lane.b32.xlu0 %v3314, 48
          %v3763 = vpop.permute.xlu0 %3762
          %v3765 = vsel %vm1383, %v3760, 0
          %v3768 = vsel %vm1411, %v3763, 0
          %3770 = vmatpush.bf16.msra.mxu0 0
          %3771 = vmatpush.bf16.msra.mxu0 0
          %3772 = vmatpush.bf16.msra.mxu0 0
          %3773 = vmatpush.bf16.msra.mxu0 0
          %3774 = vmatpush.bf16.msra.mxu0 0
          %3775 = vmatpush.bf16.msra.mxu0 0
          %3776 = vmatpush.bf16.msra.mxu0 0
          %3777 = vmatpush.bf16.msra.mxu0 %v3768
          %3778 = vmatmul.bf16.gmra.mxu0 %v3765
          %v3779 = vpop.f32.mrf.mxu0
          %v3780 = vadd.f32 0.0, %v3779
          %v3781 = vpop.f32.mrf.mxu0
          %3782 = vdwg.mxu0
          %3783 = vrot.lane.b32.xlu0 %v3338, 48
          %v3784 = vpop.permute.xlu0 %3783
          %v3786 = vsel %vm1383, %v3761, 0
          %v3789 = vsel %vm1411, %v3784, 0
          %3791 = vmatpush.bf16.msra.mxu0 0
          %3792 = vmatpush.bf16.msra.mxu0 0
          %3793 = vmatpush.bf16.msra.mxu0 0
          %3794 = vmatpush.bf16.msra.mxu0 0
          %3795 = vmatpush.bf16.msra.mxu0 0
          %3796 = vmatpush.bf16.msra.mxu0 0
          %3797 = vmatpush.bf16.msra.mxu0 0
          %3798 = vmatpush.bf16.msra.mxu0 %v3789
          %3799 = vmatmul.bf16.gmra.mxu0 %v3786
          %v3800 = vpop.f32.mrf.mxu0
          %v3801 = vadd.f32 0.0, %v3800
          %v3802 = vpop.f32.mrf.mxu0
          %3803 = vdwg.mxu0
          %3804 = vrot.lane.b32.xlu0 %v3236, 32
          %v3805 = vpop.permute.xlu0 %3804
          %3806 = vrot.lane.b32.xlu0 %v3241, 32
          %v3807 = vpop.permute.xlu0 %3806
          %v3809 = vsel %vm1334, %v3805, 0
          %v3812 = vsel %vm1334, %v3807, 0
          %3814 = vmatpush.bf16.xpose.msra.mxu0 0
          %3815 = vmatpush.bf16.xpose.msra.mxu0 0
          %3816 = vmatpush.bf16.xpose.msra.mxu0 0
          %3817 = vmatpush.bf16.xpose.msra.mxu0 0
          %3818 = vmatpush.bf16.xpose.msra.mxu0 0
          %3819 = vmatpush.bf16.xpose.msra.mxu0 0
          %3820 = vmatpush.bf16.xpose.msra.mxu0 0
          %3821 = vmatpush.bf16.xpose.msra.mxu0 %v3812
          %3822 = vmatmul.bf16.gmra.mxu0 %v3809
          %v3823 = vpop.f32.mrf.mxu0
          %v3824 = vadd.f32 0.0, %v3823
          %v3825 = vpop.f32.mrf.mxu0
          %3826 = vdwg.mxu0
          %3827 = vrot.lane.b32.xlu0 %v3265, 32
          %v3828 = vpop.permute.xlu0 %3827
          %v3830 = vsel %vm1334, %v3828, 0
          %3832 = vmatpush.bf16.xpose.msra.mxu0 0
          %3833 = vmatpush.bf16.xpose.msra.mxu0 0
          %3834 = vmatpush.bf16.xpose.msra.mxu0 0
          %3835 = vmatpush.bf16.xpose.msra.mxu0 0
          %3836 = vmatpush.bf16.xpose.msra.mxu0 0
          %3837 = vmatpush.bf16.xpose.msra.mxu0 0
          %3838 = vmatpush.bf16.xpose.msra.mxu0 0
          %3839 = vmatpush.bf16.xpose.msra.mxu0 %v3830
          %3840 = vmatmul.bf16.gmra.mxu0 %v3809
          %v3841 = vpop.f32.mrf.mxu0
          %v3842 = vadd.f32 0.0, %v3841
          %v3843 = vpop.f32.mrf.mxu0
          %3844 = vdwg.mxu0
          %v3845 = vmul.f32 %v3824, 0.25
          %v3846 = vmul.f32 %v3842, 0.25
          %v3847 = vadd.f32 %v3845, %v1040
          %v3848 = vadd.f32 %v3846, %v1041
          %v3849 = vsel %vm3171, %v3847, -inf
          %3850 = vmax.xlane.f32.xlu0 %v3849
          %v3851 = vpop.xlane.xlu0 %3850
          %v3852 = vsel %vm3171, %v3848, -inf
          %3853 = vmax.xlane.f32.xlu0 %v3852
          %v3854 = vpop.xlane.xlu0 %3853
          %v3855 = vsub.f32 %v3847, %v3851
          %v3856 = vsub.f32 %v3848, %v3854
          %v3857 = vmul.f32 %v3855, 1.442695
          %v3858 = vpow.pop %v3857
          %v3859 = vmul.f32 %v3856, 1.442695
          %v3860 = vpow.pop %v3859
          %v3861 = vsel %vm3171, %v3858, 0.0
          %3862 = vadd.xlane.f32.xlu0 %v3861
          %v3863 = vpop.xlane.xlu0 %3862
          %v3864 = vsel %vm3171, %v3860, 0.0
          %3865 = vadd.xlane.f32.xlu0 %v3864
          %v3866 = vpop.xlane.xlu0 %3865
          %v3867 = vrcp.pop %v3863
          %v3868 = vrcp.pop %v3866
          %v3869 = vmul.f32 %v3858, %v3867
          %v3870 = vmul.f32 %v3860, %v3868
          %v3871 = vpack.c.bf16 %v3869, %v3869
          %v3872 = vpack.c.bf16 %v3870, %v3870
          %3873 = vrot.lane.b32.xlu0 %v3314, 32
          %v3874 = vpop.permute.xlu0 %3873
          %v3876 = vsel %vm1383, %v3871, 0
          %v3879 = vsel %vm1411, %v3874, 0
          %3881 = vmatpush.bf16.msra.mxu0 0
          %3882 = vmatpush.bf16.msra.mxu0 0
          %3883 = vmatpush.bf16.msra.mxu0 0
          %3884 = vmatpush.bf16.msra.mxu0 0
          %3885 = vmatpush.bf16.msra.mxu0 0
          %3886 = vmatpush.bf16.msra.mxu0 0
          %3887 = vmatpush.bf16.msra.mxu0 0
          %3888 = vmatpush.bf16.msra.mxu0 %v3879
          %3889 = vmatmul.bf16.gmra.mxu0 %v3876
          %v3890 = vpop.f32.mrf.mxu0
          %v3891 = vadd.f32 0.0, %v3890
          %v3892 = vpop.f32.mrf.mxu0
          %3893 = vdwg.mxu0
          %3894 = vrot.lane.b32.xlu0 %v3338, 32
          %v3895 = vpop.permute.xlu0 %3894
          %v3897 = vsel %vm1383, %v3872, 0
          %v3900 = vsel %vm1411, %v3895, 0
          %3902 = vmatpush.bf16.msra.mxu0 0
          %3903 = vmatpush.bf16.msra.mxu0 0
          %3904 = vmatpush.bf16.msra.mxu0 0
          %3905 = vmatpush.bf16.msra.mxu0 0
          %3906 = vmatpush.bf16.msra.mxu0 0
          %3907 = vmatpush.bf16.msra.mxu0 0
          %3908 = vmatpush.bf16.msra.mxu0 0
          %3909 = vmatpush.bf16.msra.mxu0 %v3900
          %3910 = vmatmul.bf16.gmra.mxu0 %v3897
          %v3911 = vpop.f32.mrf.mxu0
          %v3912 = vadd.f32 0.0, %v3911
          %v3913 = vpop.f32.mrf.mxu0
          %3914 = vdwg.mxu0
          %3915 = vrot.lane.b32.xlu0 %v3236, 16
          %v3916 = vpop.permute.xlu0 %3915
          %3917 = vrot.lane.b32.xlu0 %v3241, 16
          %v3918 = vpop.permute.xlu0 %3917
          %v3920 = vsel %vm1334, %v3916, 0
          %v3923 = vsel %vm1334, %v3918, 0
          %3925 = vmatpush.bf16.xpose.msra.mxu0 0
          %3926 = vmatpush.bf16.xpose.msra.mxu0 0
          %3927 = vmatpush.bf16.xpose.msra.mxu0 0
          %3928 = vmatpush.bf16.xpose.msra.mxu0 0
          %3929 = vmatpush.bf16.xpose.msra.mxu0 0
          %3930 = vmatpush.bf16.xpose.msra.mxu0 0
          %3931 = vmatpush.bf16.xpose.msra.mxu0 0
          %3932 = vmatpush.bf16.xpose.msra.mxu0 %v3923
          %3933 = vmatmul.bf16.gmra.mxu0 %v3920
          %v3934 = vpop.f32.mrf.mxu0
          %v3935 = vadd.f32 0.0, %v3934
          %v3936 = vpop.f32.mrf.mxu0
          %3937 = vdwg.mxu0
          %3938 = vrot.lane.b32.xlu0 %v3265, 16
          %v3939 = vpop.permute.xlu0 %3938
          %v3941 = vsel %vm1334, %v3939, 0
          %3943 = vmatpush.bf16.xpose.msra.mxu0 0
          %3944 = vmatpush.bf16.xpose.msra.mxu0 0
          %3945 = vmatpush.bf16.xpose.msra.mxu0 0
          %3946 = vmatpush.bf16.xpose.msra.mxu0 0
          %3947 = vmatpush.bf16.xpose.msra.mxu0 0
          %3948 = vmatpush.bf16.xpose.msra.mxu0 0
          %3949 = vmatpush.bf16.xpose.msra.mxu0 0
          %3950 = vmatpush.bf16.xpose.msra.mxu0 %v3941
          %3951 = vmatmul.bf16.gmra.mxu0 %v3920
          %v3952 = vpop.f32.mrf.mxu0
          %v3953 = vadd.f32 0.0, %v3952
          %v3954 = vpop.f32.mrf.mxu0
          %3955 = vdwg.mxu0
          %v3956 = vmul.f32 %v3935, 0.25
          %v3957 = vmul.f32 %v3953, 0.25
          %v3958 = vadd.f32 %v3956, %v1040
          %v3959 = vadd.f32 %v3957, %v1041
          %v3960 = vsel %vm3171, %v3958, -inf
          %3961 = vmax.xlane.f32.xlu0 %v3960
          %v3962 = vpop.xlane.xlu0 %3961
          %v3963 = vsel %vm3171, %v3959, -inf
          %3964 = vmax.xlane.f32.xlu0 %v3963
          %v3965 = vpop.xlane.xlu0 %3964
          %v3966 = vsub.f32 %v3958, %v3962
          %v3967 = vsub.f32 %v3959, %v3965
          %v3968 = vmul.f32 %v3966, 1.442695
          %v3969 = vpow.pop %v3968
          %v3970 = vmul.f32 %v3967, 1.442695
          %v3971 = vpow.pop %v3970
          %v3972 = vsel %vm3171, %v3969, 0.0
          %3973 = vadd.xlane.f32.xlu0 %v3972
          %v3974 = vpop.xlane.xlu0 %3973
          %v3975 = vsel %vm3171, %v3971, 0.0
          %3976 = vadd.xlane.f32.xlu0 %v3975
          %v3977 = vpop.xlane.xlu0 %3976
          %v3978 = vrcp.pop %v3974
          %v3979 = vrcp.pop %v3977
          %v3980 = vmul.f32 %v3969, %v3978
          %v3981 = vmul.f32 %v3971, %v3979
          %v3982 = vpack.c.bf16 %v3980, %v3980
          %v3983 = vpack.c.bf16 %v3981, %v3981
          %3984 = vrot.lane.b32.xlu0 %v3314, 16
          %v3985 = vpop.permute.xlu0 %3984
          %v3987 = vsel %vm1383, %v3982, 0
          %v3990 = vsel %vm1411, %v3985, 0
          %3992 = vmatpush.bf16.msra.mxu0 0
          %3993 = vmatpush.bf16.msra.mxu0 0
          %3994 = vmatpush.bf16.msra.mxu0 0
          %3995 = vmatpush.bf16.msra.mxu0 0
          %3996 = vmatpush.bf16.msra.mxu0 0
          %3997 = vmatpush.bf16.msra.mxu0 0
          %3998 = vmatpush.bf16.msra.mxu0 0
          %3999 = vmatpush.bf16.msra.mxu0 %v3990
          %4000 = vmatmul.bf16.gmra.mxu0 %v3987
          %v4001 = vpop.f32.mrf.mxu0
          %v4002 = vadd.f32 0.0, %v4001
          %v4003 = vpop.f32.mrf.mxu0
          %4004 = vdwg.mxu0
          %4005 = vrot.lane.b32.xlu0 %v3338, 16
          %v4006 = vpop.permute.xlu0 %4005
          %v4008 = vsel %vm1383, %v3983, 0
          %v4011 = vsel %vm1411, %v4006, 0
          %4013 = vmatpush.bf16.msra.mxu0 0
          %4014 = vmatpush.bf16.msra.mxu0 0
          %4015 = vmatpush.bf16.msra.mxu0 0
          %4016 = vmatpush.bf16.msra.mxu0 0
          %4017 = vmatpush.bf16.msra.mxu0 0
          %4018 = vmatpush.bf16.msra.mxu0 0
          %4019 = vmatpush.bf16.msra.mxu0 0
          %4020 = vmatpush.bf16.msra.mxu0 %v4011
          %4021 = vmatmul.bf16.gmra.mxu0 %v4008
          %v4022 = vpop.f32.mrf.mxu0
          %v4023 = vadd.f32 0.0, %v4022
          %v4024 = vpop.f32.mrf.mxu0
          %4025 = vdwg.mxu0
          %4028 = vrot.lane.b32.xlu0 %v3333, 16
          %v4029 = vpop.permute.xlu0 %4028
          %4030 = vrot.lane.b32.xlu0 %v3357, 16
          %v4031 = vpop.permute.xlu0 %4030
          %4036 = vrot.lane.b32.xlu0 %v3447, 32
          %v4037 = vpop.permute.xlu0 %4036
          %4038 = vrot.lane.b32.xlu0 %v3468, 32
          %v4039 = vpop.permute.xlu0 %4038
          %4044 = vrot.lane.b32.xlu0 %v3558, 48
          %v4045 = vpop.permute.xlu0 %4044
          %4046 = vrot.lane.b32.xlu0 %v3579, 48
          %v4047 = vpop.permute.xlu0 %4046
          %4052 = vrot.lane.b32.xlu0 %v3669, 64
          %v4053 = vpop.permute.xlu0 %4052
          %4054 = vrot.lane.b32.xlu0 %v3690, 64
          %v4055 = vpop.permute.xlu0 %4054
          %4060 = vrot.lane.b32.xlu0 %v3780, 80
          %v4061 = vpop.permute.xlu0 %4060
          %4062 = vrot.lane.b32.xlu0 %v3801, 80
          %v4063 = vpop.permute.xlu0 %4062
          %4068 = vrot.lane.b32.xlu0 %v3891, 96
          %v4069 = vpop.permute.xlu0 %4068
          %4070 = vrot.lane.b32.xlu0 %v3912, 96
          %v4071 = vpop.permute.xlu0 %4070
          %4076 = vrot.lane.b32.xlu0 %v4002, 112
          %v4077 = vpop.permute.xlu0 %4076
          %4078 = vrot.lane.b32.xlu0 %v4023, 112
          %v4079 = vpop.permute.xlu0 %4078
          %v4082 = vsel %vm1334, %v3212, %v4029
          %v4083 = vsel %vm1334, %v3231, %v4031
          %v4084 = vsel %vm2335, %v4082, %v4037
          %v4085 = vsel %vm2335, %v4083, %v4039
          %v4086 = vsel %vm2338, %v4084, %v4045
          %v4087 = vsel %vm2338, %v4085, %v4047
          %v4088 = vsel %vm2341, %v4086, %v4053
          %v4089 = vsel %vm2341, %v4087, %v4055
          %v4090 = vsel %vm2344, %v4088, %v4061
          %v4091 = vsel %vm2344, %v4089, %v4063
          %v4092 = vsel %vm2347, %v4090, %v4069
          %v4093 = vsel %vm2347, %v4091, %v4071
          %v4094 = vsel %vm2350, %v4092, %v4077
          %v4095 = vsel %vm2350, %v4093, %v4079
          %v4096 = vld [vmem:[%s21] sm:$0xf]
          %v4097 = vld [vmem:[%s21 + $0x4] sm:$0xf]
          %v4098 = vld [vmem:[%s21 + $0x8] sm:$0xf]
          %v4099 = vld [vmem:[%s21 + $0xc] sm:$0xf]
          %v4100 = vld [vmem:[%s21 + $0x10] sm:$0xf]
          %v4101 = vld [vmem:[%s21 + $0x14] sm:$0xf]
          %v4102 = vld [vmem:[%s21 + $0x18] sm:$0xf]
          %v4103 = vld [vmem:[%s21 + $0x1c] sm:$0xf]
          %v4104 = vld [vmem:[%s21 + $0x20] sm:$0xf]
          %v4105 = vld [vmem:[%s21 + $0x24] sm:$0xf]
          %v4106 = vld [vmem:[%s21 + $0x28] sm:$0xf]
          %v4107 = vld [vmem:[%s21 + $0x2c] sm:$0xf]
          %v4108 = vld [vmem:[%s21 + $0x30] sm:$0xf]
          %v4109 = vld [vmem:[%s21 + $0x34] sm:$0xf]
          %v4110 = vld [vmem:[%s21 + $0x38] sm:$0xf]
          %v4111 = vld [vmem:[%s21 + $0x3c] sm:$0xf]
          %v4112 = vpack.c.bf16 %v4094, %v4094
          %v4113 = vpack.c.bf16 %v4095, %v4095
          %v4114 = vld [vmem:[%s22] sm:$0x1]
          %v4116 = vperm.slane %v4114, 0
          %v4120 = vunpack.c.l.b16 %v4112
          %v4121 = vunpack.c.l.b16 %v4113
          %v4122 = vrot.slane %v4121, 7
          %vm4123 = vcmask 1041409
          %v4124 = vsel %vm4123, %v4122, %v4120
          %v4125 = vpack.c.b16 %v4124, %v4124
          %v4143 = vunpack.c.l.b16 %v4096
          %v4144 = vunpack.c.l.b16 %v4097
          %v4145 = vunpack.c.l.b16 %v4098
          %v4146 = vunpack.c.l.b16 %v4099
          %v4147 = vunpack.c.l.b16 %v4100
          %v4148 = vunpack.c.l.b16 %v4101
          %v4149 = vunpack.c.l.b16 %v4102
          %v4150 = vunpack.c.l.b16 %v4103
          %v4151 = vunpack.c.l.b16 %v4104
          %v4152 = vunpack.c.l.b16 %v4105
          %v4153 = vunpack.c.l.b16 %v4106
          %v4154 = vunpack.c.l.b16 %v4107
          %v4155 = vunpack.c.l.b16 %v4108
          %v4156 = vunpack.c.l.b16 %v4109
          %v4157 = vunpack.c.l.b16 %v4110
          %v4158 = vunpack.c.l.b16 %v4111
          %v4159 = vpack.c.b16 %v4144, %v4143
          %v4160 = vpack.c.b16 %v4146, %v4145
          %v4161 = vpack.c.b16 %v4148, %v4147
          %v4162 = vpack.c.b16 %v4150, %v4149
          %v4163 = vpack.c.b16 %v4152, %v4151
          %v4164 = vpack.c.b16 %v4154, %v4153
          %v4165 = vpack.c.b16 %v4156, %v4155
          %v4166 = vpack.c.b16 %v4158, %v4157
          %4175 = vmatpush.bf16.msra.mxu0 %v4166
          %4176 = vmatpush.bf16.msra.mxu0 %v4165
          %4177 = vmatpush.bf16.msra.mxu0 %v4164
          %4178 = vmatpush.bf16.msra.mxu0 %v4163
          %4179 = vmatpush.bf16.msra.mxu0 %v4162
          %4180 = vmatpush.bf16.msra.mxu0 %v4161
          %4181 = vmatpush.bf16.msra.mxu0 %v4160
          %4182 = vmatpush.bf16.msra.mxu0 %v4159
          %4183 = vmatmul.bf16.gmra.mxu0 %v4125
          %v4184 = vpop.f32.mrf.mxu0
          %v4185 = vadd.f32 %v4116, %v4184
          %v4186 = vpop.f32.mrf.mxu0
          %4187 = vdwg.mxu0
          %v4189 = vrot.slane %v4185, 1
          %4191 = vst [vmem:[#allocation12] sm:$0x1] %v4185
          %4192 = vst [vmem:[#allocation12 + $0x1] sm:$0x1] %v4189
        $region140: #{text_encoder_forward.1} parent=111 // pred_fallthru
          _
        // Predicated region
        $region141: #{text_encoder_forward.1} parent=111 // pred_check
          %p4193 = pneg %p627
        $region142: #{text_encoder_forward.1} parent=111 // pred_check_branch
          %4195 = sbr.rel (%p4193) target = $region144
        $region143: #{text_encoder_forward.1} parent=111 // pred_region
          %s4196 = smul.u32 2, %s48
          %4198 = vsyncadd [#allocation5], 0
          %s4199 = scalar_lea.hbm %s23, %s4196
          %s4200 = sshll.u32 [#allocation12], 4
          %s4201 = int_to_ptr.vmem [resolvable:$true] %s4200
          %s4202 = sshll.u32 %s4199, 4
          %s4203 = int_to_ptr.hbm [resolvable:$true] %s4202
          %4208 = dma.vmem_to_hbm [thread:$0]  %s4201, 32, %s4203, [#allocation5], 16, 16, 1
        $region144: #{text_encoder_forward.1} parent=111 // pred_fallthru
          _
        // Predicated region
        $region145: #{text_encoder_forward.1} parent=111 // pred_check
          %p4209 = pneg %p627
        $region146: #{text_encoder_forward.1} parent=111 // pred_check_branch
          %4211 = sbr.rel (%p4209) target = $region148
        $region147: #{text_encoder_forward.1} parent=111 // pred_region
          %4213 = dma.done [#allocation5], 32
        $region148: #{text_encoder_forward.1} parent=111 // pred_fallthru
          _
      $region112: #{text_encoder_forward.1} parent=5 // pred_fallthru
        _
      %p4214 = scmp.le.s32.totalorder 2, %s39
      // Predicated region
      $region149: #{text_encoder_forward.1} parent=5 // pred_check
        %p4215 = pneg %p4214
      $region150: #{text_encoder_forward.1} parent=5 // pred_check_branch
        %4217 = sbr.rel (%p4215) target = $region152
      $region151: #{text_encoder_forward.1} parent=5 // pred_region
        %s4218 = ssub.s32 %s39, 2
      $region152: #{text_encoder_forward.1} parent=5 // pred_fallthru
        _
    $region6: #{text_encoder_forward.1} parent=1 // loop_footer
      %s43 = sadd.s32 1, %s39
    $region7: #{text_encoder_forward.1} parent=1 // loop_footer_branch
      %38 = sbr.rel target = $region3
    $region8: #{text_encoder_forward.1} parent=1 // loop_exit
      _
    %4219 = vsyncpa [#allocation4], 1
    %s4220 = scalar_lea.sflag [#allocation4], 1
    %4221 = vsyncpa %s4220, 1
    %4222 = vsyncpa [#allocation7], 1
    %s4223 = scalar_lea.sflag [#allocation7], 1
    %4224 = vsyncpa %s4223, 1
    %4225 = vsyncpa [#allocation10], 1
    %s4226 = scalar_lea.sflag [#allocation10], 1
    %4227 = vsyncpa %s4226, 1
    %4228 = vsyncpa [#allocation5], 1
    %s4229 = scalar_lea.sflag [#allocation5], 1
    %4230 = vsyncpa %s4229, 1

</llo_original>
